<compile_context>
chip_gen: v6e
topology: v6e:2x2x1
jax: 0.10.0
libtpu: 0.0.40
codegen_flags: <defaults>
</compile_context>

<pallas_src>
import math
import functools

import jax
import jax.numpy as jnp
from jax import lax
from jax.experimental import pallas as pl
from jax.experimental.pallas import tpu as pltpu


# ---------------------------------------------------------------------------
# Small helpers.
# ---------------------------------------------------------------------------
def _choose_tile(n, target):
    """Largest divisor of n that is <= target (n itself if n <= target)."""
    if n <= target:
        return n
    best = 1
    for t in range(1, target + 1):
        if n % t == 0:
            best = t
    return best


def _vmem_limit_bytes(*term_bytes):
    """2x (double-buffering) + headroom, capped below v7x physical VMEM."""
    need = 2 * int(sum(term_bytes)) + (2 << 20)
    return int(min(max(need, 8 << 20), 60 << 20))


# ---------------------------------------------------------------------------
# Kernel 1: fused LayerNorm + packed QKV projection.
#   out qkv: (3, B, S, D) in compute dtype; Q already scaled by 1/sqrt(d_k)
#   (the scale is folded into the prepared Wq / bq slabs).
# ---------------------------------------------------------------------------
def _ln_qkv_kernel(x_ref, a_ref, b_ref, w_ref, bias_ref, qkv_ref, *,
                   eps, d_model, compute_dtype):
    x = x_ref[0].astype(jnp.float32)                       # (tile_s, D)
    mean = jnp.mean(x, axis=-1, keepdims=True)
    xc = x - mean
    # PyTorch .std(): unbiased variance; eps added to the std (spec semantics).
    var = jnp.sum(xc * xc, axis=-1, keepdims=True) * (1.0 / (d_model - 1))
    inv = 1.0 / (jnp.sqrt(var) + eps)
    normed = (a_ref[...] * (xc * inv) + b_ref[...]).astype(compute_dtype)

    # One wide MXU matmul: (tile_s, D) x (D, 3D), f32 accumulation + f32 bias.
    y = jnp.dot(normed, w_ref[...], preferred_element_type=jnp.float32) + bias_ref[...]

    qkv_ref[0, 0] = y[:, :d_model].astype(qkv_ref.dtype)             # Q (pre-scaled)
    qkv_ref[1, 0] = y[:, d_model:2 * d_model].astype(qkv_ref.dtype)  # K
    qkv_ref[2, 0] = y[:, 2 * d_model:].astype(qkv_ref.dtype)         # V


def ln_qkv_projection(x, a2, b2, w_qkv, b_qkv, *, eps, compute_dtype):
    B, S, D = x.shape
    tile_s = _choose_tile(S, 512)
    cdb = jnp.dtype(compute_dtype).itemsize
    vmem = _vmem_limit_bytes(
        tile_s * D * x.dtype.itemsize,        # x tile
        2 * D * 4,                            # a2 / b2
        D * 3 * D * cdb,                      # resident W_qkv
        3 * D * 4,                            # bias
        3 * tile_s * D * cdb)                 # qkv output tile

    return pl.pallas_call(
        functools.partial(_ln_qkv_kernel, eps=eps, d_model=D,
                          compute_dtype=compute_dtype),
        out_shape=jax.ShapeDtypeStruct((3, B, S, D), compute_dtype),
        grid_spec=pltpu.PrefetchScalarGridSpec(
            num_scalar_prefetch=0,
            grid=(B, S // tile_s),
            in_specs=[
                pl.BlockSpec((1, tile_s, D), lambda b, s: (b, s, 0)),
                pl.BlockSpec((1, D), lambda b, s: (0, 0)),
                pl.BlockSpec((1, D), lambda b, s: (0, 0)),
                pl.BlockSpec((D, 3 * D), lambda b, s: (0, 0)),
                pl.BlockSpec((1, 3 * D), lambda b, s: (0, 0)),
            ],
            out_specs=pl.BlockSpec((3, 1, tile_s, D), lambda b, s: (0, b, s, 0)),
        ),
        compiler_params=pltpu.CompilerParams(
            dimension_semantics=("parallel", "parallel"),
            vmem_limit_bytes=vmem),
    )(x, a2.reshape(1, D), b2.reshape(1, D), w_qkv, b_qkv)


# ---------------------------------------------------------------------------
# Kernel 2: flash-style attention over packed qkv (3, B, S, D).
#   grid (B, q_tiles, kv_tiles); kv axis is the reduction ("arbitrary").
#   All heads of a (b, qi) tile are processed in one invocation, so the output
#   is written lane-dense in D and no head split/merge transposes are needed.
# ---------------------------------------------------------------------------
def _flash_attn_kernel(*refs, causal, has_mask, num_heads, d_k,
                       block_q, block_kv, approx_recip):
    if has_mask:
        mask_ref, q_ref, k_ref, v_ref, o_ref, m_ref, l_ref, acc_ref = refs
    else:
        q_ref, k_ref, v_ref, o_ref, m_ref, l_ref, acc_ref = refs
        mask_ref = None

    qi = pl.program_id(1)
    ki = pl.program_id(2)

    @pl.when(ki == 0)
    def _():
        m_ref[...] = jnp.full(m_ref.shape, -jnp.inf, jnp.float32)
        l_ref[...] = jnp.zeros(l_ref.shape, jnp.float32)
        acc_ref[...] = jnp.zeros(acc_ref.shape, jnp.float32)

    def compute():
        q = q_ref[0, 0]                                    # (block_q, D), Q pre-scaled
        k = k_ref[0, 0]                                    # (block_kv, D)
        v = v_ref[0, 0]                                    # (block_kv, D)
        if causal:
            row = qi * block_q + lax.broadcasted_iota(jnp.int32, (block_q, block_kv), 0)
            col = ki * block_kv + lax.broadcasted_iota(jnp.int32, (block_q, block_kv), 1)
            causal_ok = col <= row
        if has_mask:
            kmask = mask_ref[0]                            # (1, block_kv) int8

        # Static per-head loop; at realistic d_k (>=128) the slices are
        # lane-aligned.  TODO(synk): co-block heads into wider MXU pushes when
        # d_k < 128 on v6e/v7x (256-wide MXU).
        for hh in range(num_heads):
            sl = slice(hh * d_k, (hh + 1) * d_k)
            s = lax.dot_general(q[:, sl], k[:, sl],
                                dimension_numbers=(((1,), (1,)), ((), ())),
                                preferred_element_type=jnp.float32)
            if causal:
                s = jnp.where(causal_ok, s, -1e9)
            if has_mask:
                s = jnp.where(kmask == 0, -1e9, s)

            m_prev = m_ref[hh]
            m_new = jnp.maximum(m_prev, jnp.max(s, axis=-1, keepdims=True))
            alpha = jnp.exp(m_prev - m_new)
            p = jnp.exp(s - m_new)
            l_ref[hh] = alpha * l_ref[hh] + jnp.sum(p, axis=-1, keepdims=True)
            acc_ref[hh] = alpha * acc_ref[hh] + jnp.dot(
                p.astype(v.dtype), v[:, sl], preferred_element_type=jnp.float32)
            m_ref[hh] = m_new

    if causal:
        # Skip kv tiles that lie entirely above the diagonal.
        @pl.when(ki * block_kv < (qi + 1) * block_q)
        def _():
            compute()
    else:
        compute()

    @pl.when(ki == pl.num_programs(2) - 1)
    def _():
        outs = []
        for hh in range(num_heads):
            inv = pl.reciprocal(l_ref[hh], approx=approx_recip)
            outs.append(acc_ref[hh] * inv)
        o_ref[0] = jnp.concatenate(outs, axis=-1).astype(o_ref.dtype)


def flash_attention(qkv, *, num_heads, key_mask=None, causal=False,
                    approx_recip=True, block_q=None, block_kv=None):
    _, B, S, D = qkv.shape
    assert D % num_heads == 0
    d_k = D // num_heads
    block_q = block_q or _choose_tile(S, 256)
    block_kv = block_kv or _choose_tile(S, 512)
    # TODO(synk): ragged / padded sequence lengths not handled (S must tile).
    assert S % block_q == 0 and S % block_kv == 0
    nq, nkv = S // block_q, S // block_kv
    has_mask = key_mask is not None

    kernel = functools.partial(
        _flash_attn_kernel, causal=causal, has_mask=has_mask,
        num_heads=num_heads, d_k=d_k, block_q=block_q, block_kv=block_kv,
        approx_recip=approx_recip)

    q_spec = pl.BlockSpec((1, 1, block_q, D), lambda b, qi, ki: (0, b, qi, 0))
    k_spec = pl.BlockSpec((1, 1, block_kv, D), lambda b, qi, ki: (1, b, ki, 0))
    v_spec = pl.BlockSpec((1, 1, block_kv, D), lambda b, qi, ki: (2, b, ki, 0))

    in_specs, args = [], []
    if has_mask:
        # (B, S) int8 key-padding mask, broadcast over query rows in-kernel.
        km = key_mask.reshape(B, 1, S).astype(jnp.int8)
        in_specs.append(pl.BlockSpec((1, 1, block_kv), lambda b, qi, ki: (b, 0, ki)))
        args.append(km)
    in_specs += [q_spec, k_spec, v_spec]
    args += [qkv, qkv, qkv]        # three views into the same packed tensor

    cdb = qkv.dtype.itemsize
    vmem = _vmem_limit_bytes(
        block_q * D * cdb,                    # q tile
        2 * block_kv * D * cdb,               # k, v tiles
        (block_kv if has_mask else 0),        # mask tile
        block_q * D * cdb,                    # output tile
        num_heads * block_q * (d_k + 2) * 4)  # f32 scratch (m, l, acc)

    return pl.pallas_call(
        kernel,
        out_shape=jax.ShapeDtypeStruct((B, S, D), qkv.dtype),
        grid_spec=pltpu.PrefetchScalarGridSpec(
            num_scalar_prefetch=0,
            grid=(B, nq, nkv),
            in_specs=in_specs,
            out_specs=pl.BlockSpec((1, block_q, D), lambda b, qi, ki: (b, qi, 0)),
            scratch_shapes=[
                pltpu.VMEM((num_heads, block_q, 1), jnp.float32),    # running max
                pltpu.VMEM((num_heads, block_q, 1), jnp.float32),    # running sum
                pltpu.VMEM((num_heads, block_q, d_k), jnp.float32),  # ctx accum
            ],
        ),
        compiler_params=pltpu.CompilerParams(
            dimension_semantics=("parallel", "parallel", "arbitrary"),
            vmem_limit_bytes=vmem),
    )(*args)


# ---------------------------------------------------------------------------
# Kernel 3: output projection fused with the residual add.
# ---------------------------------------------------------------------------
def _out_residual_kernel(ctx_ref, x_ref, w_ref, b_ref, o_ref):
    y = jnp.dot(ctx_ref[0], w_ref[...],
                preferred_element_type=jnp.float32) + b_ref[...]
    o_ref[0] = (x_ref[0].astype(jnp.float32) + y).astype(o_ref.dtype)


def out_proj_residual(ctx, x, wo_t, bo):
    B, S, D = x.shape
    tile_s = _choose_tile(S, 512)
    cdb = ctx.dtype.itemsize
    vmem = _vmem_limit_bytes(
        tile_s * D * cdb,                 # ctx tile
        tile_s * D * x.dtype.itemsize,    # residual tile
        D * D * cdb,                      # resident Wo
        D * 4,                            # bias
        tile_s * D * x.dtype.itemsize)    # output tile
    ts_spec = pl.BlockSpec((1, tile_s, D), lambda b, s: (b, s, 0))
    return pl.pallas_call(
        _out_residual_kernel,
        out_shape=jax.ShapeDtypeStruct((B, S, D), x.dtype),
        grid_spec=pltpu.PrefetchScalarGridSpec(
            num_scalar_prefetch=0,
            grid=(B, S // tile_s),
            in_specs=[ts_spec, ts_spec,
                      pl.BlockSpec((D, D), lambda b, s: (0, 0)),
                      pl.BlockSpec((1, D), lambda b, s: (0, 0))],
            out_specs=ts_spec,
        ),
        compiler_params=pltpu.CompilerParams(
            dimension_semantics=("parallel", "parallel"),
            vmem_limit_bytes=vmem),
    )(ctx, x, wo_t, bo)


# ---------------------------------------------------------------------------
# Weight preparation (done ONCE, outside the jitted per-step forward):
# transpose to MXU layout, concatenate Wq|Wk|Wv, fold 1/sqrt(d_k) into the Q
# slab, cast to the compute dtype.
# ---------------------------------------------------------------------------
def prepare_mha_params(params, h, compute_dtype):
    wq, bq, wk, bk, wv, bv, wo, bo = params
    D = wq.shape[0]
    d_k = D // h
    scale = 1.0 / math.sqrt(d_k)
    w_qkv = jnp.concatenate([wq.T * scale, wk.T, wv.T], axis=1).astype(compute_dtype)
    b_qkv = jnp.concatenate([bq * scale, bk, bv], axis=0).reshape(1, 3 * D).astype(jnp.float32)
    wo_t = wo.T.astype(compute_dtype)
    bo_r = bo.reshape(1, D).astype(jnp.float32)
    return w_qkv, b_qkv, wo_t, bo_r


# ---------------------------------------------------------------------------
# SublayerConnection.forward with the MHA self-attention sublayer, fully fused:
#   LayerNorm lives inside the QKV kernel, the residual inside the out-proj.
# TODO(synk): training-mode dropout and generic (non-attention) sublayers are
# not implemented; eval-mode dropout is the identity.
# ---------------------------------------------------------------------------
@functools.partial(jax.jit,
                   static_argnames=("h", "causal", "compute_dtype", "eps"))
def sublayer_block(x, prepared, a2, b2, key_mask=None, *, h, causal=False,
                   compute_dtype=jnp.bfloat16, eps=1e-6):
    w_qkv, b_qkv, wo_t, bo_r = prepared
    qkv = ln_qkv_projection(x, a2, b2, w_qkv, b_qkv,
                            eps=eps, compute_dtype=compute_dtype)
    ctx = flash_attention(qkv, num_heads=h, key_mask=key_mask, causal=causal,
                          approx_recip=(compute_dtype == jnp.bfloat16))
    return out_proj_residual(ctx, x, wo_t, bo_r)


# ---------------------------------------------------------------------------
# Pure-JAX reference (faithful port of the PyTorch forward, dropout identity).
# ---------------------------------------------------------------------------
def layer_norm_ref(x, a2, b2, eps=1e-6):
    mean = x.mean(-1, keepdims=True)
    var = ((x - mean) ** 2).sum(-1, keepdims=True) / (x.shape[-1] - 1)  # unbiased
    return a2 * (x - mean) / (jnp.sqrt(var) + eps) + b2


def mha_ref(query, key, value, params, h, key_mask=None, causal=False):
    B, S, D = query.shape
    d_k = D // h
    wq, bq, wk, bk, wv, bv, wo, bo = params
    lin = lambda x, w, b: x @ w.T + b
    heads = lambda x: x.reshape(B, S, h, d_k).transpose(0, 2, 1, 3)
    q = heads(lin(query, wq, bq))
    k = heads(lin(key, wk, bk))
    v = heads(lin(value, wv, bv))
    scores = jnp.einsum("bhqd,bhkd->bhqk", q, k) / math.sqrt(d_k)
    if causal:
        cm = jnp.tril(jnp.ones((S, S), jnp.float32))
        scores = jnp.where(cm[None, None] == 0, -1e9, scores)
    if key_mask is not None:
        scores = jnp.where(key_mask[:, None, None, :] == 0, -1e9, scores)
    p = jax.nn.softmax(scores, axis=-1)
    ctx = jnp.einsum("bhqk,bhkd->bhqd", p, v).transpose(0, 2, 1, 3).reshape(B, S, D)
    return lin(ctx, wo, bo)


def sublayer_connection_ref(x, params, h, a2, b2, key_mask=None, causal=False):
    n = layer_norm_ref(x, a2, b2)
    return x + mha_ref(n, n, n, params, h, key_mask=key_mask, causal=causal)


def init_params(key, d_model):
    """Deterministic nn.Linear-style init: 4 x (weight (D,D), bias (D,))."""
    bound = 1.0 / math.sqrt(d_model)
    keys = jax.random.split(key, 8)
    params = []
    for i in range(4):
        w = jax.random.uniform(keys[2 * i], (d_model, d_model),
                               jnp.float32, -bound, bound)
        b = jax.random.uniform(keys[2 * i + 1], (d_model,),
                               jnp.float32, -bound, bound)
        params.extend([w, b])
    return tuple(params)


if __name__ == "__main__":
    B, S, d_model, h = 2, 16, 32, 4

    root = jax.random.PRNGKey(0)
    kp, kx, ka, kb = jax.random.split(root, 4)
    params = init_params(kp, d_model)
    a2 = 1.0 + 0.1 * jax.random.normal(ka, (d_model,), jnp.float32)
    b2 = 0.1 * jax.random.normal(kb, (d_model,), jnp.float32)
    x = jax.random.normal(kx, (B, S, d_model), jnp.float32)

    # (B, S) key-padding mask: batch 1 masks out its last 5 keys.
    key_mask = jnp.ones((B, S), jnp.float32).at[1, S - 5:].set(0.0)

    prep_f32 = prepare_mha_params(params, h, jnp.float32)
    prep_bf16 = prepare_mha_params(params, h, jnp.bfloat16)

    with jax.default_matmul_precision("float32"):
        ref_causal = sublayer_connection_ref(x, params, h, a2, b2, causal=True)
        ref_keymask = sublayer_connection_ref(x, params, h, a2, b2, key_mask=key_mask)
        ref_plain = sublayer_connection_ref(x, params, h, a2, b2)

    # 1) f32 MXU path, in-kernel causal mask (with masked-tile skipping).
    out_f32 = jax.block_until_ready(
        sublayer_block(x, prep_f32, a2, b2, h=h, causal=True,
                       compute_dtype=jnp.float32))
    if not jnp.allclose(out_f32, ref_causal, rtol=1e-4, atol=1e-4):
        raise AssertionError("f32 causal path does not match reference")

    # 2) bf16 MXU path (default), in-kernel causal mask.
    out_bf16 = jax.block_until_ready(
        sublayer_block(x, prep_bf16, a2, b2, h=h, causal=True,
                       compute_dtype=jnp.bfloat16))
    if not jnp.allclose(out_bf16, ref_causal, rtol=5e-2, atol=5e-2):
        raise AssertionError("bf16 causal path does not match reference")

    # 3) (B,S) key-padding mask path (no dense (B,S,S) mask tensor).
    out_km = jax.block_until_ready(
        sublayer_block(x, prep_bf16, a2, b2, key_mask, h=h, causal=False,
                       compute_dtype=jnp.bfloat16))
    if not jnp.allclose(out_km, ref_keymask, rtol=5e-2, atol=5e-2):
        raise AssertionError("key-mask path does not match reference")

    # 4) no-mask f32 path.
    out_plain = jax.block_until_ready(
        sublayer_block(x, prep_f32, a2, b2, h=h, causal=False,
                       compute_dtype=jnp.float32))
    if not jnp.allclose(out_plain, ref_plain, rtol=1e-4, atol=1e-4):
        raise AssertionError("no-mask path does not match reference")

    print("KERNEL_OK")
</pallas_src>

<mosaic_0001>
module attributes {stable_mosaic.version = 11 : i64} {
  func.func @_flash_attn_kernel(%arg0: i32, %arg1: i32, %arg2: i32, %arg3: memref<1x1x16x32xf32, #tpu.memory_space<vmem>>, %arg4: memref<1x1x16x32xf32, #tpu.memory_space<vmem>>, %arg5: memref<1x1x16x32xf32, #tpu.memory_space<vmem>>, %arg6: memref<1x16x32xf32, #tpu.memory_space<vmem>>, %arg7: memref<4x16x1xf32, #tpu.memory_space<vmem>>, %arg8: memref<4x16x1xf32, #tpu.memory_space<vmem>>, %arg9: memref<4x16x8xf32, #tpu.memory_space<vmem>>) attributes {dimension_semantics = [#tpu.dimension_semantics<parallel>, #tpu.dimension_semantics<parallel>, #tpu.dimension_semantics<arbitrary>], iteration_bounds = array<i64: 2, 1, 1>, scalar_prefetch = 0 : i64, scratch_operands = 3 : i64, tpu.core_type = #tpu.core_type<tc>, window_params = [{transform_indices = @transform_0, window_bounds = array<i64: 1, 1, 16, 32>}, {transform_indices = @transform_1, window_bounds = array<i64: 1, 1, 16, 32>}, {transform_indices = @transform_2, window_bounds = array<i64: 1, 1, 16, 32>}, {transform_indices = @transform_3, window_bounds = array<i64: 1, 16, 32>}]} {
    %c0_i32 = arith.constant 0 : i32
    %0 = arith.cmpi eq, %arg2, %c0_i32 : i32
    %1 = arith.extui %0 : i1 to i32
    %c0_i32_0 = arith.constant 0 : i32
    %2 = arith.cmpi ne, %1, %c0_i32_0 : i32
    scf.if %2 {
      %cst = arith.constant 0xFF800000 : f32
      %12 = vector.broadcast %cst : f32 to vector<4x16x1xf32>
      %c0 = arith.constant 0 : index
      %c0_5 = arith.constant 0 : index
      %c0_6 = arith.constant 0 : index
      %13 = vector.load %arg7[%c0, %c0_5, %c0_6] : memref<4x16x1xf32, #tpu.memory_space<vmem>>, vector<4x16x1xf32>
      tpu.vector_store %arg7[%c0, %c0_5, %c0_6], %12 {strides = array<i32>} : memref<4x16x1xf32, #tpu.memory_space<vmem>>, vector<4x16x1xf32>,
      %cst_7 = arith.constant 0.000000e+00 : f32
      %14 = vector.broadcast %cst_7 : f32 to vector<4x16x1xf32>
      %c0_8 = arith.constant 0 : index
      %c0_9 = arith.constant 0 : index
      %c0_10 = arith.constant 0 : index
      %15 = vector.load %arg8[%c0_8, %c0_9, %c0_10] : memref<4x16x1xf32, #tpu.memory_space<vmem>>, vector<4x16x1xf32>
      tpu.vector_store %arg8[%c0_8, %c0_9, %c0_10], %14 {strides = array<i32>} : memref<4x16x1xf32, #tpu.memory_space<vmem>>, vector<4x16x1xf32>,
      %cst_11 = arith.constant 0.000000e+00 : f32
      %16 = vector.broadcast %cst_11 : f32 to vector<4x16x8xf32>
      %c0_12 = arith.constant 0 : index
      %c0_13 = arith.constant 0 : index
      %c0_14 = arith.constant 0 : index
      %17 = vector.load %arg9[%c0_12, %c0_13, %c0_14] : memref<4x16x8xf32, #tpu.memory_space<vmem>>, vector<4x16x8xf32>
      tpu.vector_store %arg9[%c0_12, %c0_13, %c0_14], %16 {strides = array<i32>} : memref<4x16x8xf32, #tpu.memory_space<vmem>>, vector<4x16x8xf32>,
    } else {
    }
    %c16_i32 = arith.constant 16 : i32
    %3 = arith.muli %arg2, %c16_i32 : i32
    %c1_i32 = arith.constant 1 : i32
    %4 = arith.addi %arg1, %c1_i32 : i32
    %c16_i32_1 = arith.constant 16 : i32
    %5 = arith.muli %4, %c16_i32_1 : i32
    %6 = arith.cmpi slt, %3, %5 : i32
    %7 = arith.extui %6 : i1 to i32
    %c0_i32_2 = arith.constant 0 : i32
    %8 = arith.cmpi ne, %7, %c0_i32_2 : i32
    scf.if %8 {
      %c0 = arith.constant 0 : index
      %c0_5 = arith.constant 0 : index
      %c0_6 = arith.constant 0 : index
      %c0_7 = arith.constant 0 : index
      %12 = vector.load %arg3[%c0, %c0_5, %c0_6, %c0_7] : memref<1x1x16x32xf32, #tpu.memory_space<vmem>>, vector<1x1x16x32xf32>
      %13 = vector.shape_cast %12 : vector<1x1x16x32xf32> to vector<16x32xf32>
      %c0_8 = arith.constant 0 : index
      %c0_9 = arith.constant 0 : index
      %c0_10 = arith.constant 0 : index
      %c0_11 = arith.constant 0 : index
      %14 = vector.load %arg4[%c0_8, %c0_9, %c0_10, %c0_11] : memref<1x1x16x32xf32, #tpu.memory_space<vmem>>, vector<1x1x16x32xf32>
      %15 = vector.shape_cast %14 : vector<1x1x16x32xf32> to vector<16x32xf32>
      %c0_12 = arith.constant 0 : index
      %c0_13 = arith.constant 0 : index
      %c0_14 = arith.constant 0 : index
      %c0_15 = arith.constant 0 : index
      %16 = vector.load %arg5[%c0_12, %c0_13, %c0_14, %c0_15] : memref<1x1x16x32xf32, #tpu.memory_space<vmem>>, vector<1x1x16x32xf32>
      %17 = vector.shape_cast %16 : vector<1x1x16x32xf32> to vector<16x32xf32>
      %c16_i32_16 = arith.constant 16 : i32
      %18 = arith.muli %arg1, %c16_i32_16 : i32
      %19 = tpu.iota {dimensions = array<i32: 0>} : vector<16x16xi32>
      %20 = vector.broadcast %18 : i32 to vector<16x16xi32>
      %21 = arith.addi %20, %19 : vector<16x16xi32>
      %c16_i32_17 = arith.constant 16 : i32
      %22 = arith.muli %arg2, %c16_i32_17 : i32
      %23 = tpu.iota {dimensions = array<i32: 1>} : vector<16x16xi32>
      %24 = vector.broadcast %22 : i32 to vector<16x16xi32>
      %25 = arith.addi %24, %23 : vector<16x16xi32>
      %26 = arith.cmpi sle, %25, %21 : vector<16x16xi32>
      %27 = vector.extract_strided_slice %13 {offsets = [0, 0], sizes = [16, 8], strides = [1, 1]} : vector<16x32xf32> to vector<16x8xf32>
      %28 = vector.extract_strided_slice %15 {offsets = [0, 0], sizes = [16, 8], strides = [1, 1]} : vector<16x32xf32> to vector<16x8xf32>
      %cst = arith.constant dense<0.000000e+00> : vector<16x16xf32>
      %29 = tpu.matmul %27, %28, %cst {dimension_numbers = #tpu.dot_dimension_numbers<[1], [1], [0], [0], [0, 0, 1, 0], [], []>} : vector<16x8xf32>, vector<16x8xf32>, vector<16x16xf32> -> vector<16x16xf32>
      %cst_18 = arith.constant -1.000000e+09 : f32
      %30 = vector.broadcast %cst_18 : f32 to vector<16x16xf32>
      %31 = arith.select %26, %29, %30 : vector<16x16xi1>, vector<16x16xf32>
      %c0_19 = arith.constant 0 : index
      %c0_20 = arith.constant 0 : index
      %c0_21 = arith.constant 0 : index
      %32 = vector.load %arg7[%c0_19, %c0_20, %c0_21] : memref<4x16x1xf32, #tpu.memory_space<vmem>>, vector<1x16x1xf32>
      %33 = vector.shape_cast %32 : vector<1x16x1xf32> to vector<16x1xf32>
      %cst_22 = arith.constant dense<0xFF800000> : vector<16xf32>
      %34 = vector.multi_reduction <maximumf>, %31, %cst_22 [1] : vector<16x16xf32> to vector<16xf32>
      %35 = vector.shape_cast %34 : vector<16xf32> to vector<16x1xf32>
      %36 = arith.maximumf %33, %35 : vector<16x1xf32>
      %37 = arith.subf %33, %36 : vector<16x1xf32>
      %38 = math.exp %37 : vector<16x1xf32>
      %39 = vector.broadcast %36 : vector<16x1xf32> to vector<16x16xf32>
      %40 = arith.subf %31, %39 : vector<16x16xf32>
      %41 = math.exp %40 : vector<16x16xf32>
      %c0_23 = arith.constant 0 : index
      %c0_24 = arith.constant 0 : index
      %c0_25 = arith.constant 0 : index
      %42 = vector.load %arg8[%c0_23, %c0_24, %c0_25] : memref<4x16x1xf32, #tpu.memory_space<vmem>>, vector<1x16x1xf32>
      %43 = vector.shape_cast %42 : vector<1x16x1xf32> to vector<16x1xf32>
      %44 = arith.mulf %38, %43 : vector<16x1xf32>
      %cst_26 = arith.constant dense<0.000000e+00> : vector<16xf32>
      %45 = vector.multi_reduction <add>, %41, %cst_26 [1] : vector<16x16xf32> to vector<16xf32>
      %46 = vector.shape_cast %45 : vector<16xf32> to vector<16x1xf32>
      %47 = arith.addf %44, %46 : vector<16x1xf32>
      %c0_27 = arith.constant 0 : index
      %c0_28 = arith.constant 0 : index
      %c0_29 = arith.constant 0 : index
      %48 = vector.load %arg8[%c0_27, %c0_28, %c0_29] : memref<4x16x1xf32, #tpu.memory_space<vmem>>, vector<1x16x1xf32>
      %49 = vector.shape_cast %48 : vector<1x16x1xf32> to vector<16x1xf32>
      %50 = vector.shape_cast %47 : vector<16x1xf32> to vector<1x16x1xf32>
      tpu.vector_store %arg8[%c0_27, %c0_28, %c0_29], %50 {strides = array<i32>} : memref<4x16x1xf32, #tpu.memory_space<vmem>>, vector<1x16x1xf32>,
      %c0_30 = arith.constant 0 : index
      %c0_31 = arith.constant 0 : index
      %c0_32 = arith.constant 0 : index
      %51 = vector.load %arg9[%c0_30, %c0_31, %c0_32] : memref<4x16x8xf32, #tpu.memory_space<vmem>>, vector<1x16x8xf32>
      %52 = vector.shape_cast %51 : vector<1x16x8xf32> to vector<16x8xf32>
      %53 = vector.broadcast %38 : vector<16x1xf32> to vector<16x8xf32>
      %54 = arith.mulf %53, %52 : vector<16x8xf32>
      %55 = vector.extract_strided_slice %17 {offsets = [0, 0], sizes = [16, 8], strides = [1, 1]} : vector<16x32xf32> to vector<16x8xf32>
      %cst_33 = arith.constant dense<0.000000e+00> : vector<16x8xf32>
      %56 = tpu.matmul %41, %55, %cst_33 {dimension_numbers = #tpu.dot_dimension_numbers<[1], [0], [0], [1], [0, 0, 1, 1], [], []>} : vector<16x16xf32>, vector<16x8xf32>, vector<16x8xf32> -> vector<16x8xf32>
      %57 = arith.addf %54, %56 : vector<16x8xf32>
      %c0_34 = arith.constant 0 : index
      %c0_35 = arith.constant 0 : index
      %c0_36 = arith.constant 0 : index
      %58 = vector.load %arg9[%c0_34, %c0_35, %c0_36] : memref<4x16x8xf32, #tpu.memory_space<vmem>>, vector<1x16x8xf32>
      %59 = vector.shape_cast %58 : vector<1x16x8xf32> to vector<16x8xf32>
      %60 = vector.shape_cast %57 : vector<16x8xf32> to vector<1x16x8xf32>
      tpu.vector_store %arg9[%c0_34, %c0_35, %c0_36], %60 {strides = array<i32>} : memref<4x16x8xf32, #tpu.memory_space<vmem>>, vector<1x16x8xf32>,
      %c0_37 = arith.constant 0 : index
      %c0_38 = arith.constant 0 : index
      %c0_39 = arith.constant 0 : index
      %61 = vector.load %arg7[%c0_37, %c0_38, %c0_39] : memref<4x16x1xf32, #tpu.memory_space<vmem>>, vector<1x16x1xf32>
      %62 = vector.shape_cast %61 : vector<1x16x1xf32> to vector<16x1xf32>
      %63 = vector.shape_cast %36 : vector<16x1xf32> to vector<1x16x1xf32>
      tpu.vector_store %arg7[%c0_37, %c0_38, %c0_39], %63 {strides = array<i32>} : memref<4x16x1xf32, #tpu.memory_space<vmem>>, vector<1x16x1xf32>,
      %64 = vector.extract_strided_slice %13 {offsets = [0, 8], sizes = [16, 8], strides = [1, 1]} : vector<16x32xf32> to vector<16x8xf32>
      %65 = vector.extract_strided_slice %15 {offsets = [0, 8], sizes = [16, 8], strides = [1, 1]} : vector<16x32xf32> to vector<16x8xf32>
      %cst_40 = arith.constant dense<0.000000e+00> : vector<16x16xf32>
      %66 = tpu.matmul %64, %65, %cst_40 {dimension_numbers = #tpu.dot_dimension_numbers<[1], [1], [0], [0], [0, 0, 1, 0], [], []>} : vector<16x8xf32>, vector<16x8xf32>, vector<16x16xf32> -> vector<16x16xf32>
      %cst_41 = arith.constant -1.000000e+09 : f32
      %67 = vector.broadcast %cst_41 : f32 to vector<16x16xf32>
      %68 = arith.select %26, %66, %67 : vector<16x16xi1>, vector<16x16xf32>
      %c1 = arith.constant 1 : index
      %c0_42 = arith.constant 0 : index
      %c0_43 = arith.constant 0 : index
      %69 = vector.load %arg7[%c1, %c0_42, %c0_43] : memref<4x16x1xf32, #tpu.memory_space<vmem>>, vector<1x16x1xf32>
      %70 = vector.shape_cast %69 : vector<1x16x1xf32> to vector<16x1xf32>
      %cst_44 = arith.constant dense<0xFF800000> : vector<16xf32>
      %71 = vector.multi_reduction <maximumf>, %68, %cst_44 [1] : vector<16x16xf32> to vector<16xf32>
      %72 = vector.shape_cast %71 : vector<16xf32> to vector<16x1xf32>
      %73 = arith.maximumf %70, %72 : vector<16x1xf32>
      %74 = arith.subf %70, %73 : vector<16x1xf32>
      %75 = math.exp %74 : vector<16x1xf32>
      %76 = vector.broadcast %73 : vector<16x1xf32> to vector<16x16xf32>
      %77 = arith.subf %68, %76 : vector<16x16xf32>
      %78 = math.exp %77 : vector<16x16xf32>
      %c1_45 = arith.constant 1 : index
      %c0_46 = arith.constant 0 : index
      %c0_47 = arith.constant 0 : index
      %79 = vector.load %arg8[%c1_45, %c0_46, %c0_47] : memref<4x16x1xf32, #tpu.memory_space<vmem>>, vector<1x16x1xf32>
      %80 = vector.shape_cast %79 : vector<1x16x1xf32> to vector<16x1xf32>
      %81 = arith.mulf %75, %80 : vector<16x1xf32>
      %cst_48 = arith.constant dense<0.000000e+00> : vector<16xf32>
      %82 = vector.multi_reduction <add>, %78, %cst_48 [1] : vector<16x16xf32> to vector<16xf32>
      %83 = vector.shape_cast %82 : vector<16xf32> to vector<16x1xf32>
      %84 = arith.addf %81, %83 : vector<16x1xf32>
      %c1_49 = arith.constant 1 : index
      %c0_50 = arith.constant 0 : index
      %c0_51 = arith.constant 0 : index
      %85 = vector.load %arg8[%c1_49, %c0_50, %c0_51] : memref<4x16x1xf32, #tpu.memory_space<vmem>>, vector<1x16x1xf32>
      %86 = vector.shape_cast %85 : vector<1x16x1xf32> to vector<16x1xf32>
      %87 = vector.shape_cast %84 : vector<16x1xf32> to vector<1x16x1xf32>
      tpu.vector_store %arg8[%c1_49, %c0_50, %c0_51], %87 {strides = array<i32>} : memref<4x16x1xf32, #tpu.memory_space<vmem>>, vector<1x16x1xf32>,
      %c1_52 = arith.constant 1 : index
      %c0_53 = arith.constant 0 : index
      %c0_54 = arith.constant 0 : index
      %88 = vector.load %arg9[%c1_52, %c0_53, %c0_54] : memref<4x16x8xf32, #tpu.memory_space<vmem>>, vector<1x16x8xf32>
      %89 = vector.shape_cast %88 : vector<1x16x8xf32> to vector<16x8xf32>
      %90 = vector.broadcast %75 : vector<16x1xf32> to vector<16x8xf32>
      %91 = arith.mulf %90, %89 : vector<16x8xf32>
      %92 = vector.extract_strided_slice %17 {offsets = [0, 8], sizes = [16, 8], strides = [1, 1]} : vector<16x32xf32> to vector<16x8xf32>
      %cst_55 = arith.constant dense<0.000000e+00> : vector<16x8xf32>
      %93 = tpu.matmul %78, %92, %cst_55 {dimension_numbers = #tpu.dot_dimension_numbers<[1], [0], [0], [1], [0, 0, 1, 1], [], []>} : vector<16x16xf32>, vector<16x8xf32>, vector<16x8xf32> -> vector<16x8xf32>
      %94 = arith.addf %91, %93 : vector<16x8xf32>
      %c1_56 = arith.constant 1 : index
      %c0_57 = arith.constant 0 : index
      %c0_58 = arith.constant 0 : index
      %95 = vector.load %arg9[%c1_56, %c0_57, %c0_58] : memref<4x16x8xf32, #tpu.memory_space<vmem>>, vector<1x16x8xf32>
      %96 = vector.shape_cast %95 : vector<1x16x8xf32> to vector<16x8xf32>
      %97 = vector.shape_cast %94 : vector<16x8xf32> to vector<1x16x8xf32>
      tpu.vector_store %arg9[%c1_56, %c0_57, %c0_58], %97 {strides = array<i32>} : memref<4x16x8xf32, #tpu.memory_space<vmem>>, vector<1x16x8xf32>,
      %c1_59 = arith.constant 1 : index
      %c0_60 = arith.constant 0 : index
      %c0_61 = arith.constant 0 : index
      %98 = vector.load %arg7[%c1_59, %c0_60, %c0_61] : memref<4x16x1xf32, #tpu.memory_space<vmem>>, vector<1x16x1xf32>
      %99 = vector.shape_cast %98 : vector<1x16x1xf32> to vector<16x1xf32>
      %100 = vector.shape_cast %73 : vector<16x1xf32> to vector<1x16x1xf32>
      tpu.vector_store %arg7[%c1_59, %c0_60, %c0_61], %100 {strides = array<i32>} : memref<4x16x1xf32, #tpu.memory_space<vmem>>, vector<1x16x1xf32>,
      %101 = vector.extract_strided_slice %13 {offsets = [0, 16], sizes = [16, 8], strides = [1, 1]} : vector<16x32xf32> to vector<16x8xf32>
      %102 = vector.extract_strided_slice %15 {offsets = [0, 16], sizes = [16, 8], strides = [1, 1]} : vector<16x32xf32> to vector<16x8xf32>
      %cst_62 = arith.constant dense<0.000000e+00> : vector<16x16xf32>
      %103 = tpu.matmul %101, %102, %cst_62 {dimension_numbers = #tpu.dot_dimension_numbers<[1], [1], [0], [0], [0, 0, 1, 0], [], []>} : vector<16x8xf32>, vector<16x8xf32>, vector<16x16xf32> -> vector<16x16xf32>
      %cst_63 = arith.constant -1.000000e+09 : f32
      %104 = vector.broadcast %cst_63 : f32 to vector<16x16xf32>
      %105 = arith.select %26, %103, %104 : vector<16x16xi1>, vector<16x16xf32>
      %c2 = arith.constant 2 : index
      %c0_64 = arith.constant 0 : index
      %c0_65 = arith.constant 0 : index
      %106 = vector.load %arg7[%c2, %c0_64, %c0_65] : memref<4x16x1xf32, #tpu.memory_space<vmem>>, vector<1x16x1xf32>
      %107 = vector.shape_cast %106 : vector<1x16x1xf32> to vector<16x1xf32>
      %cst_66 = arith.constant dense<0xFF800000> : vector<16xf32>
      %108 = vector.multi_reduction <maximumf>, %105, %cst_66 [1] : vector<16x16xf32> to vector<16xf32>
      %109 = vector.shape_cast %108 : vector<16xf32> to vector<16x1xf32>
      %110 = arith.maximumf %107, %109 : vector<16x1xf32>
      %111 = arith.subf %107, %110 : vector<16x1xf32>
      %112 = math.exp %111 : vector<16x1xf32>
      %113 = vector.broadcast %110 : vector<16x1xf32> to vector<16x16xf32>
      %114 = arith.subf %105, %113 : vector<16x16xf32>
      %115 = math.exp %114 : vector<16x16xf32>
      %c2_67 = arith.constant 2 : index
      %c0_68 = arith.constant 0 : index
      %c0_69 = arith.constant 0 : index
      %116 = vector.load %arg8[%c2_67, %c0_68, %c0_69] : memref<4x16x1xf32, #tpu.memory_space<vmem>>, vector<1x16x1xf32>
      %117 = vector.shape_cast %116 : vector<1x16x1xf32> to vector<16x1xf32>
      %118 = arith.mulf %112, %117 : vector<16x1xf32>
      %cst_70 = arith.constant dense<0.000000e+00> : vector<16xf32>
      %119 = vector.multi_reduction <add>, %115, %cst_70 [1] : vector<16x16xf32> to vector<16xf32>
      %120 = vector.shape_cast %119 : vector<16xf32> to vector<16x1xf32>
      %121 = arith.addf %118, %120 : vector<16x1xf32>
      %c2_71 = arith.constant 2 : index
      %c0_72 = arith.constant 0 : index
      %c0_73 = arith.constant 0 : index
      %122 = vector.load %arg8[%c2_71, %c0_72, %c0_73] : memref<4x16x1xf32, #tpu.memory_space<vmem>>, vector<1x16x1xf32>
      %123 = vector.shape_cast %122 : vector<1x16x1xf32> to vector<16x1xf32>
      %124 = vector.shape_cast %121 : vector<16x1xf32> to vector<1x16x1xf32>
      tpu.vector_store %arg8[%c2_71, %c0_72, %c0_73], %124 {strides = array<i32>} : memref<4x16x1xf32, #tpu.memory_space<vmem>>, vector<1x16x1xf32>,
      %c2_74 = arith.constant 2 : index
      %c0_75 = arith.constant 0 : index
      %c0_76 = arith.constant 0 : index
      %125 = vector.load %arg9[%c2_74, %c0_75, %c0_76] : memref<4x16x8xf32, #tpu.memory_space<vmem>>, vector<1x16x8xf32>
      %126 = vector.shape_cast %125 : vector<1x16x8xf32> to vector<16x8xf32>
      %127 = vector.broadcast %112 : vector<16x1xf32> to vector<16x8xf32>
      %128 = arith.mulf %127, %126 : vector<16x8xf32>
      %129 = vector.extract_strided_slice %17 {offsets = [0, 16], sizes = [16, 8], strides = [1, 1]} : vector<16x32xf32> to vector<16x8xf32>
      %cst_77 = arith.constant dense<0.000000e+00> : vector<16x8xf32>
      %130 = tpu.matmul %115, %129, %cst_77 {dimension_numbers = #tpu.dot_dimension_numbers<[1], [0], [0], [1], [0, 0, 1, 1], [], []>} : vector<16x16xf32>, vector<16x8xf32>, vector<16x8xf32> -> vector<16x8xf32>
      %131 = arith.addf %128, %130 : vector<16x8xf32>
      %c2_78 = arith.constant 2 : index
      %c0_79 = arith.constant 0 : index
      %c0_80 = arith.constant 0 : index
      %132 = vector.load %arg9[%c2_78, %c0_79, %c0_80] : memref<4x16x8xf32, #tpu.memory_space<vmem>>, vector<1x16x8xf32>
      %133 = vector.shape_cast %132 : vector<1x16x8xf32> to vector<16x8xf32>
      %134 = vector.shape_cast %131 : vector<16x8xf32> to vector<1x16x8xf32>
      tpu.vector_store %arg9[%c2_78, %c0_79, %c0_80], %134 {strides = array<i32>} : memref<4x16x8xf32, #tpu.memory_space<vmem>>, vector<1x16x8xf32>,
      %c2_81 = arith.constant 2 : index
      %c0_82 = arith.constant 0 : index
      %c0_83 = arith.constant 0 : index
      %135 = vector.load %arg7[%c2_81, %c0_82, %c0_83] : memref<4x16x1xf32, #tpu.memory_space<vmem>>, vector<1x16x1xf32>
      %136 = vector.shape_cast %135 : vector<1x16x1xf32> to vector<16x1xf32>
      %137 = vector.shape_cast %110 : vector<16x1xf32> to vector<1x16x1xf32>
      tpu.vector_store %arg7[%c2_81, %c0_82, %c0_83], %137 {strides = array<i32>} : memref<4x16x1xf32, #tpu.memory_space<vmem>>, vector<1x16x1xf32>,
      %138 = vector.extract_strided_slice %13 {offsets = [0, 24], sizes = [16, 8], strides = [1, 1]} : vector<16x32xf32> to vector<16x8xf32>
      %139 = vector.extract_strided_slice %15 {offsets = [0, 24], sizes = [16, 8], strides = [1, 1]} : vector<16x32xf32> to vector<16x8xf32>
      %cst_84 = arith.constant dense<0.000000e+00> : vector<16x16xf32>
      %140 = tpu.matmul %138, %139, %cst_84 {dimension_numbers = #tpu.dot_dimension_numbers<[1], [1], [0], [0], [0, 0, 1, 0], [], []>} : vector<16x8xf32>, vector<16x8xf32>, vector<16x16xf32> -> vector<16x16xf32>
      %cst_85 = arith.constant -1.000000e+09 : f32
      %141 = vector.broadcast %cst_85 : f32 to vector<16x16xf32>
      %142 = arith.select %26, %140, %141 : vector<16x16xi1>, vector<16x16xf32>
      %c3 = arith.constant 3 : index
      %c0_86 = arith.constant 0 : index
      %c0_87 = arith.constant 0 : index
      %143 = vector.load %arg7[%c3, %c0_86, %c0_87] : memref<4x16x1xf32, #tpu.memory_space<vmem>>, vector<1x16x1xf32>
      %144 = vector.shape_cast %143 : vector<1x16x1xf32> to vector<16x1xf32>
      %cst_88 = arith.constant dense<0xFF800000> : vector<16xf32>
      %145 = vector.multi_reduction <maximumf>, %142, %cst_88 [1] : vector<16x16xf32> to vector<16xf32>
      %146 = vector.shape_cast %145 : vector<16xf32> to vector<16x1xf32>
      %147 = arith.maximumf %144, %146 : vector<16x1xf32>
      %148 = arith.subf %144, %147 : vector<16x1xf32>
      %149 = math.exp %148 : vector<16x1xf32>
      %150 = vector.broadcast %147 : vector<16x1xf32> to vector<16x16xf32>
      %151 = arith.subf %142, %150 : vector<16x16xf32>
      %152 = math.exp %151 : vector<16x16xf32>
      %c3_89 = arith.constant 3 : index
      %c0_90 = arith.constant 0 : index
      %c0_91 = arith.constant 0 : index
      %153 = vector.load %arg8[%c3_89, %c0_90, %c0_91] : memref<4x16x1xf32, #tpu.memory_space<vmem>>, vector<1x16x1xf32>
      %154 = vector.shape_cast %153 : vector<1x16x1xf32> to vector<16x1xf32>
      %155 = arith.mulf %149, %154 : vector<16x1xf32>
      %cst_92 = arith.constant dense<0.000000e+00> : vector<16xf32>
      %156 = vector.multi_reduction <add>, %152, %cst_92 [1] : vector<16x16xf32> to vector<16xf32>
      %157 = vector.shape_cast %156 : vector<16xf32> to vector<16x1xf32>
      %158 = arith.addf %155, %157 : vector<16x1xf32>
      %c3_93 = arith.constant 3 : index
      %c0_94 = arith.constant 0 : index
      %c0_95 = arith.constant 0 : index
      %159 = vector.load %arg8[%c3_93, %c0_94, %c0_95] : memref<4x16x1xf32, #tpu.memory_space<vmem>>, vector<1x16x1xf32>
      %160 = vector.shape_cast %159 : vector<1x16x1xf32> to vector<16x1xf32>
      %161 = vector.shape_cast %158 : vector<16x1xf32> to vector<1x16x1xf32>
      tpu.vector_store %arg8[%c3_93, %c0_94, %c0_95], %161 {strides = array<i32>} : memref<4x16x1xf32, #tpu.memory_space<vmem>>, vector<1x16x1xf32>,
      %c3_96 = arith.constant 3 : index
      %c0_97 = arith.constant 0 : index
      %c0_98 = arith.constant 0 : index
      %162 = vector.load %arg9[%c3_96, %c0_97, %c0_98] : memref<4x16x8xf32, #tpu.memory_space<vmem>>, vector<1x16x8xf32>
      %163 = vector.shape_cast %162 : vector<1x16x8xf32> to vector<16x8xf32>
      %164 = vector.broadcast %149 : vector<16x1xf32> to vector<16x8xf32>
      %165 = arith.mulf %164, %163 : vector<16x8xf32>
      %166 = vector.extract_strided_slice %17 {offsets = [0, 24], sizes = [16, 8], strides = [1, 1]} : vector<16x32xf32> to vector<16x8xf32>
      %cst_99 = arith.constant dense<0.000000e+00> : vector<16x8xf32>
      %167 = tpu.matmul %152, %166, %cst_99 {dimension_numbers = #tpu.dot_dimension_numbers<[1], [0], [0], [1], [0, 0, 1, 1], [], []>} : vector<16x16xf32>, vector<16x8xf32>, vector<16x8xf32> -> vector<16x8xf32>
      %168 = arith.addf %165, %167 : vector<16x8xf32>
      %c3_100 = arith.constant 3 : index
      %c0_101 = arith.constant 0 : index
      %c0_102 = arith.constant 0 : index
      %169 = vector.load %arg9[%c3_100, %c0_101, %c0_102] : memref<4x16x8xf32, #tpu.memory_space<vmem>>, vector<1x16x8xf32>
      %170 = vector.shape_cast %169 : vector<1x16x8xf32> to vector<16x8xf32>
      %171 = vector.shape_cast %168 : vector<16x8xf32> to vector<1x16x8xf32>
      tpu.vector_store %arg9[%c3_100, %c0_101, %c0_102], %171 {strides = array<i32>} : memref<4x16x8xf32, #tpu.memory_space<vmem>>, vector<1x16x8xf32>,
      %c3_103 = arith.constant 3 : index
      %c0_104 = arith.constant 0 : index
      %c0_105 = arith.constant 0 : index
      %172 = vector.load %arg7[%c3_103, %c0_104, %c0_105] : memref<4x16x1xf32, #tpu.memory_space<vmem>>, vector<1x16x1xf32>
      %173 = vector.shape_cast %172 : vector<1x16x1xf32> to vector<16x1xf32>
      %174 = vector.shape_cast %147 : vector<16x1xf32> to vector<1x16x1xf32>
      tpu.vector_store %arg7[%c3_103, %c0_104, %c0_105], %174 {strides = array<i32>} : memref<4x16x1xf32, #tpu.memory_space<vmem>>, vector<1x16x1xf32>,
    } else {
    }
    %c0_i32_3 = arith.constant 0 : i32
    %9 = arith.cmpi eq, %arg2, %c0_i32_3 : i32
    %10 = arith.extui %9 : i1 to i32
    %c0_i32_4 = arith.constant 0 : i32
    %11 = arith.cmpi ne, %10, %c0_i32_4 : i32
    scf.if %11 {
      %c0 = arith.constant 0 : index
      %c0_5 = arith.constant 0 : index
      %c0_6 = arith.constant 0 : index
      %12 = vector.load %arg8[%c0, %c0_5, %c0_6] : memref<4x16x1xf32, #tpu.memory_space<vmem>>, vector<1x16x1xf32>
      %13 = vector.shape_cast %12 : vector<1x16x1xf32> to vector<16x1xf32>
      %14 = tpu.reciprocal %13 : vector<16x1xf32> -> vector<16x1xf32>
      %c0_7 = arith.constant 0 : index
      %c0_8 = arith.constant 0 : index
      %c0_9 = arith.constant 0 : index
      %15 = vector.load %arg9[%c0_7, %c0_8, %c0_9] : memref<4x16x8xf32, #tpu.memory_space<vmem>>, vector<1x16x8xf32>
      %16 = vector.shape_cast %15 : vector<1x16x8xf32> to vector<16x8xf32>
      %17 = vector.broadcast %14 : vector<16x1xf32> to vector<16x8xf32>
      %18 = arith.mulf %16, %17 : vector<16x8xf32>
      %c1 = arith.constant 1 : index
      %c0_10 = arith.constant 0 : index
      %c0_11 = arith.constant 0 : index
      %19 = vector.load %arg8[%c1, %c0_10, %c0_11] : memref<4x16x1xf32, #tpu.memory_space<vmem>>, vector<1x16x1xf32>
      %20 = vector.shape_cast %19 : vector<1x16x1xf32> to vector<16x1xf32>
      %21 = tpu.reciprocal %20 : vector<16x1xf32> -> vector<16x1xf32>
      %c1_12 = arith.constant 1 : index
      %c0_13 = arith.constant 0 : index
      %c0_14 = arith.constant 0 : index
      %22 = vector.load %arg9[%c1_12, %c0_13, %c0_14] : memref<4x16x8xf32, #tpu.memory_space<vmem>>, vector<1x16x8xf32>
      %23 = vector.shape_cast %22 : vector<1x16x8xf32> to vector<16x8xf32>
      %24 = vector.broadcast %21 : vector<16x1xf32> to vector<16x8xf32>
      %25 = arith.mulf %23, %24 : vector<16x8xf32>
      %c2 = arith.constant 2 : index
      %c0_15 = arith.constant 0 : index
      %c0_16 = arith.constant 0 : index
      %26 = vector.load %arg8[%c2, %c0_15, %c0_16] : memref<4x16x1xf32, #tpu.memory_space<vmem>>, vector<1x16x1xf32>
      %27 = vector.shape_cast %26 : vector<1x16x1xf32> to vector<16x1xf32>
      %28 = tpu.reciprocal %27 : vector<16x1xf32> -> vector<16x1xf32>
      %c2_17 = arith.constant 2 : index
      %c0_18 = arith.constant 0 : index
      %c0_19 = arith.constant 0 : index
      %29 = vector.load %arg9[%c2_17, %c0_18, %c0_19] : memref<4x16x8xf32, #tpu.memory_space<vmem>>, vector<1x16x8xf32>
      %30 = vector.shape_cast %29 : vector<1x16x8xf32> to vector<16x8xf32>
      %31 = vector.broadcast %28 : vector<16x1xf32> to vector<16x8xf32>
      %32 = arith.mulf %30, %31 : vector<16x8xf32>
      %c3 = arith.constant 3 : index
      %c0_20 = arith.constant 0 : index
      %c0_21 = arith.constant 0 : index
      %33 = vector.load %arg8[%c3, %c0_20, %c0_21] : memref<4x16x1xf32, #tpu.memory_space<vmem>>, vector<1x16x1xf32>
      %34 = vector.shape_cast %33 : vector<1x16x1xf32> to vector<16x1xf32>
      %35 = tpu.reciprocal %34 : vector<16x1xf32> -> vector<16x1xf32>
      %c3_22 = arith.constant 3 : index
      %c0_23 = arith.constant 0 : index
      %c0_24 = arith.constant 0 : index
      %36 = vector.load %arg9[%c3_22, %c0_23, %c0_24] : memref<4x16x8xf32, #tpu.memory_space<vmem>>, vector<1x16x8xf32>
      %37 = vector.shape_cast %36 : vector<1x16x8xf32> to vector<16x8xf32>
      %38 = vector.broadcast %35 : vector<16x1xf32> to vector<16x8xf32>
      %39 = arith.mulf %37, %38 : vector<16x8xf32>
      %40 = tpu.concatenate %18, %25, %32, %39 in 1 : vector<16x8xf32>, vector<16x8xf32>, vector<16x8xf32>, vector<16x8xf32> -> vector<16x32xf32>
      %c0_25 = arith.constant 0 : index
      %c0_26 = arith.constant 0 : index
      %c0_27 = arith.constant 0 : index
      %41 = vector.load %arg6[%c0_25, %c0_26, %c0_27] : memref<1x16x32xf32, #tpu.memory_space<vmem>>, vector<1x16x32xf32>
      %42 = vector.shape_cast %41 : vector<1x16x32xf32> to vector<16x32xf32>
      %43 = vector.shape_cast %40 : vector<16x32xf32> to vector<1x16x32xf32>
      tpu.vector_store %arg6[%c0_25, %c0_26, %c0_27], %43 {strides = array<i32>} : memref<1x16x32xf32, #tpu.memory_space<vmem>>, vector<1x16x32xf32>,
    } else {
    }
    return
  }
  func.func @transform_0(%arg0: i32, %arg1: i32, %arg2: i32) -> (i32, i32, i32, i32) {
    %c0_i32 = arith.constant 0 : i32
    %c0_i32_0 = arith.constant 0 : i32
    %c0_i32_1 = arith.constant 0 : i32
    return %c0_i32, %arg0, %arg1, %c0_i32_0 : i32, i32, i32, i32
  }
  func.func @transform_1(%arg0: i32, %arg1: i32, %arg2: i32) -> (i32, i32, i32, i32) {
    %c1_i32 = arith.constant 1 : i32
    %c0_i32 = arith.constant 0 : i32
    %c0_i32_0 = arith.constant 0 : i32
    return %c1_i32, %arg0, %arg2, %c0_i32 : i32, i32, i32, i32
  }
  func.func @transform_2(%arg0: i32, %arg1: i32, %arg2: i32) -> (i32, i32, i32, i32) {
    %c2_i32 = arith.constant 2 : i32
    %c0_i32 = arith.constant 0 : i32
    %c0_i32_0 = arith.constant 0 : i32
    return %c2_i32, %arg0, %arg2, %c0_i32 : i32, i32, i32, i32
  }
  func.func @transform_3(%arg0: i32, %arg1: i32, %arg2: i32) -> (i32, i32, i32) {
    %c0_i32 = arith.constant 0 : i32
    %c0_i32_0 = arith.constant 0 : i32
    return %arg0, %arg1, %c0_i32 : i32, i32, i32
  }
}

module attributes {stable_mosaic.version = 11 : i64} {
  func.func @_out_residual_kernel(%arg0: i32, %arg1: i32, %arg2: memref<1x16x32xf32, #tpu.memory_space<vmem>>, %arg3: memref<1x16x32xf32, #tpu.memory_space<vmem>>, %arg4: memref<32x32xf32, #tpu.memory_space<vmem>>, %arg5: memref<1x32xf32, #tpu.memory_space<vmem>>, %arg6: memref<1x16x32xf32, #tpu.memory_space<vmem>>) attributes {dimension_semantics = [#tpu.dimension_semantics<parallel>, #tpu.dimension_semantics<parallel>], iteration_bounds = array<i64: 2, 1>, scalar_prefetch = 0 : i64, scratch_operands = 0 : i64, tpu.core_type = #tpu.core_type<tc>, window_params = [{transform_indices = @transform_0, window_bounds = array<i64: 1, 16, 32>}, {transform_indices = @transform_1, window_bounds = array<i64: 1, 16, 32>}, {pipeline_mode = #tpu.pipeline_mode<synchronous>, transform_indices = @transform_2, window_bounds = array<i64: 32, 32>}, {pipeline_mode = #tpu.pipeline_mode<synchronous>, transform_indices = @transform_3, window_bounds = array<i64: 1, 32>}, {transform_indices = @transform_4, window_bounds = array<i64: 1, 16, 32>}]} {
    %c0 = arith.constant 0 : index
    %c0_0 = arith.constant 0 : index
    %c0_1 = arith.constant 0 : index
    %0 = vector.load %arg2[%c0, %c0_0, %c0_1] : memref<1x16x32xf32, #tpu.memory_space<vmem>>, vector<1x16x32xf32>
    %1 = vector.shape_cast %0 : vector<1x16x32xf32> to vector<16x32xf32>
    %c0_2 = arith.constant 0 : index
    %c0_3 = arith.constant 0 : index
    %2 = vector.load %arg4[%c0_2, %c0_3] : memref<32x32xf32, #tpu.memory_space<vmem>>, vector<32x32xf32>
    %cst = arith.constant dense<0.000000e+00> : vector<16x32xf32>
    %3 = tpu.matmul %1, %2, %cst {dimension_numbers = #tpu.dot_dimension_numbers<[1], [0], [0], [1], [0, 0, 1, 1], [], []>} : vector<16x32xf32>, vector<32x32xf32>, vector<16x32xf32> -> vector<16x32xf32>
    %c0_4 = arith.constant 0 : index
    %c0_5 = arith.constant 0 : index
    %4 = vector.load %arg5[%c0_4, %c0_5] : memref<1x32xf32, #tpu.memory_space<vmem>>, vector<1x32xf32>
    %5 = vector.broadcast %4 : vector<1x32xf32> to vector<16x32xf32>
    %6 = arith.addf %3, %5 : vector<16x32xf32>
    %c0_6 = arith.constant 0 : index
    %c0_7 = arith.constant 0 : index
    %c0_8 = arith.constant 0 : index
    %7 = vector.load %arg3[%c0_6, %c0_7, %c0_8] : memref<1x16x32xf32, #tpu.memory_space<vmem>>, vector<1x16x32xf32>
    %8 = vector.shape_cast %7 : vector<1x16x32xf32> to vector<16x32xf32>
    %9 = arith.addf %8, %6 : vector<16x32xf32>
    %c0_9 = arith.constant 0 : index
    %c0_10 = arith.constant 0 : index
    %c0_11 = arith.constant 0 : index
    %10 = vector.load %arg6[%c0_9, %c0_10, %c0_11] : memref<1x16x32xf32, #tpu.memory_space<vmem>>, vector<1x16x32xf32>
    %11 = vector.shape_cast %10 : vector<1x16x32xf32> to vector<16x32xf32>
    %12 = vector.shape_cast %9 : vector<16x32xf32> to vector<1x16x32xf32>
    tpu.vector_store %arg6[%c0_9, %c0_10, %c0_11], %12 {strides = array<i32>} : memref<1x16x32xf32, #tpu.memory_space<vmem>>, vector<1x16x32xf32>,
    return
  }
  func.func @transform_0(%arg0: i32, %arg1: i32) -> (i32, i32, i32) {
    %c0_i32 = arith.constant 0 : i32
    %c0_i32_0 = arith.constant 0 : i32
    return %arg0, %arg1, %c0_i32 : i32, i32, i32
  }
  func.func @transform_1(%arg0: i32, %arg1: i32) -> (i32, i32, i32) {
    %c0_i32 = arith.constant 0 : i32
    %c0_i32_0 = arith.constant 0 : i32
    return %arg0, %arg1, %c0_i32 : i32, i32, i32
  }
  func.func @transform_2(%arg0: i32, %arg1: i32) -> (i32, i32) {
    %c0_i32 = arith.constant 0 : i32
    %c0_i32_0 = arith.constant 0 : i32
    %c0_i32_1 = arith.constant 0 : i32
    return %c0_i32, %c0_i32_0 : i32, i32
  }
  func.func @transform_3(%arg0: i32, %arg1: i32) -> (i32, i32) {
    %c0_i32 = arith.constant 0 : i32
    %c0_i32_0 = arith.constant 0 : i32
    %c0_i32_1 = arith.constant 0 : i32
    return %c0_i32, %c0_i32_0 : i32, i32
  }
  func.func @transform_4(%arg0: i32, %arg1: i32) -> (i32, i32, i32) {
    %c0_i32 = arith.constant 0 : i32
    %c0_i32_0 = arith.constant 0 : i32
    return %arg0, %arg1, %c0_i32 : i32, i32, i32
  }
}

module attributes {stable_mosaic.version = 11 : i64} {
  func.func @_ln_qkv_kernel(%arg0: i32, %arg1: i32, %arg2: memref<1x16x32xf32, #tpu.memory_space<vmem>>, %arg3: memref<1x32xf32, #tpu.memory_space<vmem>>, %arg4: memref<1x32xf32, #tpu.memory_space<vmem>>, %arg5: memref<32x96xf32, #tpu.memory_space<vmem>>, %arg6: memref<1x96xf32, #tpu.memory_space<vmem>>, %arg7: memref<3x1x16x32xf32, #tpu.memory_space<vmem>>) attributes {dimension_semantics = [#tpu.dimension_semantics<parallel>, #tpu.dimension_semantics<parallel>], iteration_bounds = array<i64: 2, 1>, scalar_prefetch = 0 : i64, scratch_operands = 0 : i64, tpu.core_type = #tpu.core_type<tc>, window_params = [{transform_indices = @transform_0, window_bounds = array<i64: 1, 16, 32>}, {pipeline_mode = #tpu.pipeline_mode<synchronous>, transform_indices = @transform_1, window_bounds = array<i64: 1, 32>}, {pipeline_mode = #tpu.pipeline_mode<synchronous>, transform_indices = @transform_2, window_bounds = array<i64: 1, 32>}, {pipeline_mode = #tpu.pipeline_mode<synchronous>, transform_indices = @transform_3, window_bounds = array<i64: 32, 96>}, {pipeline_mode = #tpu.pipeline_mode<synchronous>, transform_indices = @transform_4, window_bounds = array<i64: 1, 96>}, {transform_indices = @transform_5, window_bounds = array<i64: 3, 1, 16, 32>}]} {
    %c0 = arith.constant 0 : index
    %c0_0 = arith.constant 0 : index
    %c0_1 = arith.constant 0 : index
    %0 = vector.load %arg2[%c0, %c0_0, %c0_1] : memref<1x16x32xf32, #tpu.memory_space<vmem>>, vector<1x16x32xf32>
    %1 = vector.shape_cast %0 : vector<1x16x32xf32> to vector<16x32xf32>
    %cst = arith.constant dense<0.000000e+00> : vector<16xf32>
    %2 = vector.multi_reduction <add>, %1, %cst [1] : vector<16x32xf32> to vector<16xf32>
    %3 = vector.shape_cast %2 : vector<16xf32> to vector<16x1xf32>
    %cst_2 = arith.constant 3.200000e+01 : f32
    %4 = vector.broadcast %cst_2 : f32 to vector<16x1xf32>
    %5 = arith.divf %3, %4 : vector<16x1xf32>
    %6 = vector.broadcast %5 : vector<16x1xf32> to vector<16x32xf32>
    %7 = arith.subf %1, %6 : vector<16x32xf32>
    %8 = arith.mulf %7, %7 : vector<16x32xf32>
    %cst_3 = arith.constant dense<0.000000e+00> : vector<16xf32>
    %9 = vector.multi_reduction <add>, %8, %cst_3 [1] : vector<16x32xf32> to vector<16xf32>
    %10 = vector.shape_cast %9 : vector<16xf32> to vector<16x1xf32>
    %cst_4 = arith.constant 0.0322580636 : f32
    %11 = vector.broadcast %cst_4 : f32 to vector<16x1xf32>
    %12 = arith.mulf %10, %11 : vector<16x1xf32>
    %13 = math.sqrt %12 : vector<16x1xf32>
    %cst_5 = arith.constant 9.99999997E-7 : f32
    %14 = vector.broadcast %cst_5 : f32 to vector<16x1xf32>
    %15 = arith.addf %13, %14 : vector<16x1xf32>
    %cst_6 = arith.constant 1.000000e+00 : f32
    %16 = vector.broadcast %cst_6 : f32 to vector<16x1xf32>
    %17 = arith.divf %16, %15 : vector<16x1xf32>
    %c0_7 = arith.constant 0 : index
    %c0_8 = arith.constant 0 : index
    %18 = vector.load %arg3[%c0_7, %c0_8] : memref<1x32xf32, #tpu.memory_space<vmem>>, vector<1x32xf32>
    %19 = vector.broadcast %17 : vector<16x1xf32> to vector<16x32xf32>
    %20 = arith.mulf %7, %19 : vector<16x32xf32>
    %21 = vector.broadcast %18 : vector<1x32xf32> to vector<16x32xf32>
    %22 = arith.mulf %21, %20 : vector<16x32xf32>
    %c0_9 = arith.constant 0 : index
    %c0_10 = arith.constant 0 : index
    %23 = vector.load %arg4[%c0_9, %c0_10] : memref<1x32xf32, #tpu.memory_space<vmem>>, vector<1x32xf32>
    %24 = vector.broadcast %23 : vector<1x32xf32> to vector<16x32xf32>
    %25 = arith.addf %22, %24 : vector<16x32xf32>
    %c0_11 = arith.constant 0 : index
    %c0_12 = arith.constant 0 : index
    %26 = vector.load %arg5[%c0_11, %c0_12] : memref<32x96xf32, #tpu.memory_space<vmem>>, vector<32x96xf32>
    %cst_13 = arith.constant dense<0.000000e+00> : vector<16x96xf32>
    %27 = tpu.matmul %25, %26, %cst_13 {dimension_numbers = #tpu.dot_dimension_numbers<[1], [0], [0], [1], [0, 0, 1, 1], [], []>} : vector<16x32xf32>, vector<32x96xf32>, vector<16x96xf32> -> vector<16x96xf32>
    %c0_14 = arith.constant 0 : index
    %c0_15 = arith.constant 0 : index
    %28 = vector.load %arg6[%c0_14, %c0_15] : memref<1x96xf32, #tpu.memory_space<vmem>>, vector<1x96xf32>
    %29 = vector.broadcast %28 : vector<1x96xf32> to vector<16x96xf32>
    %30 = arith.addf %27, %29 : vector<16x96xf32>
    %31 = vector.extract_strided_slice %30 {offsets = [0, 0], sizes = [16, 32], strides = [1, 1]} : vector<16x96xf32> to vector<16x32xf32>
    %c0_16 = arith.constant 0 : index
    %c0_17 = arith.constant 0 : index
    %c0_18 = arith.constant 0 : index
    %c0_19 = arith.constant 0 : index
    %32 = vector.load %arg7[%c0_16, %c0_17, %c0_18, %c0_19] : memref<3x1x16x32xf32, #tpu.memory_space<vmem>>, vector<1x1x16x32xf32>
    %33 = vector.shape_cast %32 : vector<1x1x16x32xf32> to vector<16x32xf32>
    %34 = vector.shape_cast %31 : vector<16x32xf32> to vector<1x1x16x32xf32>
    tpu.vector_store %arg7[%c0_16, %c0_17, %c0_18, %c0_19], %34 {strides = array<i32>} : memref<3x1x16x32xf32, #tpu.memory_space<vmem>>, vector<1x1x16x32xf32>,
    %35 = vector.extract_strided_slice %30 {offsets = [0, 32], sizes = [16, 32], strides = [1, 1]} : vector<16x96xf32> to vector<16x32xf32>
    %c1 = arith.constant 1 : index
    %c0_20 = arith.constant 0 : index
    %c0_21 = arith.constant 0 : index
    %c0_22 = arith.constant 0 : index
    %36 = vector.load %arg7[%c1, %c0_20, %c0_21, %c0_22] : memref<3x1x16x32xf32, #tpu.memory_space<vmem>>, vector<1x1x16x32xf32>
    %37 = vector.shape_cast %36 : vector<1x1x16x32xf32> to vector<16x32xf32>
    %38 = vector.shape_cast %35 : vector<16x32xf32> to vector<1x1x16x32xf32>
    tpu.vector_store %arg7[%c1, %c0_20, %c0_21, %c0_22], %38 {strides = array<i32>} : memref<3x1x16x32xf32, #tpu.memory_space<vmem>>, vector<1x1x16x32xf32>,
    %39 = vector.extract_strided_slice %30 {offsets = [0, 64], sizes = [16, 32], strides = [1, 1]} : vector<16x96xf32> to vector<16x32xf32>
    %c2 = arith.constant 2 : index
    %c0_23 = arith.constant 0 : index
    %c0_24 = arith.constant 0 : index
    %c0_25 = arith.constant 0 : index
    %40 = vector.load %arg7[%c2, %c0_23, %c0_24, %c0_25] : memref<3x1x16x32xf32, #tpu.memory_space<vmem>>, vector<1x1x16x32xf32>
    %41 = vector.shape_cast %40 : vector<1x1x16x32xf32> to vector<16x32xf32>
    %42 = vector.shape_cast %39 : vector<16x32xf32> to vector<1x1x16x32xf32>
    tpu.vector_store %arg7[%c2, %c0_23, %c0_24, %c0_25], %42 {strides = array<i32>} : memref<3x1x16x32xf32, #tpu.memory_space<vmem>>, vector<1x1x16x32xf32>,
    return
  }
  func.func @transform_0(%arg0: i32, %arg1: i32) -> (i32, i32, i32) {
    %c0_i32 = arith.constant 0 : i32
    %c0_i32_0 = arith.constant 0 : i32
    return %arg0, %arg1, %c0_i32 : i32, i32, i32
  }
  func.func @transform_1(%arg0: i32, %arg1: i32) -> (i32, i32) {
    %c0_i32 = arith.constant 0 : i32
    %c0_i32_0 = arith.constant 0 : i32
    %c0_i32_1 = arith.constant 0 : i32
    return %c0_i32, %c0_i32_0 : i32, i32
  }
  func.func @transform_2(%arg0: i32, %arg1: i32) -> (i32, i32) {
    %c0_i32 = arith.constant 0 : i32
    %c0_i32_0 = arith.constant 0 : i32
    %c0_i32_1 = arith.constant 0 : i32
    return %c0_i32, %c0_i32_0 : i32, i32
  }
  func.func @transform_3(%arg0: i32, %arg1: i32) -> (i32, i32) {
    %c0_i32 = arith.constant 0 : i32
    %c0_i32_0 = arith.constant 0 : i32
    %c0_i32_1 = arith.constant 0 : i32
    return %c0_i32, %c0_i32_0 : i32, i32
  }
  func.func @transform_4(%arg0: i32, %arg1: i32) -> (i32, i32) {
    %c0_i32 = arith.constant 0 : i32
    %c0_i32_0 = arith.constant 0 : i32
    %c0_i32_1 = arith.constant 0 : i32
    return %c0_i32, %c0_i32_0 : i32, i32
  }
  func.func @transform_5(%arg0: i32, %arg1: i32) -> (i32, i32, i32, i32) {
    %c0_i32 = arith.constant 0 : i32
    %c0_i32_0 = arith.constant 0 : i32
    %c0_i32_1 = arith.constant 0 : i32
    return %c0_i32, %arg0, %arg1, %c0_i32_0 : i32, i32, i32, i32
  }
}

</mosaic_0001>

<llo_original>
// kernel: sublayer_block.3
$region0: #{sublayer_block.3}
  #allocation0 [shape = 'u32[]', space=smem, size = 0x4, offset = 0x4, fixed_abs, tag = 'smem constant byte address 0x4 - core index']
  #allocation1 [shape = 'u32[144,128]{1,0:T(1,128)}', space=vmem, size = 0x12000, scoped, tag = 'internal scratch']
  %s0 = inlined_call_operand.hbm [shape: f32[2,16,32], index: 0, kind: input, shape index: {}]
  %s1 = inlined_call_operand.vmem [shape: f32[1,32], index: 1, kind: input, shape index: {}]
  %s2 = inlined_call_operand.vmem [shape: f32[1,32], index: 2, kind: input, shape index: {}]
  %s3 = inlined_call_operand.hbm [shape: f32[32,96], index: 3, kind: input, shape index: {}]
  %s4 = inlined_call_operand.vmem [shape: f32[1,96], index: 4, kind: input, shape index: {}]
  %s5 = inlined_call_operand.vmem [shape: f32[3,2,16,32], index: 5, kind: output, shape index: {}]
  %s6 = sld [smem:[#allocation0]]
  $region95: #{sublayer_block.3} parent=0
    _
  %s8 = ssub.s32 1, %s6
  %s9 = scalar_select 0, %s8, %s6
  $region1: #{sublayer_block.3} parent=0
    #allocation2 [shape = 'u8[16384]{0}', space=vmem, size = 0x4000, scoped, tag = 'input window, operand 0']
    #allocation3 [shape = 's32[2]{0}', space=sflag, size = 0x8, scoped, tag = 'scoped memory for sublayer_block.3']
    #allocation4 [shape = 'u8[16384]{0}', space=vmem, size = 0x4000, scoped, tag = 'input window, operand 3, single buffered']
    #allocation5 [shape = 's32[1]{0}', space=sflag, size = 0x4, scoped, tag = 'scoped memory for sublayer_block.3']
    #allocation6 [shape = 'u8[49152]{0}', space=vmem, size = 0xc000, scoped, tag = 'output window, operand 0']
    %10 = vsyncpa [#allocation3], 0
    %s11 = scalar_lea.sflag [#allocation3], 1
    %12 = vsyncpa %s11, 0
    %13 = vsyncpa [#allocation5], 0
    loop: start=0, step=1, limit=4
    $region2: #{sublayer_block.3} parent=1 // loop_pre_header
      _
    $region3: #{sublayer_block.3} parent=1 // loop_header
      %s15 = sphi 0, %s19
      %p16 = scmp.ge.s32.totalorder %s15, 4
      %s22 = sphi 0, %s34
      %s23 = sphi 0, %s30
      %s24 = sphi 0, %s22
      %s25 = sphi 0, %s23
      %s26 = sphi 0, %s24
      %s27 = sphi 0, %s25
      %s39 = sphi 0, %s41
      %s42 = sphi 0, %s39
      %s43 = sphi 0, %s42
      %s59 = sphi 0, %s43
      %s63 = sphi 0, %s63
      %s65 = sphi 0, %s63
      %s66 = sphi 0, %s65
      %s80 = sphi 0, %s66
      %s84 = sphi 0, %s84
      %s86 = sphi 0, %s84
      %s87 = sphi 0, %s86
      %s101 = sphi 0, %s87
      %s105 = sphi 0, %s105
      %s107 = sphi 0, %s105
      %s108 = sphi 0, %s107
      %s122 = sphi 0, %s108
      %s126 = sphi 0, %s126
      %s128 = sphi 0, %s126
      %s129 = sphi 0, %s128
      %s143 = sphi 0, %s129
      %s151 = sphi 0, %s153
      %s154 = sphi 0, %s151
      %s155 = sphi 0, %s154
      %s171 = sphi 0, %s155
    $region4: #{sublayer_block.3} parent=1 // loop_header_branch
      %18 = sbr.rel (%p16) target = $region8
    $region5: #{sublayer_block.3} parent=1 // loop_body
      %s20 = ssub.s32 %s15, 1
      %s21 = ssub.s32 %s15, 2
      %s28 = sadd.s32 1, %s23
      %p29 = scmp.ge.s32.totalorder %s28, 1
      %s30 = scalar_select %p29, 0, %s28
      %s31 = sadd.s32 1, %s22
      %s32 = scalar_select %p29, %s31, %s22
      %p33 = scmp.ge.s32.totalorder %s32, 2
      %s34 = scalar_select %p33, 0, %s32
      %s35 = ssub.s32 %s22, %s34
      %s36 = ssub.s32 %s23, %s30
      %s37 = sor.u32 %s35, %s36
      %p38 = scmp.eq.s32.totalorder %s37, 0
      %s40 = sadd.s32 %s39, 1
      %s41 = scalar_select %p38, %s39, %s40
      %p44 = pneg %p38
      %p45 = scmp.eq.s32.totalorder %s15, 1
      %p46 = por %p44, %p45
      %p47 = scmp.ne.s32.totalorder %s39, %s42
      %p48 = scmp.eq.s32.totalorder %s15, 0
      %p49 = por %p47, %p48
      %p50 = scmp.ne.s32.totalorder %s39, %s42
      %p51 = scmp.eq.s32.totalorder %s20, 1
      %p52 = por %p50, %p51
      %p53 = scmp.ne.s32.totalorder %s42, %s43
      %p54 = scmp.eq.s32.totalorder %s20, 0
      %p55 = por %p53, %p54
      %p56 = scmp.ne.s32.totalorder %s42, %s43
      %p57 = scmp.eq.s32.totalorder %s21, 1
      %p58 = por %p56, %p57
      %p60 = scmp.ne.s32.totalorder %s43, %s59
      %p61 = scmp.eq.s32.totalorder %s21, 0
      %p62 = por %p60, %p61
      %s64 = sadd.s32 %s63, 1
      %p67 = scmp.eq.s32.totalorder %s15, 1
      %p68 = scmp.ne.s32.totalorder %s63, %s65
      %p69 = scmp.eq.s32.totalorder %s15, 0
      %p70 = por %p68, %p69
      %p71 = scmp.ne.s32.totalorder %s63, %s65
      %p72 = scmp.eq.s32.totalorder %s20, 1
      %p73 = por %p71, %p72
      %p74 = scmp.ne.s32.totalorder %s65, %s66
      %p75 = scmp.eq.s32.totalorder %s20, 0
      %p76 = por %p74, %p75
      %p77 = scmp.ne.s32.totalorder %s65, %s66
      %p78 = scmp.eq.s32.totalorder %s21, 1
      %p79 = por %p77, %p78
      %p81 = scmp.ne.s32.totalorder %s66, %s80
      %p82 = scmp.eq.s32.totalorder %s21, 0
      %p83 = por %p81, %p82
      %s85 = sadd.s32 %s84, 1
      %p88 = scmp.eq.s32.totalorder %s15, 1
      %p89 = scmp.ne.s32.totalorder %s84, %s86
      %p90 = scmp.eq.s32.totalorder %s15, 0
      %p91 = por %p89, %p90
      %p92 = scmp.ne.s32.totalorder %s84, %s86
      %p93 = scmp.eq.s32.totalorder %s20, 1
      %p94 = por %p92, %p93
      %p95 = scmp.ne.s32.totalorder %s86, %s87
      %p96 = scmp.eq.s32.totalorder %s20, 0
      %p97 = por %p95, %p96
      %p98 = scmp.ne.s32.totalorder %s86, %s87
      %p99 = scmp.eq.s32.totalorder %s21, 1
      %p100 = por %p98, %p99
      %p102 = scmp.ne.s32.totalorder %s87, %s101
      %p103 = scmp.eq.s32.totalorder %s21, 0
      %p104 = por %p102, %p103
      %s106 = sadd.s32 %s105, 1
      %p109 = scmp.eq.s32.totalorder %s15, 1
      %p110 = scmp.ne.s32.totalorder %s105, %s107
      %p111 = scmp.eq.s32.totalorder %s15, 0
      %p112 = por %p110, %p111
      %p113 = scmp.ne.s32.totalorder %s105, %s107
      %p114 = scmp.eq.s32.totalorder %s20, 1
      %p115 = por %p113, %p114
      %p116 = scmp.ne.s32.totalorder %s107, %s108
      %p117 = scmp.eq.s32.totalorder %s20, 0
      %p118 = por %p116, %p117
      %p119 = scmp.ne.s32.totalorder %s107, %s108
      %p120 = scmp.eq.s32.totalorder %s21, 1
      %p121 = por %p119, %p120
      %p123 = scmp.ne.s32.totalorder %s108, %s122
      %p124 = scmp.eq.s32.totalorder %s21, 0
      %p125 = por %p123, %p124
      %s127 = sadd.s32 %s126, 1
      %p130 = scmp.eq.s32.totalorder %s15, 1
      %p131 = scmp.ne.s32.totalorder %s126, %s128
      %p132 = scmp.eq.s32.totalorder %s15, 0
      %p133 = por %p131, %p132
      %p134 = scmp.ne.s32.totalorder %s126, %s128
      %p135 = scmp.eq.s32.totalorder %s20, 1
      %p136 = por %p134, %p135
      %p137 = scmp.ne.s32.totalorder %s128, %s129
      %p138 = scmp.eq.s32.totalorder %s20, 0
      %p139 = por %p137, %p138
      %p140 = scmp.ne.s32.totalorder %s128, %s129
      %p141 = scmp.eq.s32.totalorder %s21, 1
      %p142 = por %p140, %p141
      %p144 = scmp.ne.s32.totalorder %s129, %s143
      %p145 = scmp.eq.s32.totalorder %s21, 0
      %p146 = por %p144, %p145
      %s147 = ssub.s32 %s22, %s34
      %s148 = ssub.s32 %s23, %s30
      %s149 = sor.u32 %s147, %s148
      %p150 = scmp.eq.s32.totalorder %s149, 0
      %s152 = sadd.s32 %s151, 1
      %s153 = scalar_select %p150, %s151, %s152
      %p156 = pneg %p150
      %p157 = scmp.eq.s32.totalorder %s15, 1
      %p158 = por %p156, %p157
      %p159 = scmp.ne.s32.totalorder %s151, %s154
      %p160 = scmp.eq.s32.totalorder %s15, 0
      %p161 = por %p159, %p160
      %p162 = scmp.ne.s32.totalorder %s151, %s154
      %p163 = scmp.eq.s32.totalorder %s20, 1
      %p164 = por %p162, %p163
      %p165 = scmp.ne.s32.totalorder %s154, %s155
      %p166 = scmp.eq.s32.totalorder %s20, 0
      %p167 = por %p165, %p166
      %p168 = scmp.ne.s32.totalorder %s154, %s155
      %p169 = scmp.eq.s32.totalorder %s21, 1
      %p170 = por %p168, %p169
      %p172 = scmp.ne.s32.totalorder %s155, %s171
      %p173 = scmp.eq.s32.totalorder %s21, 0
      %p174 = por %p172, %p173
      %p175 = scmp.le.s32.totalorder 1, %s15
      %p176 = scmp.lt.s32.totalorder %s15, 3
      %p177 = pnand %p175, %p176
      %p178 = pneg %p177
      // Predicated region
      $region9: #{sublayer_block.3} parent=5 // pred_check
        _
      $region10: #{sublayer_block.3} parent=5 // pred_check_branch
        %180 = sbr.rel (%p177) target = $region12
      $region11: #{sublayer_block.3} parent=5 // pred_region
        %s181 = ssub.s32 %s15, 1
        // Predicated region
        $region13: #{sublayer_block.3} parent=11 // pred_check
          %p182 = pneg %p76
        $region14: #{sublayer_block.3} parent=11 // pred_check_branch
          %184 = sbr.rel (%p182) target = $region16
        $region15: #{sublayer_block.3} parent=11 // pred_region
          _
        $region16: #{sublayer_block.3} parent=11 // pred_fallthru
          _
        // Predicated region
        $region17: #{sublayer_block.3} parent=11 // pred_check
          %p185 = pneg %p97
        $region18: #{sublayer_block.3} parent=11 // pred_check_branch
          %187 = sbr.rel (%p185) target = $region20
        $region19: #{sublayer_block.3} parent=11 // pred_region
          _
        $region20: #{sublayer_block.3} parent=11 // pred_fallthru
          _
        // Predicated region
        $region21: #{sublayer_block.3} parent=11 // pred_check
          %p188 = pneg %p118
        $region22: #{sublayer_block.3} parent=11 // pred_check_branch
          %190 = sbr.rel (%p188) target = $region24
        $region23: #{sublayer_block.3} parent=11 // pred_region
          %s192 = ssub.s32 512, 512
          %193 = vsyncadd [#allocation5], %s192
          %s194 = sshll.u32 [#allocation4], 4
          %s195 = int_to_ptr.vmem [resolvable:$true] %s194
          %200 = dma.hbm_to_vmem [thread:$0]  %s3, 512, %s195, [#allocation5], 128, 128, 8
        $region24: #{sublayer_block.3} parent=11 // pred_fallthru
          _
        // Predicated region
        $region25: #{sublayer_block.3} parent=11 // pred_check
          %p201 = pneg %p139
        $region26: #{sublayer_block.3} parent=11 // pred_check_branch
          %203 = sbr.rel (%p201) target = $region28
        $region27: #{sublayer_block.3} parent=11 // pred_region
          _
        $region28: #{sublayer_block.3} parent=11 // pred_fallthru
          _
      $region12: #{sublayer_block.3} parent=5 // pred_fallthru
        _
      %p204 = scmp.lt.s32.totalorder %s15, 2
      // Predicated region
      $region29: #{sublayer_block.3} parent=5 // pred_check
        %p205 = pneg %p204
      $region30: #{sublayer_block.3} parent=5 // pred_check_branch
        %207 = sbr.rel (%p205) target = $region32
      $region31: #{sublayer_block.3} parent=5 // pred_region
        // Predicated region
        $region33: #{sublayer_block.3} parent=31 // pred_check
          %p208 = pneg %p49
        $region34: #{sublayer_block.3} parent=31 // pred_check_branch
          %210 = sbr.rel (%p208) target = $region36
        $region35: #{sublayer_block.3} parent=31 // pred_region
          %s211 = sand.u32 %s39, 1
          %s212 = scalar_lea.sflag [#allocation3], %s211
          %s213 = sand.u32 %s39, 1
          %s214 = smul.addr %s213, 16
          %s215 = scalar_lea.vmem [#allocation2], %s214
          %s216 = smul.u32 2, %s23
          %s218 = ssub.s32 256, 256
          %219 = vsyncadd %s212, %s218
          %s220 = smul.addr %s22, 2
          %s221 = sadd.s32 %s216, %s220
          %s222 = smul.addr %s221, 128
          %s223 = scalar_lea.hbm %s0, %s222
          %s224 = sshll.u32 %s215, 4
          %s225 = int_to_ptr.vmem [resolvable:$true] %s224
          %230 = dma.hbm_to_vmem [thread:$0]  %s223, 256, %s225, %s212, 128, 128, 8
        $region36: #{sublayer_block.3} parent=31 // pred_fallthru
          _
      $region32: #{sublayer_block.3} parent=5 // pred_fallthru
        _
      %p231 = scmp.le.s32.totalorder 1, %s15
      %p232 = scmp.lt.s32.totalorder %s15, 3
      %p233 = pnand %p231, %p232
      %p234 = pneg %p233
      // Predicated region
      $region37: #{sublayer_block.3} parent=5 // pred_check
        _
      $region38: #{sublayer_block.3} parent=5 // pred_check_branch
        %236 = sbr.rel (%p233) target = $region40
      $region39: #{sublayer_block.3} parent=5 // pred_region
        %s237 = ssub.s32 %s15, 1
        %s238 = sand.u32 %s42, 1
        %s239 = scalar_lea.sflag [#allocation3], %s238
        %s240 = sand.u32 %s42, 1
        %s241 = smul.addr %s240, 16
        %s242 = scalar_lea.vmem [#allocation2], %s241
        // Predicated region
        $region41: #{sublayer_block.3} parent=39 // pred_check
          %p243 = pneg %p55
        $region42: #{sublayer_block.3} parent=39 // pred_check_branch
          %245 = sbr.rel (%p243) target = $region44
        $region43: #{sublayer_block.3} parent=39 // pred_region
          %246 = dma.done %s239, 256
        $region44: #{sublayer_block.3} parent=39 // pred_fallthru
          _
        // Predicated region
        $region45: #{sublayer_block.3} parent=39 // pred_check
          %p247 = pneg %p118
        $region46: #{sublayer_block.3} parent=39 // pred_check_branch
          %249 = sbr.rel (%p247) target = $region48
        $region47: #{sublayer_block.3} parent=39 // pred_region
          %250 = dma.done [#allocation5], 512
        $region48: #{sublayer_block.3} parent=39 // pred_fallthru
          _
        %s251 = sand.u32 %s42, 1
        %s252 = scalar_lea.sflag [#allocation3], %s251
        %s253 = sand.u32 %s42, 1
        %s254 = smul.addr %s253, 16
        %s255 = scalar_lea.vmem [#allocation2], %s254
        %p256 = pneg %p55
        %p257 = pneg %p52
        %p258 = pneg %p76
        %p259 = pneg %p73
        %p260 = pneg %p97
        %p261 = pneg %p94
        %p262 = pneg %p118
        %p263 = pneg %p115
        %p264 = pneg %p139
        %p265 = pneg %p136
        %p266 = pneg %p167
        %p267 = pneg %p164
        %s268 = sand.u32 %s154, 1
        %s269 = sand.u32 %s154, 1
        %s270 = smul.addr %s269, 48
        %s271 = scalar_lea.vmem [#allocation6], %s270
        %s272 = smul.u32 2, %s25
        %s273 = smul.u32 2, %s25
        %v274 = vld [vmem:[%s242] sm:$0xff]
        %v275 = vld [vmem:[%s242 + $0x8] sm:$0xff]
        %vm276 = vcmask 261120
        %v277 = vsel %vm276, %v274, 0.0
        %278 = vadd.xlane.f32.xlu0 %v277
        %v279 = vpop.xlane.xlu0 %278
        %v280 = vsel %vm276, %v275, 0.0
        %281 = vadd.xlane.f32.xlu0 %v280
        %v282 = vpop.xlane.xlu0 %281
        %v283 = vrcp.pop 32.0
        %v284 = vmul.f32 %v279, %v283
        %v285 = vmul.f32 %v282, %v283
        %v286 = vsub.f32 %v274, %v284
        %v287 = vsub.f32 %v275, %v285
        %v288 = vmul.f32 %v286, %v286
        %v289 = vmul.f32 %v287, %v287
        %v290 = vsel %vm276, %v288, 0.0
        %291 = vadd.xlane.f32.xlu0 %v290
        %v292 = vpop.xlane.xlu0 %291
        %v293 = vsel %vm276, %v289, 0.0
        %294 = vadd.xlane.f32.xlu0 %v293
        %v295 = vpop.xlane.xlu0 %294
        %v296 = vmul.f32 %v292, 0.032258064
        %v297 = vmul.f32 %v295, 0.032258064
        %v298 = vrsqrt.pop %v296
        %v299 = vmul.f32 %v296, %v298
        %vm300 = vcmp.eq.f32.partialorder %v296, inf
        %v301 = vsel %vm300, %v296, %v299
        %vm302 = vcmp.eq.f32.partialorder %v296, 0.0
        %v303 = vand.u32 %v296, 2147483648
        %v304 = vsel %vm302, %v303, %v301
        %v305 = vrsqrt.pop %v297
        %v306 = vmul.f32 %v297, %v305
        %vm307 = vcmp.eq.f32.partialorder %v297, inf
        %v308 = vsel %vm307, %v297, %v306
        %vm309 = vcmp.eq.f32.partialorder %v297, 0.0
        %v310 = vand.u32 %v297, 2147483648
        %v311 = vsel %vm309, %v310, %v308
        %v312 = vadd.f32 %v304, 1e-06
        %v313 = vadd.f32 %v311, 1e-06
        %v314 = vrcp.pop %v312
        %v315 = vmul.f32 1.0, %v314
        %v316 = vrcp.pop %v313
        %v317 = vmul.f32 1.0, %v316
        %v318 = vld [vmem:[%s1] sm:$0x1]
        %v319 = vmul.f32 %v286, %v315
        %v320 = vmul.f32 %v287, %v317
        %v322 = vlaneseq
        %v323 = vshrl.u32 %v322, 7
        %v324 = vsub.s32 0, %v323
        %v325 = vrot.slane %v318, %v324
        %v327 = vmul.f32 %v325, %v319
        %v328 = vmul.f32 %v325, %v320
        %v329 = vld [vmem:[%s2] sm:$0x1]
        %v331 = vlaneseq
        %v332 = vshrl.u32 %v331, 7
        %v333 = vsub.s32 0, %v332
        %v334 = vrot.slane %v329, %v333
        %v336 = vadd.f32 %v327, %v334
        %v337 = vadd.f32 %v328, %v334
        %v338 = vld [vmem:[#allocation4] sm:$0xff]
        %v339 = vld [vmem:[#allocation4 + $0x8] sm:$0xff]
        %v340 = vld [vmem:[#allocation4 + $0x10] sm:$0xff]
        %v341 = vld [vmem:[#allocation4 + $0x18] sm:$0xff]
        %v342 = vld [vmem:[%s4] sm:$0x1]
        %v344 = vlaneseq
        %v345 = vshrl.u32 %v344, 7
        %v346 = vsub.s32 0, %v345
        %v347 = vrot.slane %v342, %v346
        %v350 = vsel %vm276, %v336, 0
        %v353 = vsel %vm276, %v337, 0
        %355 = vmatprep.subr.mxu0 0.0
        %356 = vmatpush1.msra.mxu0 0.0
        %357 = vmatprep.subr.mxu0 0.0
        %358 = vmatpush1.msra.mxu0 0.0
        %359 = vmatprep.subr.mxu0 0.0
        %360 = vmatpush1.msra.mxu0 0.0
        %361 = vmatprep.subr.mxu0 0.0
        %362 = vmatpush1.msra.mxu0 0.0
        %363 = vmatprep.subr.mxu0 0.0
        %364 = vmatpush1.msra.mxu0 0.0
        %365 = vmatprep.subr.mxu0 0.0
        %366 = vmatpush1.msra.mxu0 0.0
        %367 = vmatprep.subr.mxu0 0.0
        %368 = vmatpush1.msra.mxu0 0.0
        %369 = vmatprep.subr.mxu0 0.0
        %370 = vmatpush1.msra.mxu0 0.0
        %371 = vmatprep.subr.mxu0 0.0
        %372 = vmatpush1.msra.mxu0 0.0
        %373 = vmatprep.subr.mxu0 0.0
        %374 = vmatpush1.msra.mxu0 0.0
        %375 = vmatprep.subr.mxu0 0.0
        %376 = vmatpush1.msra.mxu0 0.0
        %377 = vmatprep.subr.mxu0 0.0
        %378 = vmatpush1.msra.mxu0 0.0
        %379 = vmatprep.subr.mxu0 0.0
        %380 = vmatpush1.msra.mxu0 %v341
        %381 = vmatprep.subr.mxu0 0.0
        %382 = vmatpush1.msra.mxu0 %v340
        %383 = vmatprep.subr.mxu0 0.0
        %384 = vmatpush1.msra.mxu0 %v339
        %385 = vmatprep.subr.mxu0 0.0
        %386 = vmatpush1.msra.mxu0 %v338
        %387 = vmatprep.subr.mxu0 0.0
        %388 = vmatpush2.msra.mxu0 0.0
        %389 = vmatprep.subr.mxu0 0.0
        %390 = vmatpush2.msra.mxu0 0.0
        %391 = vmatprep.subr.mxu0 0.0
        %392 = vmatpush2.msra.mxu0 0.0
        %393 = vmatprep.subr.mxu0 0.0
        %394 = vmatpush2.msra.mxu0 0.0
        %395 = vmatprep.subr.mxu0 0.0
        %396 = vmatpush2.msra.mxu0 0.0
        %397 = vmatprep.subr.mxu0 0.0
        %398 = vmatpush2.msra.mxu0 0.0
        %399 = vmatprep.subr.mxu0 0.0
        %400 = vmatpush2.msra.mxu0 0.0
        %401 = vmatprep.subr.mxu0 0.0
        %402 = vmatpush2.msra.mxu0 0.0
        %403 = vmatprep.subr.mxu0 0.0
        %404 = vmatpush2.msra.mxu0 0.0
        %405 = vmatprep.subr.mxu0 0.0
        %406 = vmatpush2.msra.mxu0 0.0
        %407 = vmatprep.subr.mxu0 0.0
        %408 = vmatpush2.msra.mxu0 0.0
        %409 = vmatprep.subr.mxu0 0.0
        %410 = vmatpush2.msra.mxu0 0.0
        %411 = vmatprep.subr.mxu0 0.0
        %412 = vmatpush2.msra.mxu0 0.0
        %413 = vmatprep.subr.mxu0 0.0
        %414 = vmatpush2.msra.mxu0 0.0
        %415 = vmatprep.subr.mxu0 0.0
        %416 = vmatpush2.msra.mxu0 0.0
        %417 = vmatprep.subr.mxu0 0.0
        %418 = vmatpush2.msra.mxu0 0.0
        %419 = vmatprep.mubr.f32.mxu0 0.0
        %420 = vmatmul.mubr.f32.gmra.mxu0 %v350
        %v421 = vpop.f32.mrf.mxu0
        %v422 = vadd.f32 %v347, %v421
        %v423 = vpop.f32.mrf.mxu0
        %424 = vmatprep.mubr.f32.mxu0 0.0
        %425 = vmatmul.mubr.f32.gmra.mxu0 %v353
        %v426 = vpop.f32.mrf.mxu0
        %v427 = vadd.f32 %v347, %v426
        %v428 = vpop.f32.mrf.mxu0
        %429 = vdwg.mxu0
        %430 = vst.msk [vmem:[%s271] sm:$0xff] %vm276, %v422
        %431 = vst.msk [vmem:[%s271 + $0x8] sm:$0xff] %vm276, %v427
        %434 = vrot.lane.b32.xlu0 %v422, 96
        %v435 = vpop.permute.xlu0 %434
        %436 = vrot.lane.b32.xlu0 %v427, 96
        %v437 = vpop.permute.xlu0 %436
        %s440 = scalar_lea.vmem %s271, 16 [#allocation6]
        %441 = vst.msk [vmem:[%s440] sm:$0xff] %vm276, %v435
        %442 = vst.msk [vmem:[%s440 + $0x8] sm:$0xff] %vm276, %v437
        %443 = vrot.lane.b32.xlu0 %v422, 64
        %v444 = vpop.permute.xlu0 %443
        %445 = vrot.lane.b32.xlu0 %v427, 64
        %v446 = vpop.permute.xlu0 %445
        %s449 = scalar_lea.vmem %s271, 32 [#allocation6]
        %450 = vst.msk [vmem:[%s449] sm:$0xff] %vm276, %v444
        %451 = vst.msk [vmem:[%s449 + $0x8] sm:$0xff] %vm276, %v446
        %s452 = sand.u32 %s154, 1
        %s453 = sand.u32 %s154, 1
        %s454 = smul.addr %s453, 48
        %s455 = scalar_lea.vmem [#allocation6], %s454
        // Predicated region
        $region49: #{sublayer_block.3} parent=39 // pred_check
          %p456 = pneg %p164
        $region50: #{sublayer_block.3} parent=39 // pred_check_branch
          %458 = sbr.rel (%p456) target = $region52
        $region51: #{sublayer_block.3} parent=39 // pred_region
          %s459 = smul.u32 2, %s25
          %s460 = smul.addr %s24, 2
          %s461 = sadd.s32 %s459, %s460
          %s462 = smul.addr %s461, 8
          %s463 = scalar_lea.vmem %s5, %s462
          // Predicated region
          $region53: #{sublayer_block.3} parent=51 // pred_check
            _
          $region54: #{sublayer_block.3} parent=51 // pred_check_branch
            %465 = sbr.rel (0) target = $region56
          $region55: #{sublayer_block.3} parent=51 // pred_region
            // Predicated region
            $region57: #{sublayer_block.3} parent=55 // pred_check
              _
            $region58: #{sublayer_block.3} parent=55 // pred_check_branch
              %467 = sbr.rel (0) target = $region60
            $region59: #{sublayer_block.3} parent=55 // pred_region
              // Predicated region
              $region72: #{sublayer_block.3} parent=59 // pred_check
                _
              $region73: #{sublayer_block.3} parent=59 // pred_check_branch
                %493 = sbr.rel (0) target = $region75
              $region74: #{sublayer_block.3} parent=59 // pred_region
                loop: start=0, step=1, limit=1
                $region76: #{sublayer_block.3} parent=74 // loop_pre_header
                  _
                $region77: #{sublayer_block.3} parent=74 // loop_header
                  %s495 = sphi 0, %s499
                  %p496 = scmp.ge.s32.totalorder %s495, 1
                  %s500 = sphi %s455, %s455
                  %s501 = sphi %s463, %s463
                $region78: #{sublayer_block.3} parent=74 // loop_header_branch
                  %498 = sbr.rel (%p496) target = $region82
                $region79: #{sublayer_block.3} parent=74 // loop_body
                  %v502 = vld [vmem:[%s500] sm:$0xff]
                  %503 = vst [vmem:[%s501] sm:$0xff] %v502
                  %v504 = vld [vmem:[%s500 + $0x8] sm:$0xff]
                  %505 = vst [vmem:[%s501 + $0x8] sm:$0xff] %v504
                  %v506 = vld [vmem:[%s500 + $0x10] sm:$0xff]
                  %507 = vst [vmem:[%s501 + $0x20] sm:$0xff] %v506
                  %v508 = vld [vmem:[%s500 + $0x18] sm:$0xff]
                  %509 = vst [vmem:[%s501 + $0x28] sm:$0xff] %v508
                  %v510 = vld [vmem:[%s500 + $0x20] sm:$0xff]
                  %511 = vst [vmem:[%s501 + $0x40] sm:$0xff] %v510
                  %v512 = vld [vmem:[%s500 + $0x28] sm:$0xff]
                  %513 = vst [vmem:[%s501 + $0x48] sm:$0xff] %v512
                $region80: #{sublayer_block.3} parent=74 // loop_footer
                  %s499 = sadd.s32 1, %s495
                $region81: #{sublayer_block.3} parent=74 // loop_footer_branch
                  %494 = sbr.rel target = $region77
                $region82: #{sublayer_block.3} parent=74 // loop_exit
                  _
              $region75: #{sublayer_block.3} parent=59 // pred_fallthru
                _
              // Predicated region
              $region83: #{sublayer_block.3} parent=59 // pred_check
                _
              $region84: #{sublayer_block.3} parent=59 // pred_check_branch
                %515 = sbr.rel target = $region86
              $region85: #{sublayer_block.3} parent=59 // pred_region
                _
              $region86: #{sublayer_block.3} parent=59 // pred_fallthru
                _
            $region60: #{sublayer_block.3} parent=55 // pred_fallthru
              _
            // Predicated region
            $region61: #{sublayer_block.3} parent=55 // pred_check
              _
            $region62: #{sublayer_block.3} parent=55 // pred_check_branch
              %469 = sbr.rel target = $region64
            $region63: #{sublayer_block.3} parent=55 // pred_region
              %s471 = ssub.s32 256, 1
              loop: start=0, step=1, limit=1
              $region65: #{sublayer_block.3} parent=63 // loop_pre_header
                _
              $region66: #{sublayer_block.3} parent=63 // loop_header
                %s473 = sphi 0, %s477
                %p474 = scmp.ge.s32.totalorder %s473, 1
                %s478 = sphi %s455, %s455
                %s479 = sphi %s463, %s463
              $region67: #{sublayer_block.3} parent=63 // loop_header_branch
                %476 = sbr.rel (%p474) target = $region71
              $region68: #{sublayer_block.3} parent=63 // loop_body
                %v480 = vld [vmem:[%s478] sm:%s471]
                %481 = vst [vmem:[%s479] sm:%s471] %v480
                %v482 = vld [vmem:[%s478 + $0x8] sm:%s471]
                %483 = vst [vmem:[%s479 + $0x8] sm:%s471] %v482
                %v484 = vld [vmem:[%s478 + $0x10] sm:%s471]
                %485 = vst [vmem:[%s479 + $0x20] sm:%s471] %v484
                %v486 = vld [vmem:[%s478 + $0x18] sm:%s471]
                %487 = vst [vmem:[%s479 + $0x28] sm:%s471] %v486
                %v488 = vld [vmem:[%s478 + $0x20] sm:%s471]
                %489 = vst [vmem:[%s479 + $0x40] sm:%s471] %v488
                %v490 = vld [vmem:[%s478 + $0x28] sm:%s471]
                %491 = vst [vmem:[%s479 + $0x48] sm:%s471] %v490
              $region69: #{sublayer_block.3} parent=63 // loop_footer
                %s477 = sadd.s32 1, %s473
              $region70: #{sublayer_block.3} parent=63 // loop_footer_branch
                %472 = sbr.rel target = $region66
              $region71: #{sublayer_block.3} parent=63 // loop_exit
                _
            $region64: #{sublayer_block.3} parent=55 // pred_fallthru
              _
          $region56: #{sublayer_block.3} parent=51 // pred_fallthru
            _
          %516 = vnop
        $region52: #{sublayer_block.3} parent=39 // pred_fallthru
          _
      $region40: #{sublayer_block.3} parent=5 // pred_fallthru
        _
      %p517 = scmp.le.s32.totalorder 2, %s15
      // Predicated region
      $region87: #{sublayer_block.3} parent=5 // pred_check
        %p518 = pneg %p517
      $region88: #{sublayer_block.3} parent=5 // pred_check_branch
        %520 = sbr.rel (%p518) target = $region90
      $region89: #{sublayer_block.3} parent=5 // pred_region
        %s521 = ssub.s32 %s15, 2
        // Predicated region
        $region91: #{sublayer_block.3} parent=89 // pred_check
          %p522 = pneg %p170
        $region92: #{sublayer_block.3} parent=89 // pred_check_branch
          %524 = sbr.rel (%p522) target = $region94
        $region93: #{sublayer_block.3} parent=89 // pred_region
          %s525 = sand.u32 %s155, 1
          %s526 = sand.u32 %s155, 1
          %s527 = smul.addr %s526, 48
          %s528 = scalar_lea.vmem [#allocation6], %s527
        $region94: #{sublayer_block.3} parent=89 // pred_fallthru
          _
      $region90: #{sublayer_block.3} parent=5 // pred_fallthru
        _
    $region6: #{sublayer_block.3} parent=1 // loop_footer
      %s19 = sadd.s32 1, %s15
    $region7: #{sublayer_block.3} parent=1 // loop_footer_branch
      %14 = sbr.rel target = $region3
    $region8: #{sublayer_block.3} parent=1 // loop_exit
      _
    %529 = vsyncpa [#allocation3], 1
    %s530 = scalar_lea.sflag [#allocation3], 1
    %531 = vsyncpa %s530, 1
    %532 = vsyncpa [#allocation5], 1

// kernel: sublayer_block.5
$region0: #{sublayer_block.5}
  #allocation0 [shape = 'u32[]', space=smem, size = 0x4, offset = 0x4, fixed_abs, tag = 'smem constant byte address 0x4 - core index']
  #allocation1 [shape = 'u32[144,128]{1,0:T(1,128)}', space=vmem, size = 0x12000, scoped, tag = 'internal scratch']
  %s0 = inlined_call_operand.vmem [shape: f32[2,16,32], index: 0, kind: input, shape index: {}]
  %s1 = inlined_call_operand.vmem [shape: f32[2,16,32], index: 1, kind: input, shape index: {}]
  %s2 = inlined_call_operand.vmem [shape: f32[32,32], index: 2, kind: input, shape index: {}]
  %s3 = inlined_call_operand.vmem [shape: f32[1,32], index: 3, kind: input, shape index: {}]
  %s4 = inlined_call_operand.hbm [shape: f32[2,16,32], index: 4, kind: output, shape index: {}]
  %s5 = sld [smem:[#allocation0]]
  $region49: #{sublayer_block.5} parent=0
    _
  %s7 = ssub.s32 1, %s5
  %s8 = scalar_select 0, %s7, %s5
  $region1: #{sublayer_block.5} parent=0
    #allocation2 [shape = 'u8[16384]{0}', space=vmem, size = 0x4000, scoped, tag = 'output window, operand 0']
    #allocation3 [shape = 's32[2]{0}', space=sflag, size = 0x8, scoped, tag = 'scoped memory for sublayer_block.5']
    %9 = vsyncpa [#allocation3], 0
    %s10 = scalar_lea.sflag [#allocation3], 1
    %11 = vsyncpa %s10, 0
    loop: start=0, step=1, limit=4
    $region2: #{sublayer_block.5} parent=1 // loop_pre_header
      _
    $region3: #{sublayer_block.5} parent=1 // loop_header
      %s13 = sphi 0, %s17
      %p14 = scmp.ge.s32.totalorder %s13, 4
      %s20 = sphi 0, %s32
      %s21 = sphi 0, %s28
      %s22 = sphi 0, %s20
      %s23 = sphi 0, %s21
      %s24 = sphi 0, %s22
      %s25 = sphi 0, %s23
      %s37 = sphi 0, %s39
      %s40 = sphi 0, %s37
      %s41 = sphi 0, %s40
      %s57 = sphi 0, %s41
      %s65 = sphi 0, %s67
      %s68 = sphi 0, %s65
      %s69 = sphi 0, %s68
      %s85 = sphi 0, %s69
      %s89 = sphi 0, %s89
      %s91 = sphi 0, %s89
      %s92 = sphi 0, %s91
      %s106 = sphi 0, %s92
      %s110 = sphi 0, %s110
      %s112 = sphi 0, %s110
      %s113 = sphi 0, %s112
      %s127 = sphi 0, %s113
      %s135 = sphi 0, %s137
      %s138 = sphi 0, %s135
      %s139 = sphi 0, %s138
      %s155 = sphi 0, %s139
    $region4: #{sublayer_block.5} parent=1 // loop_header_branch
      %16 = sbr.rel (%p14) target = $region8
    $region5: #{sublayer_block.5} parent=1 // loop_body
      %s18 = ssub.s32 %s13, 1
      %s19 = ssub.s32 %s13, 2
      %s26 = sadd.s32 1, %s21
      %p27 = scmp.ge.s32.totalorder %s26, 1
      %s28 = scalar_select %p27, 0, %s26
      %s29 = sadd.s32 1, %s20
      %s30 = scalar_select %p27, %s29, %s20
      %p31 = scmp.ge.s32.totalorder %s30, 2
      %s32 = scalar_select %p31, 0, %s30
      %s33 = ssub.s32 %s20, %s32
      %s34 = ssub.s32 %s21, %s28
      %s35 = sor.u32 %s33, %s34
      %p36 = scmp.eq.s32.totalorder %s35, 0
      %s38 = sadd.s32 %s37, 1
      %s39 = scalar_select %p36, %s37, %s38
      %p42 = pneg %p36
      %p43 = scmp.eq.s32.totalorder %s13, 1
      %p44 = por %p42, %p43
      %p45 = scmp.ne.s32.totalorder %s37, %s40
      %p46 = scmp.eq.s32.totalorder %s13, 0
      %p47 = por %p45, %p46
      %p48 = scmp.ne.s32.totalorder %s37, %s40
      %p49 = scmp.eq.s32.totalorder %s18, 1
      %p50 = por %p48, %p49
      %p51 = scmp.ne.s32.totalorder %s40, %s41
      %p52 = scmp.eq.s32.totalorder %s18, 0
      %p53 = por %p51, %p52
      %p54 = scmp.ne.s32.totalorder %s40, %s41
      %p55 = scmp.eq.s32.totalorder %s19, 1
      %p56 = por %p54, %p55
      %p58 = scmp.ne.s32.totalorder %s41, %s57
      %p59 = scmp.eq.s32.totalorder %s19, 0
      %p60 = por %p58, %p59
      %s61 = ssub.s32 %s20, %s32
      %s62 = ssub.s32 %s21, %s28
      %s63 = sor.u32 %s61, %s62
      %p64 = scmp.eq.s32.totalorder %s63, 0
      %s66 = sadd.s32 %s65, 1
      %s67 = scalar_select %p64, %s65, %s66
      %p70 = pneg %p64
      %p71 = scmp.eq.s32.totalorder %s13, 1
      %p72 = por %p70, %p71
      %p73 = scmp.ne.s32.totalorder %s65, %s68
      %p74 = scmp.eq.s32.totalorder %s13, 0
      %p75 = por %p73, %p74
      %p76 = scmp.ne.s32.totalorder %s65, %s68
      %p77 = scmp.eq.s32.totalorder %s18, 1
      %p78 = por %p76, %p77
      %p79 = scmp.ne.s32.totalorder %s68, %s69
      %p80 = scmp.eq.s32.totalorder %s18, 0
      %p81 = por %p79, %p80
      %p82 = scmp.ne.s32.totalorder %s68, %s69
      %p83 = scmp.eq.s32.totalorder %s19, 1
      %p84 = por %p82, %p83
      %p86 = scmp.ne.s32.totalorder %s69, %s85
      %p87 = scmp.eq.s32.totalorder %s19, 0
      %p88 = por %p86, %p87
      %s90 = sadd.s32 %s89, 1
      %p93 = scmp.eq.s32.totalorder %s13, 1
      %p94 = scmp.ne.s32.totalorder %s89, %s91
      %p95 = scmp.eq.s32.totalorder %s13, 0
      %p96 = por %p94, %p95
      %p97 = scmp.ne.s32.totalorder %s89, %s91
      %p98 = scmp.eq.s32.totalorder %s18, 1
      %p99 = por %p97, %p98
      %p100 = scmp.ne.s32.totalorder %s91, %s92
      %p101 = scmp.eq.s32.totalorder %s18, 0
      %p102 = por %p100, %p101
      %p103 = scmp.ne.s32.totalorder %s91, %s92
      %p104 = scmp.eq.s32.totalorder %s19, 1
      %p105 = por %p103, %p104
      %p107 = scmp.ne.s32.totalorder %s92, %s106
      %p108 = scmp.eq.s32.totalorder %s19, 0
      %p109 = por %p107, %p108
      %s111 = sadd.s32 %s110, 1
      %p114 = scmp.eq.s32.totalorder %s13, 1
      %p115 = scmp.ne.s32.totalorder %s110, %s112
      %p116 = scmp.eq.s32.totalorder %s13, 0
      %p117 = por %p115, %p116
      %p118 = scmp.ne.s32.totalorder %s110, %s112
      %p119 = scmp.eq.s32.totalorder %s18, 1
      %p120 = por %p118, %p119
      %p121 = scmp.ne.s32.totalorder %s112, %s113
      %p122 = scmp.eq.s32.totalorder %s18, 0
      %p123 = por %p121, %p122
      %p124 = scmp.ne.s32.totalorder %s112, %s113
      %p125 = scmp.eq.s32.totalorder %s19, 1
      %p126 = por %p124, %p125
      %p128 = scmp.ne.s32.totalorder %s113, %s127
      %p129 = scmp.eq.s32.totalorder %s19, 0
      %p130 = por %p128, %p129
      %s131 = ssub.s32 %s20, %s32
      %s132 = ssub.s32 %s21, %s28
      %s133 = sor.u32 %s131, %s132
      %p134 = scmp.eq.s32.totalorder %s133, 0
      %s136 = sadd.s32 %s135, 1
      %s137 = scalar_select %p134, %s135, %s136
      %p140 = pneg %p134
      %p141 = scmp.eq.s32.totalorder %s13, 1
      %p142 = por %p140, %p141
      %p143 = scmp.ne.s32.totalorder %s135, %s138
      %p144 = scmp.eq.s32.totalorder %s13, 0
      %p145 = por %p143, %p144
      %p146 = scmp.ne.s32.totalorder %s135, %s138
      %p147 = scmp.eq.s32.totalorder %s18, 1
      %p148 = por %p146, %p147
      %p149 = scmp.ne.s32.totalorder %s138, %s139
      %p150 = scmp.eq.s32.totalorder %s18, 0
      %p151 = por %p149, %p150
      %p152 = scmp.ne.s32.totalorder %s138, %s139
      %p153 = scmp.eq.s32.totalorder %s19, 1
      %p154 = por %p152, %p153
      %p156 = scmp.ne.s32.totalorder %s139, %s155
      %p157 = scmp.eq.s32.totalorder %s19, 0
      %p158 = por %p156, %p157
      %p159 = scmp.le.s32.totalorder 1, %s13
      %p160 = scmp.lt.s32.totalorder %s13, 3
      %p161 = pnand %p159, %p160
      %p162 = pneg %p161
      // Predicated region
      $region9: #{sublayer_block.5} parent=5 // pred_check
        _
      $region10: #{sublayer_block.5} parent=5 // pred_check_branch
        %164 = sbr.rel (%p161) target = $region12
      $region11: #{sublayer_block.5} parent=5 // pred_region
        %s165 = ssub.s32 %s13, 1
        // Predicated region
        $region13: #{sublayer_block.5} parent=11 // pred_check
          %p166 = pneg %p102
        $region14: #{sublayer_block.5} parent=11 // pred_check_branch
          %168 = sbr.rel (%p166) target = $region16
        $region15: #{sublayer_block.5} parent=11 // pred_region
          _
        $region16: #{sublayer_block.5} parent=11 // pred_fallthru
          _
        // Predicated region
        $region17: #{sublayer_block.5} parent=11 // pred_check
          %p169 = pneg %p123
        $region18: #{sublayer_block.5} parent=11 // pred_check_branch
          %171 = sbr.rel (%p169) target = $region20
        $region19: #{sublayer_block.5} parent=11 // pred_region
          _
        $region20: #{sublayer_block.5} parent=11 // pred_fallthru
          _
      $region12: #{sublayer_block.5} parent=5 // pred_fallthru
        _
      %p172 = scmp.lt.s32.totalorder %s13, 2
      // Predicated region
      $region21: #{sublayer_block.5} parent=5 // pred_check
        %p173 = pneg %p172
      $region22: #{sublayer_block.5} parent=5 // pred_check_branch
        %175 = sbr.rel (%p173) target = $region24
      $region23: #{sublayer_block.5} parent=5 // pred_region
        // Predicated region
        $region25: #{sublayer_block.5} parent=23 // pred_check
          %p176 = pneg %p47
        $region26: #{sublayer_block.5} parent=23 // pred_check_branch
          %178 = sbr.rel (%p176) target = $region28
        $region27: #{sublayer_block.5} parent=23 // pred_region
          %s179 = smul.u32 2, %s21
          %p180 = scmp.lt.s32.totalorder %s20, 1
          %s181 = scalar_select %p180, %s20, 1
          %p182 = scmp.lt.s32.totalorder %s179, 1
          %s183 = scalar_select %p182, %s179, 1
          %s184 = smul.addr %s181, 2
          %s185 = sadd.s32 %s183, %s184
          %s186 = smul.addr %s185, 8
          %s187 = scalar_lea.vmem %s0, %s186
          %s188 = smul.u32 2, %s21
        $region28: #{sublayer_block.5} parent=23 // pred_fallthru
          _
        // Predicated region
        $region29: #{sublayer_block.5} parent=23 // pred_check
          %p189 = pneg %p75
        $region30: #{sublayer_block.5} parent=23 // pred_check_branch
          %191 = sbr.rel (%p189) target = $region32
        $region31: #{sublayer_block.5} parent=23 // pred_region
          %s192 = smul.u32 2, %s21
          %p193 = scmp.lt.s32.totalorder %s20, 1
          %s194 = scalar_select %p193, %s20, 1
          %p195 = scmp.lt.s32.totalorder %s192, 1
          %s196 = scalar_select %p195, %s192, 1
          %s197 = smul.addr %s194, 2
          %s198 = sadd.s32 %s196, %s197
          %s199 = smul.addr %s198, 8
          %s200 = scalar_lea.vmem %s1, %s199
          %s201 = smul.u32 2, %s21
        $region32: #{sublayer_block.5} parent=23 // pred_fallthru
          _
      $region24: #{sublayer_block.5} parent=5 // pred_fallthru
        _
      %p202 = scmp.le.s32.totalorder 1, %s13
      %p203 = scmp.lt.s32.totalorder %s13, 3
      %p204 = pnand %p202, %p203
      %p205 = pneg %p204
      // Predicated region
      $region33: #{sublayer_block.5} parent=5 // pred_check
        _
      $region34: #{sublayer_block.5} parent=5 // pred_check_branch
        %207 = sbr.rel (%p204) target = $region36
      $region35: #{sublayer_block.5} parent=5 // pred_region
        %s208 = ssub.s32 %s13, 1
        %s209 = smul.u32 2, %s23
        %p210 = scmp.lt.s32.totalorder %s22, 1
        %s211 = scalar_select %p210, %s22, 1
        %p212 = scmp.lt.s32.totalorder %s209, 1
        %s213 = scalar_select %p212, %s209, 1
        %s214 = smul.addr %s211, 2
        %s215 = sadd.s32 %s213, %s214
        %s216 = smul.addr %s215, 8
        %s217 = scalar_lea.vmem %s0, %s216
        %p218 = pneg %p53
        %p219 = pneg %p50
        %s220 = smul.u32 2, %s23
        %p221 = scmp.lt.s32.totalorder %s22, 1
        %s222 = scalar_select %p221, %s22, 1
        %p223 = scmp.lt.s32.totalorder %s220, 1
        %s224 = scalar_select %p223, %s220, 1
        %s225 = smul.addr %s222, 2
        %s226 = sadd.s32 %s224, %s225
        %s227 = smul.addr %s226, 8
        %s228 = scalar_lea.vmem %s1, %s227
        %p229 = pneg %p81
        %p230 = pneg %p78
        %p231 = pneg %p102
        %p232 = pneg %p99
        %p233 = pneg %p123
        %p234 = pneg %p120
        %p235 = pneg %p151
        %p236 = pneg %p148
        %s237 = sand.u32 %s138, 1
        %s238 = scalar_lea.sflag [#allocation3], %s237
        %s239 = sand.u32 %s138, 1
        %s240 = smul.addr %s239, 16
        %s241 = scalar_lea.vmem [#allocation2], %s240
        %s242 = smul.u32 2, %s23
        %p243 = scmp.lt.s32.totalorder %s22, 1
        %s244 = scalar_select %p243, %s22, 1
        %p245 = scmp.lt.s32.totalorder %s242, 1
        %s246 = scalar_select %p245, %s242, 1
        %s247 = smul.addr %s244, 2
        %s248 = sadd.s32 %s246, %s247
        %s249 = smul.addr %s248, 8
        %s250 = scalar_lea.vmem %s0, %s249
        %s251 = smul.u32 2, %s23
        %s252 = smul.u32 2, %s23
        %p253 = scmp.lt.s32.totalorder %s22, 1
        %s254 = scalar_select %p253, %s22, 1
        %p255 = scmp.lt.s32.totalorder %s252, 1
        %s256 = scalar_select %p255, %s252, 1
        %s257 = smul.addr %s254, 2
        %s258 = sadd.s32 %s256, %s257
        %s259 = smul.addr %s258, 8
        %s260 = scalar_lea.vmem %s1, %s259
        %s261 = smul.u32 2, %s23
        %s262 = smul.u32 2, %s23
        %v263 = vld [vmem:[%s250] sm:$0xff]
        %v264 = vld [vmem:[%s250 + $0x8] sm:$0xff]
        %v265 = vld [vmem:[%s2] sm:$0xff]
        %v266 = vld [vmem:[%s2 + $0x8] sm:$0xff]
        %v267 = vld [vmem:[%s2 + $0x10] sm:$0xff]
        %v268 = vld [vmem:[%s2 + $0x18] sm:$0xff]
        %v269 = vld [vmem:[%s3] sm:$0x1]
        %v271 = vlaneseq
        %v272 = vshrl.u32 %v271, 7
        %v273 = vsub.s32 0, %v272
        %v274 = vrot.slane %v269, %v273
        %vm276 = vcmask 261120
        %v278 = vsel %vm276, %v263, 0
        %v281 = vsel %vm276, %v264, 0
        %283 = vmatprep.subr.mxu0 0.0
        %284 = vmatpush1.msra.mxu0 0.0
        %285 = vmatprep.subr.mxu0 0.0
        %286 = vmatpush1.msra.mxu0 0.0
        %287 = vmatprep.subr.mxu0 0.0
        %288 = vmatpush1.msra.mxu0 0.0
        %289 = vmatprep.subr.mxu0 0.0
        %290 = vmatpush1.msra.mxu0 0.0
        %291 = vmatprep.subr.mxu0 0.0
        %292 = vmatpush1.msra.mxu0 0.0
        %293 = vmatprep.subr.mxu0 0.0
        %294 = vmatpush1.msra.mxu0 0.0
        %295 = vmatprep.subr.mxu0 0.0
        %296 = vmatpush1.msra.mxu0 0.0
        %297 = vmatprep.subr.mxu0 0.0
        %298 = vmatpush1.msra.mxu0 0.0
        %299 = vmatprep.subr.mxu0 0.0
        %300 = vmatpush1.msra.mxu0 0.0
        %301 = vmatprep.subr.mxu0 0.0
        %302 = vmatpush1.msra.mxu0 0.0
        %303 = vmatprep.subr.mxu0 0.0
        %304 = vmatpush1.msra.mxu0 0.0
        %305 = vmatprep.subr.mxu0 0.0
        %306 = vmatpush1.msra.mxu0 0.0
        %307 = vmatprep.subr.mxu0 0.0
        %308 = vmatpush1.msra.mxu0 %v268
        %309 = vmatprep.subr.mxu0 0.0
        %310 = vmatpush1.msra.mxu0 %v267
        %311 = vmatprep.subr.mxu0 0.0
        %312 = vmatpush1.msra.mxu0 %v266
        %313 = vmatprep.subr.mxu0 0.0
        %314 = vmatpush1.msra.mxu0 %v265
        %315 = vmatprep.subr.mxu0 0.0
        %316 = vmatpush2.msra.mxu0 0.0
        %317 = vmatprep.subr.mxu0 0.0
        %318 = vmatpush2.msra.mxu0 0.0
        %319 = vmatprep.subr.mxu0 0.0
        %320 = vmatpush2.msra.mxu0 0.0
        %321 = vmatprep.subr.mxu0 0.0
        %322 = vmatpush2.msra.mxu0 0.0
        %323 = vmatprep.subr.mxu0 0.0
        %324 = vmatpush2.msra.mxu0 0.0
        %325 = vmatprep.subr.mxu0 0.0
        %326 = vmatpush2.msra.mxu0 0.0
        %327 = vmatprep.subr.mxu0 0.0
        %328 = vmatpush2.msra.mxu0 0.0
        %329 = vmatprep.subr.mxu0 0.0
        %330 = vmatpush2.msra.mxu0 0.0
        %331 = vmatprep.subr.mxu0 0.0
        %332 = vmatpush2.msra.mxu0 0.0
        %333 = vmatprep.subr.mxu0 0.0
        %334 = vmatpush2.msra.mxu0 0.0
        %335 = vmatprep.subr.mxu0 0.0
        %336 = vmatpush2.msra.mxu0 0.0
        %337 = vmatprep.subr.mxu0 0.0
        %338 = vmatpush2.msra.mxu0 0.0
        %339 = vmatprep.subr.mxu0 0.0
        %340 = vmatpush2.msra.mxu0 0.0
        %341 = vmatprep.subr.mxu0 0.0
        %342 = vmatpush2.msra.mxu0 0.0
        %343 = vmatprep.subr.mxu0 0.0
        %344 = vmatpush2.msra.mxu0 0.0
        %345 = vmatprep.subr.mxu0 0.0
        %346 = vmatpush2.msra.mxu0 0.0
        %347 = vmatprep.mubr.f32.mxu0 0.0
        %348 = vmatmul.mubr.f32.gmra.mxu0 %v278
        %v349 = vpop.f32.mrf.mxu0
        %v350 = vadd.f32 %v274, %v349
        %v351 = vpop.f32.mrf.mxu0
        %352 = vmatprep.mubr.f32.mxu0 0.0
        %353 = vmatmul.mubr.f32.gmra.mxu0 %v281
        %v354 = vpop.f32.mrf.mxu0
        %v355 = vadd.f32 %v274, %v354
        %v356 = vpop.f32.mrf.mxu0
        %357 = vdwg.mxu0
        %v358 = vld [vmem:[%s260] sm:$0xff]
        %v359 = vld [vmem:[%s260 + $0x8] sm:$0xff]
        %v360 = vadd.f32 %v358, %v350
        %v361 = vadd.f32 %v359, %v355
        %362 = vst.msk [vmem:[%s241] sm:$0xff] %vm276, %v360
        %363 = vst.msk [vmem:[%s241 + $0x8] sm:$0xff] %vm276, %v361
        %s364 = sand.u32 %s138, 1
        %s365 = scalar_lea.sflag [#allocation3], %s364
        %s366 = sand.u32 %s138, 1
        %s367 = smul.addr %s366, 16
        %s368 = scalar_lea.vmem [#allocation2], %s367
        // Predicated region
        $region37: #{sublayer_block.5} parent=35 // pred_check
          %p369 = pneg %p148
        $region38: #{sublayer_block.5} parent=35 // pred_check_branch
          %371 = sbr.rel (%p369) target = $region40
        $region39: #{sublayer_block.5} parent=35 // pred_region
          %s372 = smul.u32 2, %s23
          %s374 = ssub.s32 256, 256
          %375 = vsyncadd %s365, %s374
          %s376 = smul.addr %s22, 2
          %s377 = sadd.s32 %s372, %s376
          %s378 = smul.addr %s377, 128
          %s379 = scalar_lea.hbm %s4, %s378
          %s380 = sshll.u32 %s368, 4
          %s381 = int_to_ptr.vmem [resolvable:$true] %s380
          %386 = dma.vmem_to_hbm [thread:$0]  %s381, 256, %s379, %s365, 128, 128, 8
        $region40: #{sublayer_block.5} parent=35 // pred_fallthru
          _
      $region36: #{sublayer_block.5} parent=5 // pred_fallthru
        _
      %p387 = scmp.le.s32.totalorder 2, %s13
      // Predicated region
      $region41: #{sublayer_block.5} parent=5 // pred_check
        %p388 = pneg %p387
      $region42: #{sublayer_block.5} parent=5 // pred_check_branch
        %390 = sbr.rel (%p388) target = $region44
      $region43: #{sublayer_block.5} parent=5 // pred_region
        %s391 = ssub.s32 %s13, 2
        // Predicated region
        $region45: #{sublayer_block.5} parent=43 // pred_check
          %p392 = pneg %p154
        $region46: #{sublayer_block.5} parent=43 // pred_check_branch
          %394 = sbr.rel (%p392) target = $region48
        $region47: #{sublayer_block.5} parent=43 // pred_region
          %s395 = sand.u32 %s139, 1
          %s396 = scalar_lea.sflag [#allocation3], %s395
          %s397 = sand.u32 %s139, 1
          %s398 = smul.addr %s397, 16
          %s399 = scalar_lea.vmem [#allocation2], %s398
          %400 = dma.done %s396, 256
        $region48: #{sublayer_block.5} parent=43 // pred_fallthru
          _
      $region44: #{sublayer_block.5} parent=5 // pred_fallthru
        _
    $region6: #{sublayer_block.5} parent=1 // loop_footer
      %s17 = sadd.s32 1, %s13
    $region7: #{sublayer_block.5} parent=1 // loop_footer_branch
      %12 = sbr.rel target = $region3
    $region8: #{sublayer_block.5} parent=1 // loop_exit
      _
    %401 = vsyncpa [#allocation3], 1
    %s402 = scalar_lea.sflag [#allocation3], 1
    %403 = vsyncpa %s402, 1

// kernel: sublayer_block.4
$region0: #{sublayer_block.4}
  #allocation0 [shape = 'u32[]', space=smem, size = 0x4, offset = 0x4, fixed_abs, tag = 'smem constant byte address 0x4 - core index']
  #allocation1 [shape = 'u32[144,128]{1,0:T(1,128)}', space=vmem, size = 0x12000, scoped, tag = 'internal scratch']
  #allocation2 [shape = 'f32[4,16,1]{2,1,0:T(8,128)}', space=vmem, size = 0x8000, scoped, tag = 'scratch operand']
  #allocation3 [shape = 'f32[4,16,1]{2,1,0:T(8,128)}', space=vmem, size = 0x8000, scoped, tag = 'scratch operand']
  #allocation4 [shape = 'f32[4,16,8]{2,1,0:T(8,128)}', space=vmem, size = 0x8000, scoped, tag = 'scratch operand']
  %s0 = inlined_call_operand.vmem [shape: f32[3,2,16,32], index: 0, kind: input, shape index: {}, may-alias: {0,1,2}]
  %s1 = inlined_call_operand.vmem [shape: f32[3,2,16,32], index: 1, kind: input, shape index: {}, may-alias: {0,1,2}]
  %s2 = inlined_call_operand.vmem [shape: f32[3,2,16,32], index: 2, kind: input, shape index: {}, may-alias: {0,1,2}]
  %s3 = inlined_call_operand.vmem [shape: f32[2,16,32], index: 3, kind: output, shape index: {}]
  %s4 = sld [smem:[#allocation0]]
  $region57: #{sublayer_block.4} parent=0
    _
  %s6 = ssub.s32 1, %s4
  %s7 = scalar_select 0, %s6, %s4
  loop: start=0, step=1, limit=4
  $region2: #{sublayer_block.4} parent=0 // loop_pre_header
    _
  $region3: #{sublayer_block.4} parent=0 // loop_header
    %s9 = sphi 0, %s13
    %p10 = scmp.ge.s32.totalorder %s9, 4
    %s16 = sphi 0, %s35
    %s17 = sphi 0, %s31
    %s18 = sphi 0, %s27
    %s19 = sphi 0, %s16
    %s20 = sphi 0, %s17
    %s21 = sphi 0, %s18
    %s22 = sphi 0, %s19
    %s23 = sphi 0, %s20
    %s24 = sphi 0, %s21
    %s40 = sphi 0, %s42
    %s43 = sphi 0, %s40
    %s44 = sphi 0, %s43
    %s60 = sphi 0, %s44
    %s68 = sphi 0, %s70
    %s71 = sphi 0, %s68
    %s72 = sphi 0, %s71
    %s88 = sphi 0, %s72
    %s96 = sphi 0, %s98
    %s99 = sphi 0, %s96
    %s100 = sphi 0, %s99
    %s116 = sphi 0, %s100
    %s124 = sphi 0, %s126
    %s127 = sphi 0, %s124
    %s128 = sphi 0, %s127
    %s144 = sphi 0, %s128
  $region4: #{sublayer_block.4} parent=0 // loop_header_branch
    %12 = sbr.rel (%p10) target = $region8
  $region5: #{sublayer_block.4} parent=0 // loop_body
    %s14 = ssub.s32 %s9, 1
    %s15 = ssub.s32 %s9, 2
    %s25 = sadd.s32 1, %s18
    %p26 = scmp.ge.s32.totalorder %s25, 1
    %s27 = scalar_select %p26, 0, %s25
    %s28 = sadd.s32 1, %s17
    %s29 = scalar_select %p26, %s28, %s17
    %p30 = scmp.ge.s32.totalorder %s29, 1
    %s31 = scalar_select %p30, 0, %s29
    %s32 = sadd.s32 1, %s16
    %s33 = scalar_select %p30, %s32, %s16
    %p34 = scmp.ge.s32.totalorder %s33, 2
    %s35 = scalar_select %p34, 0, %s33
    %s36 = ssub.s32 %s16, %s35
    %s37 = ssub.s32 %s17, %s31
    %s38 = sor.u32 %s36, %s37
    %p39 = scmp.eq.s32.totalorder %s38, 0
    %s41 = sadd.s32 %s40, 1
    %s42 = scalar_select %p39, %s40, %s41
    %p45 = pneg %p39
    %p46 = scmp.eq.s32.totalorder %s9, 1
    %p47 = por %p45, %p46
    %p48 = scmp.ne.s32.totalorder %s40, %s43
    %p49 = scmp.eq.s32.totalorder %s9, 0
    %p50 = por %p48, %p49
    %p51 = scmp.ne.s32.totalorder %s40, %s43
    %p52 = scmp.eq.s32.totalorder %s14, 1
    %p53 = por %p51, %p52
    %p54 = scmp.ne.s32.totalorder %s43, %s44
    %p55 = scmp.eq.s32.totalorder %s14, 0
    %p56 = por %p54, %p55
    %p57 = scmp.ne.s32.totalorder %s43, %s44
    %p58 = scmp.eq.s32.totalorder %s15, 1
    %p59 = por %p57, %p58
    %p61 = scmp.ne.s32.totalorder %s44, %s60
    %p62 = scmp.eq.s32.totalorder %s15, 0
    %p63 = por %p61, %p62
    %s64 = ssub.s32 %s16, %s35
    %s65 = ssub.s32 %s18, %s27
    %s66 = sor.u32 %s64, %s65
    %p67 = scmp.eq.s32.totalorder %s66, 0
    %s69 = sadd.s32 %s68, 1
    %s70 = scalar_select %p67, %s68, %s69
    %p73 = pneg %p67
    %p74 = scmp.eq.s32.totalorder %s9, 1
    %p75 = por %p73, %p74
    %p76 = scmp.ne.s32.totalorder %s68, %s71
    %p77 = scmp.eq.s32.totalorder %s9, 0
    %p78 = por %p76, %p77
    %p79 = scmp.ne.s32.totalorder %s68, %s71
    %p80 = scmp.eq.s32.totalorder %s14, 1
    %p81 = por %p79, %p80
    %p82 = scmp.ne.s32.totalorder %s71, %s72
    %p83 = scmp.eq.s32.totalorder %s14, 0
    %p84 = por %p82, %p83
    %p85 = scmp.ne.s32.totalorder %s71, %s72
    %p86 = scmp.eq.s32.totalorder %s15, 1
    %p87 = por %p85, %p86
    %p89 = scmp.ne.s32.totalorder %s72, %s88
    %p90 = scmp.eq.s32.totalorder %s15, 0
    %p91 = por %p89, %p90
    %s92 = ssub.s32 %s16, %s35
    %s93 = ssub.s32 %s18, %s27
    %s94 = sor.u32 %s92, %s93
    %p95 = scmp.eq.s32.totalorder %s94, 0
    %s97 = sadd.s32 %s96, 1
    %s98 = scalar_select %p95, %s96, %s97
    %p101 = pneg %p95
    %p102 = scmp.eq.s32.totalorder %s9, 1
    %p103 = por %p101, %p102
    %p104 = scmp.ne.s32.totalorder %s96, %s99
    %p105 = scmp.eq.s32.totalorder %s9, 0
    %p106 = por %p104, %p105
    %p107 = scmp.ne.s32.totalorder %s96, %s99
    %p108 = scmp.eq.s32.totalorder %s14, 1
    %p109 = por %p107, %p108
    %p110 = scmp.ne.s32.totalorder %s99, %s100
    %p111 = scmp.eq.s32.totalorder %s14, 0
    %p112 = por %p110, %p111
    %p113 = scmp.ne.s32.totalorder %s99, %s100
    %p114 = scmp.eq.s32.totalorder %s15, 1
    %p115 = por %p113, %p114
    %p117 = scmp.ne.s32.totalorder %s100, %s116
    %p118 = scmp.eq.s32.totalorder %s15, 0
    %p119 = por %p117, %p118
    %s120 = ssub.s32 %s16, %s35
    %s121 = ssub.s32 %s17, %s31
    %s122 = sor.u32 %s120, %s121
    %p123 = scmp.eq.s32.totalorder %s122, 0
    %s125 = sadd.s32 %s124, 1
    %s126 = scalar_select %p123, %s124, %s125
    %p129 = pneg %p123
    %p130 = scmp.eq.s32.totalorder %s9, 1
    %p131 = por %p129, %p130
    %p132 = scmp.ne.s32.totalorder %s124, %s127
    %p133 = scmp.eq.s32.totalorder %s9, 0
    %p134 = por %p132, %p133
    %p135 = scmp.ne.s32.totalorder %s124, %s127
    %p136 = scmp.eq.s32.totalorder %s14, 1
    %p137 = por %p135, %p136
    %p138 = scmp.ne.s32.totalorder %s127, %s128
    %p139 = scmp.eq.s32.totalorder %s14, 0
    %p140 = por %p138, %p139
    %p141 = scmp.ne.s32.totalorder %s127, %s128
    %p142 = scmp.eq.s32.totalorder %s15, 1
    %p143 = por %p141, %p142
    %p145 = scmp.ne.s32.totalorder %s128, %s144
    %p146 = scmp.eq.s32.totalorder %s15, 0
    %p147 = por %p145, %p146
    %p148 = scmp.le.s32.totalorder 1, %s9
    %p149 = scmp.lt.s32.totalorder %s9, 3
    %p150 = pnand %p148, %p149
    %p151 = pneg %p150
    // Predicated region
    $region9: #{sublayer_block.4} parent=5 // pred_check
      _
    $region10: #{sublayer_block.4} parent=5 // pred_check_branch
      %153 = sbr.rel (%p150) target = $region12
    $region11: #{sublayer_block.4} parent=5 // pred_region
      %s154 = ssub.s32 %s9, 1
    $region12: #{sublayer_block.4} parent=5 // pred_fallthru
      _
    %p155 = scmp.lt.s32.totalorder %s9, 2
    // Predicated region
    $region13: #{sublayer_block.4} parent=5 // pred_check
      %p156 = pneg %p155
    $region14: #{sublayer_block.4} parent=5 // pred_check_branch
      %158 = sbr.rel (%p156) target = $region16
    $region15: #{sublayer_block.4} parent=5 // pred_region
      // Predicated region
      $region17: #{sublayer_block.4} parent=15 // pred_check
        %p159 = pneg %p50
      $region18: #{sublayer_block.4} parent=15 // pred_check_branch
        %161 = sbr.rel (%p159) target = $region20
      $region19: #{sublayer_block.4} parent=15 // pred_region
        %s162 = smul.u32 2, %s17
        %p163 = scmp.lt.s32.totalorder %s16, 1
        %s164 = scalar_select %p163, %s16, 1
        %p165 = scmp.lt.s32.totalorder %s162, 1
        %s166 = scalar_select %p165, %s162, 1
        %s167 = smul.addr %s164, 2
        %s168 = sadd.s32 %s166, %s167
        %s169 = smul.addr %s168, 8
        %s170 = scalar_lea.vmem %s0, %s169
        %s171 = smul.u32 2, %s17
      $region20: #{sublayer_block.4} parent=15 // pred_fallthru
        _
      // Predicated region
      $region21: #{sublayer_block.4} parent=15 // pred_check
        %p172 = pneg %p78
      $region22: #{sublayer_block.4} parent=15 // pred_check_branch
        %174 = sbr.rel (%p172) target = $region24
      $region23: #{sublayer_block.4} parent=15 // pred_region
        %s175 = smul.u32 2, %s18
        %p176 = scmp.lt.s32.totalorder %s16, 1
        %s177 = scalar_select %p176, %s16, 1
        %p178 = scmp.lt.s32.totalorder %s175, 1
        %s179 = scalar_select %p178, %s175, 1
        %s180 = smul.addr %s177, 2
        %s181 = sadd.s32 %s179, %s180
        %s182 = sadd.s32 %s181, 4
        %s183 = smul.addr %s182, 8
        %s184 = scalar_lea.vmem %s1, %s183
        %s185 = smul.u32 2, %s18
      $region24: #{sublayer_block.4} parent=15 // pred_fallthru
        _
      // Predicated region
      $region25: #{sublayer_block.4} parent=15 // pred_check
        %p186 = pneg %p106
      $region26: #{sublayer_block.4} parent=15 // pred_check_branch
        %188 = sbr.rel (%p186) target = $region28
      $region27: #{sublayer_block.4} parent=15 // pred_region
        %s189 = smul.u32 2, %s18
        %p190 = scmp.lt.s32.totalorder %s16, 1
        %s191 = scalar_select %p190, %s16, 1
        %p192 = scmp.lt.s32.totalorder %s189, 1
        %s193 = scalar_select %p192, %s189, 1
        %s194 = smul.addr %s191, 2
        %s195 = sadd.s32 %s193, %s194
        %s196 = sadd.s32 %s195, 8
        %s197 = smul.addr %s196, 8
        %s198 = scalar_lea.vmem %s2, %s197
        %s199 = smul.u32 2, %s18
      $region28: #{sublayer_block.4} parent=15 // pred_fallthru
        _
    $region16: #{sublayer_block.4} parent=5 // pred_fallthru
      _
    %p200 = scmp.le.s32.totalorder 1, %s9
    %p201 = scmp.lt.s32.totalorder %s9, 3
    %p202 = pnand %p200, %p201
    %p203 = pneg %p202
    // Predicated region
    $region29: #{sublayer_block.4} parent=5 // pred_check
      _
    $region30: #{sublayer_block.4} parent=5 // pred_check_branch
      %205 = sbr.rel (%p202) target = $region32
    $region31: #{sublayer_block.4} parent=5 // pred_region
      %s206 = ssub.s32 %s9, 1
      %s207 = smul.u32 2, %s20
      %p208 = scmp.lt.s32.totalorder %s19, 1
      %s209 = scalar_select %p208, %s19, 1
      %p210 = scmp.lt.s32.totalorder %s207, 1
      %s211 = scalar_select %p210, %s207, 1
      %s212 = smul.addr %s209, 2
      %s213 = sadd.s32 %s211, %s212
      %s214 = smul.addr %s213, 8
      %s215 = scalar_lea.vmem %s0, %s214
      %p216 = pneg %p56
      %p217 = pneg %p53
      %s218 = smul.u32 2, %s21
      %p219 = scmp.lt.s32.totalorder %s19, 1
      %s220 = scalar_select %p219, %s19, 1
      %p221 = scmp.lt.s32.totalorder %s218, 1
      %s222 = scalar_select %p221, %s218, 1
      %s223 = smul.addr %s220, 2
      %s224 = sadd.s32 %s222, %s223
      %s225 = sadd.s32 %s224, 4
      %s226 = smul.addr %s225, 8
      %s227 = scalar_lea.vmem %s1, %s226
      %p228 = pneg %p84
      %p229 = pneg %p81
      %s230 = smul.u32 2, %s21
      %p231 = scmp.lt.s32.totalorder %s19, 1
      %s232 = scalar_select %p231, %s19, 1
      %p233 = scmp.lt.s32.totalorder %s230, 1
      %s234 = scalar_select %p233, %s230, 1
      %s235 = smul.addr %s232, 2
      %s236 = sadd.s32 %s234, %s235
      %s237 = sadd.s32 %s236, 8
      %s238 = smul.addr %s237, 8
      %s239 = scalar_lea.vmem %s2, %s238
      %p240 = pneg %p112
      %p241 = pneg %p109
      %p242 = pneg %p140
      %p243 = pneg %p137
      %s244 = smul.u32 2, %s20
      %p245 = scmp.lt.s32.totalorder %s19, 1
      %s246 = scalar_select %p245, %s19, 1
      %p247 = scmp.lt.s32.totalorder %s244, 1
      %s248 = scalar_select %p247, %s244, 1
      %s249 = smul.addr %s246, 2
      %s250 = sadd.s32 %s248, %s249
      %s251 = smul.addr %s250, 8
      %s252 = scalar_lea.vmem %s3, %s251
      %s253 = smul.u32 2, %s20
      %p254 = scmp.lt.s32.totalorder %s19, 1
      %s255 = scalar_select %p254, %s19, 1
      %p256 = scmp.lt.s32.totalorder %s253, 1
      %s257 = scalar_select %p256, %s253, 1
      %s258 = smul.addr %s255, 2
      %s259 = sadd.s32 %s257, %s258
      %s260 = smul.addr %s259, 8
      %s261 = scalar_lea.vmem %s0, %s260
      %s262 = smul.u32 2, %s20
      %s263 = smul.u32 2, %s21
      %p264 = scmp.lt.s32.totalorder %s19, 1
      %s265 = scalar_select %p264, %s19, 1
      %p266 = scmp.lt.s32.totalorder %s263, 1
      %s267 = scalar_select %p266, %s263, 1
      %s268 = smul.addr %s265, 2
      %s269 = sadd.s32 %s267, %s268
      %s270 = sadd.s32 %s269, 4
      %s271 = smul.addr %s270, 8
      %s272 = scalar_lea.vmem %s1, %s271
      %s273 = smul.u32 2, %s21
      %s274 = smul.u32 2, %s21
      %p275 = scmp.lt.s32.totalorder %s19, 1
      %s276 = scalar_select %p275, %s19, 1
      %p277 = scmp.lt.s32.totalorder %s274, 1
      %s278 = scalar_select %p277, %s274, 1
      %s279 = smul.addr %s276, 2
      %s280 = sadd.s32 %s278, %s279
      %s281 = sadd.s32 %s280, 8
      %s282 = smul.addr %s281, 8
      %s283 = scalar_lea.vmem %s2, %s282
      %s284 = smul.u32 2, %s21
      %s285 = smul.u32 2, %s20
      %p286 = scmp.lt.s32.totalorder %s19, 1
      %s287 = scalar_select %p286, %s19, 1
      %p288 = scmp.lt.s32.totalorder %s285, 1
      %s289 = scalar_select %p288, %s285, 1
      %s290 = smul.addr %s287, 2
      %s291 = sadd.s32 %s289, %s290
      %s292 = smul.addr %s291, 8
      %s293 = scalar_lea.vmem %s3, %s292
      %s294 = smul.u32 2, %s20
      %p295 = scmp.eq.s32.totalorder %s21, 0
      // Predicated region
      $region33: #{sublayer_block.4} parent=31 // pred_check
        %p296 = pneg %p295
      $region34: #{sublayer_block.4} parent=31 // pred_check_branch
        %298 = sbr.rel (%p296) target = $region36
      $region35: #{sublayer_block.4} parent=31 // pred_region
        %vm299 = vcmask 7168
        %300 = vst.msk [vmem:[#allocation2] sm:$0xff] %vm299, -inf
        %301 = vst.msk [vmem:[#allocation2 + $0x8] sm:$0xff] %vm299, -inf
        %302 = vst.msk [vmem:[#allocation2 + $0x10] sm:$0xff] %vm299, -inf
        %303 = vst.msk [vmem:[#allocation2 + $0x18] sm:$0xff] %vm299, -inf
        %304 = vst.msk [vmem:[#allocation2 + $0x20] sm:$0xff] %vm299, -inf
        %305 = vst.msk [vmem:[#allocation2 + $0x28] sm:$0xff] %vm299, -inf
        %306 = vst.msk [vmem:[#allocation2 + $0x30] sm:$0xff] %vm299, -inf
        %307 = vst.msk [vmem:[#allocation2 + $0x38] sm:$0xff] %vm299, -inf
        %308 = vst.msk [vmem:[#allocation3] sm:$0xff] %vm299, 0.0
        %309 = vst.msk [vmem:[#allocation3 + $0x8] sm:$0xff] %vm299, 0.0
        %310 = vst.msk [vmem:[#allocation3 + $0x10] sm:$0xff] %vm299, 0.0
        %311 = vst.msk [vmem:[#allocation3 + $0x18] sm:$0xff] %vm299, 0.0
        %312 = vst.msk [vmem:[#allocation3 + $0x20] sm:$0xff] %vm299, 0.0
        %313 = vst.msk [vmem:[#allocation3 + $0x28] sm:$0xff] %vm299, 0.0
        %314 = vst.msk [vmem:[#allocation3 + $0x30] sm:$0xff] %vm299, 0.0
        %315 = vst.msk [vmem:[#allocation3 + $0x38] sm:$0xff] %vm299, 0.0
        %vm316 = vcmask 64512
        %317 = vst.msk [vmem:[#allocation4] sm:$0xff] %vm316, 0.0
        %318 = vst.msk [vmem:[#allocation4 + $0x8] sm:$0xff] %vm316, 0.0
        %319 = vst.msk [vmem:[#allocation4 + $0x10] sm:$0xff] %vm316, 0.0
        %320 = vst.msk [vmem:[#allocation4 + $0x18] sm:$0xff] %vm316, 0.0
        %321 = vst.msk [vmem:[#allocation4 + $0x20] sm:$0xff] %vm316, 0.0
        %322 = vst.msk [vmem:[#allocation4 + $0x28] sm:$0xff] %vm316, 0.0
        %323 = vst.msk [vmem:[#allocation4 + $0x30] sm:$0xff] %vm316, 0.0
        %324 = vst.msk [vmem:[#allocation4 + $0x38] sm:$0xff] %vm316, 0.0
      $region36: #{sublayer_block.4} parent=31 // pred_fallthru
        _
      %s325 = smul.u32 %s21, 16
      %s326 = sadd.s32 %s20, 1
      %s327 = smul.u32 %s326, 16
      %p328 = scmp.lt.s32.totalorder %s325, %s327
      // Predicated region
      $region37: #{sublayer_block.4} parent=31 // pred_check
        %p329 = pneg %p328
      $region38: #{sublayer_block.4} parent=31 // pred_check_branch
        %331 = sbr.rel (%p329) target = $region40
      $region39: #{sublayer_block.4} parent=31 // pred_region
        %v332 = vld [vmem:[%s261] sm:$0xff]
        %v333 = vld [vmem:[%s261 + $0x8] sm:$0xff]
        %v334 = vld [vmem:[%s272] sm:$0xff]
        %v335 = vld [vmem:[%s272 + $0x8] sm:$0xff]
        %v336 = vld [vmem:[%s283] sm:$0xff]
        %v337 = vld [vmem:[%s283 + $0x8] sm:$0xff]
        %s338 = smul.u32 %s20, 16
        %v339 = vlaneseq
        %v340 = vshrl.u32 %v339, 7
        %v341 = vadd.s32 %v340, 8
        %v342 = vstv %s338
        %v343 = vadd.s32 %v342, %v340
        %v344 = vadd.s32 %v342, %v341
        %v345 = vlaneseq
        %v346 = vand.u32 %v345, 127
        %v347 = vstv %s325
        %v348 = vadd.s32 %v347, %v346
        %vm349 = vcmp.le.s32.totalorder %v348, %v343
        %vm350 = vcmp.le.s32.totalorder %v348, %v344
        %vm351 = vcmask 64512
        %v353 = vsel %vm351, %v332, 0
        %v356 = vsel %vm351, %v333, 0
        %v359 = vsel %vm351, %v334, 0
        %v362 = vsel %vm351, %v335, 0
        %364 = vmatprep.subr.mxu0 0.0
        %365 = vmatpush1.xpose.msra.mxu0 0.0
        %366 = vmatprep.subr.mxu0 0.0
        %367 = vmatpush1.xpose.msra.mxu0 0.0
        %368 = vmatprep.subr.mxu0 0.0
        %369 = vmatpush1.xpose.msra.mxu0 0.0
        %370 = vmatprep.subr.mxu0 0.0
        %371 = vmatpush1.xpose.msra.mxu0 0.0
        %372 = vmatprep.subr.mxu0 0.0
        %373 = vmatpush1.xpose.msra.mxu0 0.0
        %374 = vmatprep.subr.mxu0 0.0
        %375 = vmatpush1.xpose.msra.mxu0 0.0
        %376 = vmatprep.subr.mxu0 0.0
        %377 = vmatpush1.xpose.msra.mxu0 0.0
        %378 = vmatprep.subr.mxu0 0.0
        %379 = vmatpush1.xpose.msra.mxu0 0.0
        %380 = vmatprep.subr.mxu0 0.0
        %381 = vmatpush1.xpose.msra.mxu0 0.0
        %382 = vmatprep.subr.mxu0 0.0
        %383 = vmatpush1.xpose.msra.mxu0 0.0
        %384 = vmatprep.subr.mxu0 0.0
        %385 = vmatpush1.xpose.msra.mxu0 0.0
        %386 = vmatprep.subr.mxu0 0.0
        %387 = vmatpush1.xpose.msra.mxu0 0.0
        %388 = vmatprep.subr.mxu0 0.0
        %389 = vmatpush1.xpose.msra.mxu0 0.0
        %390 = vmatprep.subr.mxu0 0.0
        %391 = vmatpush1.xpose.msra.mxu0 0.0
        %392 = vmatprep.subr.mxu0 0.0
        %393 = vmatpush1.xpose.msra.mxu0 %v362
        %394 = vmatprep.subr.mxu0 0.0
        %395 = vmatpush1.xpose.msra.mxu0 %v359
        %396 = vmatprep.subr.mxu0 0.0
        %397 = vmatpush2.xpose.msra.mxu0 0.0
        %398 = vmatprep.subr.mxu0 0.0
        %399 = vmatpush2.xpose.msra.mxu0 0.0
        %400 = vmatprep.subr.mxu0 0.0
        %401 = vmatpush2.xpose.msra.mxu0 0.0
        %402 = vmatprep.subr.mxu0 0.0
        %403 = vmatpush2.xpose.msra.mxu0 0.0
        %404 = vmatprep.subr.mxu0 0.0
        %405 = vmatpush2.xpose.msra.mxu0 0.0
        %406 = vmatprep.subr.mxu0 0.0
        %407 = vmatpush2.xpose.msra.mxu0 0.0
        %408 = vmatprep.subr.mxu0 0.0
        %409 = vmatpush2.xpose.msra.mxu0 0.0
        %410 = vmatprep.subr.mxu0 0.0
        %411 = vmatpush2.xpose.msra.mxu0 0.0
        %412 = vmatprep.subr.mxu0 0.0
        %413 = vmatpush2.xpose.msra.mxu0 0.0
        %414 = vmatprep.subr.mxu0 0.0
        %415 = vmatpush2.xpose.msra.mxu0 0.0
        %416 = vmatprep.subr.mxu0 0.0
        %417 = vmatpush2.xpose.msra.mxu0 0.0
        %418 = vmatprep.subr.mxu0 0.0
        %419 = vmatpush2.xpose.msra.mxu0 0.0
        %420 = vmatprep.subr.mxu0 0.0
        %421 = vmatpush2.xpose.msra.mxu0 0.0
        %422 = vmatprep.subr.mxu0 0.0
        %423 = vmatpush2.xpose.msra.mxu0 0.0
        %424 = vmatprep.subr.mxu0 0.0
        %425 = vmatpush2.xpose.msra.mxu0 0.0
        %426 = vmatprep.subr.mxu0 0.0
        %427 = vmatpush2.xpose.msra.mxu0 0.0
        %428 = vmatprep.mubr.f32.mxu0 0.0
        %429 = vmatmul.mubr.f32.gmra.mxu0 %v353
        %v430 = vpop.f32.mrf.mxu0
        %v431 = vadd.f32 0.0, %v430
        %v432 = vpop.f32.mrf.mxu0
        %433 = vmatprep.mubr.f32.mxu0 0.0
        %434 = vmatmul.mubr.f32.gmra.mxu0 %v356
        %v435 = vpop.f32.mrf.mxu0
        %v436 = vadd.f32 0.0, %v435
        %v437 = vpop.f32.mrf.mxu0
        %438 = vdwg.mxu0
        %v439 = vsel %vm349, %v431, -1e+09
        %v440 = vsel %vm350, %v436, -1e+09
        %v441 = vld [vmem:[#allocation2] sm:$0xff]
        %v442 = vld [vmem:[#allocation2 + $0x8] sm:$0xff]
        %vm443 = vcmask 130048
        %v444 = vsel %vm443, %v439, -inf
        %445 = vmax.xlane.f32.xlu0 %v444
        %v446 = vpop.xlane.xlu0 %445
        %v447 = vsel %vm443, %v440, -inf
        %448 = vmax.xlane.f32.xlu0 %v447
        %v449 = vpop.xlane.xlu0 %448
        %v450 = vmax.f32 %v441, %v446
        %v451 = vmax.f32 %v442, %v449
        %v452 = vsub.f32 %v441, %v450
        %v453 = vsub.f32 %v442, %v451
        %v454 = vmul.f32 %v452, 1.442695
        %v455 = vpow.pop %v454
        %v456 = vmul.f32 %v453, 1.442695
        %v457 = vpow.pop %v456
        %459 = vset.pattern.permute.xlu0 0
        %460 = vperm.xlu0 %459, %v450
        %v461 = vpop.permute.xlu0 %460
        %464 = vset.pattern.permute.xlu0 0
        %465 = vperm.xlu0 %464, %v451
        %v466 = vpop.permute.xlu0 %465
        %v468 = vsub.f32 %v439, %v461
        %v469 = vsub.f32 %v440, %v466
        %v470 = vmul.f32 %v468, 1.442695
        %v471 = vpow.pop %v470
        %v472 = vmul.f32 %v469, 1.442695
        %v473 = vpow.pop %v472
        %v474 = vld [vmem:[#allocation3] sm:$0xff]
        %v475 = vld [vmem:[#allocation3 + $0x8] sm:$0xff]
        %v476 = vmul.f32 %v455, %v474
        %v477 = vmul.f32 %v457, %v475
        %v478 = vsel %vm443, %v471, 0.0
        %479 = vadd.xlane.f32.xlu0 %v478
        %v480 = vpop.xlane.xlu0 %479
        %v481 = vsel %vm443, %v473, 0.0
        %482 = vadd.xlane.f32.xlu0 %v481
        %v483 = vpop.xlane.xlu0 %482
        %v484 = vadd.f32 %v476, %v480
        %v485 = vadd.f32 %v477, %v483
        %vm486 = vcmask 7168
        %487 = vst.msk [vmem:[#allocation3] sm:$0xff] %vm486, %v484
        %488 = vst.msk [vmem:[#allocation3 + $0x8] sm:$0xff] %vm486, %v485
        %v489 = vld [vmem:[#allocation4] sm:$0xff]
        %v490 = vld [vmem:[#allocation4 + $0x8] sm:$0xff]
        %492 = vset.pattern.permute.xlu0 0
        %493 = vperm.xlu0 %492, %v455
        %v494 = vpop.permute.xlu0 %493
        %497 = vset.pattern.permute.xlu0 0
        %498 = vperm.xlu0 %497, %v457
        %v499 = vpop.permute.xlu0 %498
        %v501 = vmul.f32 %v494, %v489
        %v502 = vmul.f32 %v499, %v490
        %v504 = vsel %vm443, %v471, 0
        %v507 = vsel %vm443, %v473, 0
        %509 = vmatprep.subr.mxu0 0.0
        %510 = vmatpush1.msra.mxu0 0.0
        %511 = vmatprep.subr.mxu0 0.0
        %512 = vmatpush1.msra.mxu0 0.0
        %513 = vmatprep.subr.mxu0 0.0
        %514 = vmatpush1.msra.mxu0 0.0
        %515 = vmatprep.subr.mxu0 0.0
        %516 = vmatpush1.msra.mxu0 0.0
        %517 = vmatprep.subr.mxu0 0.0
        %518 = vmatpush1.msra.mxu0 0.0
        %519 = vmatprep.subr.mxu0 0.0
        %520 = vmatpush1.msra.mxu0 0.0
        %521 = vmatprep.subr.mxu0 0.0
        %522 = vmatpush1.msra.mxu0 0.0
        %523 = vmatprep.subr.mxu0 0.0
        %524 = vmatpush1.msra.mxu0 0.0
        %525 = vmatprep.subr.mxu0 0.0
        %526 = vmatpush1.msra.mxu0 0.0
        %527 = vmatprep.subr.mxu0 0.0
        %528 = vmatpush1.msra.mxu0 0.0
        %529 = vmatprep.subr.mxu0 0.0
        %530 = vmatpush1.msra.mxu0 0.0
        %531 = vmatprep.subr.mxu0 0.0
        %532 = vmatpush1.msra.mxu0 0.0
        %533 = vmatprep.subr.mxu0 0.0
        %534 = vmatpush1.msra.mxu0 0.0
        %535 = vmatprep.subr.mxu0 0.0
        %536 = vmatpush1.msra.mxu0 0.0
        %537 = vmatprep.subr.mxu0 0.0
        %538 = vmatpush1.msra.mxu0 %v337
        %539 = vmatprep.subr.mxu0 0.0
        %540 = vmatpush1.msra.mxu0 %v336
        %541 = vmatprep.subr.mxu0 0.0
        %542 = vmatpush2.msra.mxu0 0.0
        %543 = vmatprep.subr.mxu0 0.0
        %544 = vmatpush2.msra.mxu0 0.0
        %545 = vmatprep.subr.mxu0 0.0
        %546 = vmatpush2.msra.mxu0 0.0
        %547 = vmatprep.subr.mxu0 0.0
        %548 = vmatpush2.msra.mxu0 0.0
        %549 = vmatprep.subr.mxu0 0.0
        %550 = vmatpush2.msra.mxu0 0.0
        %551 = vmatprep.subr.mxu0 0.0
        %552 = vmatpush2.msra.mxu0 0.0
        %553 = vmatprep.subr.mxu0 0.0
        %554 = vmatpush2.msra.mxu0 0.0
        %555 = vmatprep.subr.mxu0 0.0
        %556 = vmatpush2.msra.mxu0 0.0
        %557 = vmatprep.subr.mxu0 0.0
        %558 = vmatpush2.msra.mxu0 0.0
        %559 = vmatprep.subr.mxu0 0.0
        %560 = vmatpush2.msra.mxu0 0.0
        %561 = vmatprep.subr.mxu0 0.0
        %562 = vmatpush2.msra.mxu0 0.0
        %563 = vmatprep.subr.mxu0 0.0
        %564 = vmatpush2.msra.mxu0 0.0
        %565 = vmatprep.subr.mxu0 0.0
        %566 = vmatpush2.msra.mxu0 0.0
        %567 = vmatprep.subr.mxu0 0.0
        %568 = vmatpush2.msra.mxu0 0.0
        %569 = vmatprep.subr.mxu0 0.0
        %570 = vmatpush2.msra.mxu0 0.0
        %571 = vmatprep.subr.mxu0 0.0
        %572 = vmatpush2.msra.mxu0 0.0
        %573 = vmatprep.mubr.f32.mxu0 0.0
        %574 = vmatmul.mubr.f32.gmra.mxu0 %v504
        %v575 = vpop.f32.mrf.mxu0
        %v576 = vadd.f32 0.0, %v575
        %v577 = vpop.f32.mrf.mxu0
        %578 = vmatprep.mubr.f32.mxu0 0.0
        %579 = vmatmul.mubr.f32.gmra.mxu0 %v507
        %v580 = vpop.f32.mrf.mxu0
        %v581 = vadd.f32 0.0, %v580
        %v582 = vpop.f32.mrf.mxu0
        %583 = vdwg.mxu0
        %v584 = vadd.f32 %v501, %v576
        %v585 = vadd.f32 %v502, %v581
        %586 = vst.msk [vmem:[#allocation4] sm:$0xff] %vm351, %v584
        %587 = vst.msk [vmem:[#allocation4 + $0x8] sm:$0xff] %vm351, %v585
        %588 = vst.msk [vmem:[#allocation2] sm:$0xff] %vm486, %v450
        %589 = vst.msk [vmem:[#allocation2 + $0x8] sm:$0xff] %vm486, %v451
        %590 = vrot.lane.b32.xlu0 %v332, 120
        %v591 = vpop.permute.xlu0 %590
        %592 = vrot.lane.b32.xlu0 %v333, 120
        %v593 = vpop.permute.xlu0 %592
        %594 = vrot.lane.b32.xlu0 %v334, 120
        %v595 = vpop.permute.xlu0 %594
        %596 = vrot.lane.b32.xlu0 %v335, 120
        %v597 = vpop.permute.xlu0 %596
        %v598 = vsel %vm351, %v591, 0
        %v600 = vsel %vm351, %v593, 0
        %v602 = vsel %vm351, %v595, 0
        %v604 = vsel %vm351, %v597, 0
        %606 = vmatprep.subr.mxu0 0.0
        %607 = vmatpush1.xpose.msra.mxu0 0.0
        %608 = vmatprep.subr.mxu0 0.0
        %609 = vmatpush1.xpose.msra.mxu0 0.0
        %610 = vmatprep.subr.mxu0 0.0
        %611 = vmatpush1.xpose.msra.mxu0 0.0
        %612 = vmatprep.subr.mxu0 0.0
        %613 = vmatpush1.xpose.msra.mxu0 0.0
        %614 = vmatprep.subr.mxu0 0.0
        %615 = vmatpush1.xpose.msra.mxu0 0.0
        %616 = vmatprep.subr.mxu0 0.0
        %617 = vmatpush1.xpose.msra.mxu0 0.0
        %618 = vmatprep.subr.mxu0 0.0
        %619 = vmatpush1.xpose.msra.mxu0 0.0
        %620 = vmatprep.subr.mxu0 0.0
        %621 = vmatpush1.xpose.msra.mxu0 0.0
        %622 = vmatprep.subr.mxu0 0.0
        %623 = vmatpush1.xpose.msra.mxu0 0.0
        %624 = vmatprep.subr.mxu0 0.0
        %625 = vmatpush1.xpose.msra.mxu0 0.0
        %626 = vmatprep.subr.mxu0 0.0
        %627 = vmatpush1.xpose.msra.mxu0 0.0
        %628 = vmatprep.subr.mxu0 0.0
        %629 = vmatpush1.xpose.msra.mxu0 0.0
        %630 = vmatprep.subr.mxu0 0.0
        %631 = vmatpush1.xpose.msra.mxu0 0.0
        %632 = vmatprep.subr.mxu0 0.0
        %633 = vmatpush1.xpose.msra.mxu0 0.0
        %634 = vmatprep.subr.mxu0 0.0
        %635 = vmatpush1.xpose.msra.mxu0 %v604
        %636 = vmatprep.subr.mxu0 0.0
        %637 = vmatpush1.xpose.msra.mxu0 %v602
        %638 = vmatprep.subr.mxu0 0.0
        %639 = vmatpush2.xpose.msra.mxu0 0.0
        %640 = vmatprep.subr.mxu0 0.0
        %641 = vmatpush2.xpose.msra.mxu0 0.0
        %642 = vmatprep.subr.mxu0 0.0
        %643 = vmatpush2.xpose.msra.mxu0 0.0
        %644 = vmatprep.subr.mxu0 0.0
        %645 = vmatpush2.xpose.msra.mxu0 0.0
        %646 = vmatprep.subr.mxu0 0.0
        %647 = vmatpush2.xpose.msra.mxu0 0.0
        %648 = vmatprep.subr.mxu0 0.0
        %649 = vmatpush2.xpose.msra.mxu0 0.0
        %650 = vmatprep.subr.mxu0 0.0
        %651 = vmatpush2.xpose.msra.mxu0 0.0
        %652 = vmatprep.subr.mxu0 0.0
        %653 = vmatpush2.xpose.msra.mxu0 0.0
        %654 = vmatprep.subr.mxu0 0.0
        %655 = vmatpush2.xpose.msra.mxu0 0.0
        %656 = vmatprep.subr.mxu0 0.0
        %657 = vmatpush2.xpose.msra.mxu0 0.0
        %658 = vmatprep.subr.mxu0 0.0
        %659 = vmatpush2.xpose.msra.mxu0 0.0
        %660 = vmatprep.subr.mxu0 0.0
        %661 = vmatpush2.xpose.msra.mxu0 0.0
        %662 = vmatprep.subr.mxu0 0.0
        %663 = vmatpush2.xpose.msra.mxu0 0.0
        %664 = vmatprep.subr.mxu0 0.0
        %665 = vmatpush2.xpose.msra.mxu0 0.0
        %666 = vmatprep.subr.mxu0 0.0
        %667 = vmatpush2.xpose.msra.mxu0 0.0
        %668 = vmatprep.subr.mxu0 0.0
        %669 = vmatpush2.xpose.msra.mxu0 0.0
        %670 = vmatprep.mubr.f32.mxu0 0.0
        %671 = vmatmul.mubr.f32.gmra.mxu0 %v598
        %v672 = vpop.f32.mrf.mxu0
        %v673 = vadd.f32 0.0, %v672
        %v674 = vpop.f32.mrf.mxu0
        %675 = vmatprep.mubr.f32.mxu0 0.0
        %676 = vmatmul.mubr.f32.gmra.mxu0 %v600
        %v677 = vpop.f32.mrf.mxu0
        %v678 = vadd.f32 0.0, %v677
        %v679 = vpop.f32.mrf.mxu0
        %680 = vdwg.mxu0
        %v681 = vsel %vm349, %v673, -1e+09
        %v682 = vsel %vm350, %v678, -1e+09
        %s683 = scalar_lea.vmem [#allocation2], 16
        %v684 = vld [vmem:[%s683] sm:$0xff]
        %v685 = vld [vmem:[%s683 + $0x8] sm:$0xff]
        %v686 = vsel %vm443, %v681, -inf
        %687 = vmax.xlane.f32.xlu0 %v686
        %v688 = vpop.xlane.xlu0 %687
        %v689 = vsel %vm443, %v682, -inf
        %690 = vmax.xlane.f32.xlu0 %v689
        %v691 = vpop.xlane.xlu0 %690
        %v692 = vmax.f32 %v684, %v688
        %v693 = vmax.f32 %v685, %v691
        %v694 = vsub.f32 %v684, %v692
        %v695 = vsub.f32 %v685, %v693
        %v696 = vmul.f32 %v694, 1.442695
        %v697 = vpow.pop %v696
        %v698 = vmul.f32 %v695, 1.442695
        %v699 = vpow.pop %v698
        %701 = vset.pattern.permute.xlu0 0
        %702 = vperm.xlu0 %701, %v692
        %v703 = vpop.permute.xlu0 %702
        %706 = vset.pattern.permute.xlu0 0
        %707 = vperm.xlu0 %706, %v693
        %v708 = vpop.permute.xlu0 %707
        %v710 = vsub.f32 %v681, %v703
        %v711 = vsub.f32 %v682, %v708
        %v712 = vmul.f32 %v710, 1.442695
        %v713 = vpow.pop %v712
        %v714 = vmul.f32 %v711, 1.442695
        %v715 = vpow.pop %v714
        %s716 = scalar_lea.vmem [#allocation3], 16
        %v717 = vld [vmem:[%s716] sm:$0xff]
        %v718 = vld [vmem:[%s716 + $0x8] sm:$0xff]
        %v719 = vmul.f32 %v697, %v717
        %v720 = vmul.f32 %v699, %v718
        %v721 = vsel %vm443, %v713, 0.0
        %722 = vadd.xlane.f32.xlu0 %v721
        %v723 = vpop.xlane.xlu0 %722
        %v724 = vsel %vm443, %v715, 0.0
        %725 = vadd.xlane.f32.xlu0 %v724
        %v726 = vpop.xlane.xlu0 %725
        %v727 = vadd.f32 %v719, %v723
        %v728 = vadd.f32 %v720, %v726
        %729 = vst.msk [vmem:[%s716] sm:$0xff] %vm486, %v727
        %730 = vst.msk [vmem:[%s716 + $0x8] sm:$0xff] %vm486, %v728
        %s731 = scalar_lea.vmem [#allocation4], 16
        %v732 = vld [vmem:[%s731] sm:$0xff]
        %v733 = vld [vmem:[%s731 + $0x8] sm:$0xff]
        %735 = vset.pattern.permute.xlu0 0
        %736 = vperm.xlu0 %735, %v697
        %v737 = vpop.permute.xlu0 %736
        %740 = vset.pattern.permute.xlu0 0
        %741 = vperm.xlu0 %740, %v699
        %v742 = vpop.permute.xlu0 %741
        %v744 = vmul.f32 %v737, %v732
        %v745 = vmul.f32 %v742, %v733
        %748 = vrot.lane.b32.xlu0 %v336, 120
        %v749 = vpop.permute.xlu0 %748
        %750 = vrot.lane.b32.xlu0 %v337, 120
        %v751 = vpop.permute.xlu0 %750
        %v755 = vsel %vm443, %v713, 0
        %v758 = vsel %vm443, %v715, 0
        %760 = vmatprep.subr.mxu0 0.0
        %761 = vmatpush1.msra.mxu0 0.0
        %762 = vmatprep.subr.mxu0 0.0
        %763 = vmatpush1.msra.mxu0 0.0
        %764 = vmatprep.subr.mxu0 0.0
        %765 = vmatpush1.msra.mxu0 0.0
        %766 = vmatprep.subr.mxu0 0.0
        %767 = vmatpush1.msra.mxu0 0.0
        %768 = vmatprep.subr.mxu0 0.0
        %769 = vmatpush1.msra.mxu0 0.0
        %770 = vmatprep.subr.mxu0 0.0
        %771 = vmatpush1.msra.mxu0 0.0
        %772 = vmatprep.subr.mxu0 0.0
        %773 = vmatpush1.msra.mxu0 0.0
        %774 = vmatprep.subr.mxu0 0.0
        %775 = vmatpush1.msra.mxu0 0.0
        %776 = vmatprep.subr.mxu0 0.0
        %777 = vmatpush1.msra.mxu0 0.0
        %778 = vmatprep.subr.mxu0 0.0
        %779 = vmatpush1.msra.mxu0 0.0
        %780 = vmatprep.subr.mxu0 0.0
        %781 = vmatpush1.msra.mxu0 0.0
        %782 = vmatprep.subr.mxu0 0.0
        %783 = vmatpush1.msra.mxu0 0.0
        %784 = vmatprep.subr.mxu0 0.0
        %785 = vmatpush1.msra.mxu0 0.0
        %786 = vmatprep.subr.mxu0 0.0
        %787 = vmatpush1.msra.mxu0 0.0
        %788 = vmatprep.subr.mxu0 0.0
        %789 = vmatpush1.msra.mxu0 %v751
        %790 = vmatprep.subr.mxu0 0.0
        %791 = vmatpush1.msra.mxu0 %v749
        %792 = vmatprep.subr.mxu0 0.0
        %793 = vmatpush2.msra.mxu0 0.0
        %794 = vmatprep.subr.mxu0 0.0
        %795 = vmatpush2.msra.mxu0 0.0
        %796 = vmatprep.subr.mxu0 0.0
        %797 = vmatpush2.msra.mxu0 0.0
        %798 = vmatprep.subr.mxu0 0.0
        %799 = vmatpush2.msra.mxu0 0.0
        %800 = vmatprep.subr.mxu0 0.0
        %801 = vmatpush2.msra.mxu0 0.0
        %802 = vmatprep.subr.mxu0 0.0
        %803 = vmatpush2.msra.mxu0 0.0
        %804 = vmatprep.subr.mxu0 0.0
        %805 = vmatpush2.msra.mxu0 0.0
        %806 = vmatprep.subr.mxu0 0.0
        %807 = vmatpush2.msra.mxu0 0.0
        %808 = vmatprep.subr.mxu0 0.0
        %809 = vmatpush2.msra.mxu0 0.0
        %810 = vmatprep.subr.mxu0 0.0
        %811 = vmatpush2.msra.mxu0 0.0
        %812 = vmatprep.subr.mxu0 0.0
        %813 = vmatpush2.msra.mxu0 0.0
        %814 = vmatprep.subr.mxu0 0.0
        %815 = vmatpush2.msra.mxu0 0.0
        %816 = vmatprep.subr.mxu0 0.0
        %817 = vmatpush2.msra.mxu0 0.0
        %818 = vmatprep.subr.mxu0 0.0
        %819 = vmatpush2.msra.mxu0 0.0
        %820 = vmatprep.subr.mxu0 0.0
        %821 = vmatpush2.msra.mxu0 0.0
        %822 = vmatprep.subr.mxu0 0.0
        %823 = vmatpush2.msra.mxu0 0.0
        %824 = vmatprep.mubr.f32.mxu0 0.0
        %825 = vmatmul.mubr.f32.gmra.mxu0 %v755
        %v826 = vpop.f32.mrf.mxu0
        %v827 = vadd.f32 0.0, %v826
        %v828 = vpop.f32.mrf.mxu0
        %829 = vmatprep.mubr.f32.mxu0 0.0
        %830 = vmatmul.mubr.f32.gmra.mxu0 %v758
        %v831 = vpop.f32.mrf.mxu0
        %v832 = vadd.f32 0.0, %v831
        %v833 = vpop.f32.mrf.mxu0
        %834 = vdwg.mxu0
        %v835 = vadd.f32 %v744, %v827
        %v836 = vadd.f32 %v745, %v832
        %837 = vst.msk [vmem:[%s731] sm:$0xff] %vm351, %v835
        %838 = vst.msk [vmem:[%s731 + $0x8] sm:$0xff] %vm351, %v836
        %839 = vst.msk [vmem:[%s683] sm:$0xff] %vm486, %v692
        %840 = vst.msk [vmem:[%s683 + $0x8] sm:$0xff] %vm486, %v693
        %841 = vrot.lane.b32.xlu0 %v332, 112
        %v842 = vpop.permute.xlu0 %841
        %843 = vrot.lane.b32.xlu0 %v333, 112
        %v844 = vpop.permute.xlu0 %843
        %845 = vrot.lane.b32.xlu0 %v334, 112
        %v846 = vpop.permute.xlu0 %845
        %847 = vrot.lane.b32.xlu0 %v335, 112
        %v848 = vpop.permute.xlu0 %847
        %v849 = vsel %vm351, %v842, 0
        %v851 = vsel %vm351, %v844, 0
        %v853 = vsel %vm351, %v846, 0
        %v855 = vsel %vm351, %v848, 0
        %857 = vmatprep.subr.mxu0 0.0
        %858 = vmatpush1.xpose.msra.mxu0 0.0
        %859 = vmatprep.subr.mxu0 0.0
        %860 = vmatpush1.xpose.msra.mxu0 0.0
        %861 = vmatprep.subr.mxu0 0.0
        %862 = vmatpush1.xpose.msra.mxu0 0.0
        %863 = vmatprep.subr.mxu0 0.0
        %864 = vmatpush1.xpose.msra.mxu0 0.0
        %865 = vmatprep.subr.mxu0 0.0
        %866 = vmatpush1.xpose.msra.mxu0 0.0
        %867 = vmatprep.subr.mxu0 0.0
        %868 = vmatpush1.xpose.msra.mxu0 0.0
        %869 = vmatprep.subr.mxu0 0.0
        %870 = vmatpush1.xpose.msra.mxu0 0.0
        %871 = vmatprep.subr.mxu0 0.0
        %872 = vmatpush1.xpose.msra.mxu0 0.0
        %873 = vmatprep.subr.mxu0 0.0
        %874 = vmatpush1.xpose.msra.mxu0 0.0
        %875 = vmatprep.subr.mxu0 0.0
        %876 = vmatpush1.xpose.msra.mxu0 0.0
        %877 = vmatprep.subr.mxu0 0.0
        %878 = vmatpush1.xpose.msra.mxu0 0.0
        %879 = vmatprep.subr.mxu0 0.0
        %880 = vmatpush1.xpose.msra.mxu0 0.0
        %881 = vmatprep.subr.mxu0 0.0
        %882 = vmatpush1.xpose.msra.mxu0 0.0
        %883 = vmatprep.subr.mxu0 0.0
        %884 = vmatpush1.xpose.msra.mxu0 0.0
        %885 = vmatprep.subr.mxu0 0.0
        %886 = vmatpush1.xpose.msra.mxu0 %v855
        %887 = vmatprep.subr.mxu0 0.0
        %888 = vmatpush1.xpose.msra.mxu0 %v853
        %889 = vmatprep.subr.mxu0 0.0
        %890 = vmatpush2.xpose.msra.mxu0 0.0
        %891 = vmatprep.subr.mxu0 0.0
        %892 = vmatpush2.xpose.msra.mxu0 0.0
        %893 = vmatprep.subr.mxu0 0.0
        %894 = vmatpush2.xpose.msra.mxu0 0.0
        %895 = vmatprep.subr.mxu0 0.0
        %896 = vmatpush2.xpose.msra.mxu0 0.0
        %897 = vmatprep.subr.mxu0 0.0
        %898 = vmatpush2.xpose.msra.mxu0 0.0
        %899 = vmatprep.subr.mxu0 0.0
        %900 = vmatpush2.xpose.msra.mxu0 0.0
        %901 = vmatprep.subr.mxu0 0.0
        %902 = vmatpush2.xpose.msra.mxu0 0.0
        %903 = vmatprep.subr.mxu0 0.0
        %904 = vmatpush2.xpose.msra.mxu0 0.0
        %905 = vmatprep.subr.mxu0 0.0
        %906 = vmatpush2.xpose.msra.mxu0 0.0
        %907 = vmatprep.subr.mxu0 0.0
        %908 = vmatpush2.xpose.msra.mxu0 0.0
        %909 = vmatprep.subr.mxu0 0.0
        %910 = vmatpush2.xpose.msra.mxu0 0.0
        %911 = vmatprep.subr.mxu0 0.0
        %912 = vmatpush2.xpose.msra.mxu0 0.0
        %913 = vmatprep.subr.mxu0 0.0
        %914 = vmatpush2.xpose.msra.mxu0 0.0
        %915 = vmatprep.subr.mxu0 0.0
        %916 = vmatpush2.xpose.msra.mxu0 0.0
        %917 = vmatprep.subr.mxu0 0.0
        %918 = vmatpush2.xpose.msra.mxu0 0.0
        %919 = vmatprep.subr.mxu0 0.0
        %920 = vmatpush2.xpose.msra.mxu0 0.0
        %921 = vmatprep.mubr.f32.mxu0 0.0
        %922 = vmatmul.mubr.f32.gmra.mxu0 %v849
        %v923 = vpop.f32.mrf.mxu0
        %v924 = vadd.f32 0.0, %v923
        %v925 = vpop.f32.mrf.mxu0
        %926 = vmatprep.mubr.f32.mxu0 0.0
        %927 = vmatmul.mubr.f32.gmra.mxu0 %v851
        %v928 = vpop.f32.mrf.mxu0
        %v929 = vadd.f32 0.0, %v928
        %v930 = vpop.f32.mrf.mxu0
        %931 = vdwg.mxu0
        %v932 = vsel %vm349, %v924, -1e+09
        %v933 = vsel %vm350, %v929, -1e+09
        %s934 = scalar_lea.vmem [#allocation2], 32
        %v935 = vld [vmem:[%s934] sm:$0xff]
        %v936 = vld [vmem:[%s934 + $0x8] sm:$0xff]
        %v937 = vsel %vm443, %v932, -inf
        %938 = vmax.xlane.f32.xlu0 %v937
        %v939 = vpop.xlane.xlu0 %938
        %v940 = vsel %vm443, %v933, -inf
        %941 = vmax.xlane.f32.xlu0 %v940
        %v942 = vpop.xlane.xlu0 %941
        %v943 = vmax.f32 %v935, %v939
        %v944 = vmax.f32 %v936, %v942
        %v945 = vsub.f32 %v935, %v943
        %v946 = vsub.f32 %v936, %v944
        %v947 = vmul.f32 %v945, 1.442695
        %v948 = vpow.pop %v947
        %v949 = vmul.f32 %v946, 1.442695
        %v950 = vpow.pop %v949
        %952 = vset.pattern.permute.xlu0 0
        %953 = vperm.xlu0 %952, %v943
        %v954 = vpop.permute.xlu0 %953
        %957 = vset.pattern.permute.xlu0 0
        %958 = vperm.xlu0 %957, %v944
        %v959 = vpop.permute.xlu0 %958
        %v961 = vsub.f32 %v932, %v954
        %v962 = vsub.f32 %v933, %v959
        %v963 = vmul.f32 %v961, 1.442695
        %v964 = vpow.pop %v963
        %v965 = vmul.f32 %v962, 1.442695
        %v966 = vpow.pop %v965
        %s967 = scalar_lea.vmem [#allocation3], 32
        %v968 = vld [vmem:[%s967] sm:$0xff]
        %v969 = vld [vmem:[%s967 + $0x8] sm:$0xff]
        %v970 = vmul.f32 %v948, %v968
        %v971 = vmul.f32 %v950, %v969
        %v972 = vsel %vm443, %v964, 0.0
        %973 = vadd.xlane.f32.xlu0 %v972
        %v974 = vpop.xlane.xlu0 %973
        %v975 = vsel %vm443, %v966, 0.0
        %976 = vadd.xlane.f32.xlu0 %v975
        %v977 = vpop.xlane.xlu0 %976
        %v978 = vadd.f32 %v970, %v974
        %v979 = vadd.f32 %v971, %v977
        %980 = vst.msk [vmem:[%s967] sm:$0xff] %vm486, %v978
        %981 = vst.msk [vmem:[%s967 + $0x8] sm:$0xff] %vm486, %v979
        %s982 = scalar_lea.vmem [#allocation4], 32
        %v983 = vld [vmem:[%s982] sm:$0xff]
        %v984 = vld [vmem:[%s982 + $0x8] sm:$0xff]
        %986 = vset.pattern.permute.xlu0 0
        %987 = vperm.xlu0 %986, %v948
        %v988 = vpop.permute.xlu0 %987
        %991 = vset.pattern.permute.xlu0 0
        %992 = vperm.xlu0 %991, %v950
        %v993 = vpop.permute.xlu0 %992
        %v995 = vmul.f32 %v988, %v983
        %v996 = vmul.f32 %v993, %v984
        %997 = vrot.lane.b32.xlu0 %v336, 112
        %v998 = vpop.permute.xlu0 %997
        %999 = vrot.lane.b32.xlu0 %v337, 112
        %v1000 = vpop.permute.xlu0 %999
        %v1004 = vsel %vm443, %v964, 0
        %v1007 = vsel %vm443, %v966, 0
        %1009 = vmatprep.subr.mxu0 0.0
        %1010 = vmatpush1.msra.mxu0 0.0
        %1011 = vmatprep.subr.mxu0 0.0
        %1012 = vmatpush1.msra.mxu0 0.0
        %1013 = vmatprep.subr.mxu0 0.0
        %1014 = vmatpush1.msra.mxu0 0.0
        %1015 = vmatprep.subr.mxu0 0.0
        %1016 = vmatpush1.msra.mxu0 0.0
        %1017 = vmatprep.subr.mxu0 0.0
        %1018 = vmatpush1.msra.mxu0 0.0
        %1019 = vmatprep.subr.mxu0 0.0
        %1020 = vmatpush1.msra.mxu0 0.0
        %1021 = vmatprep.subr.mxu0 0.0
        %1022 = vmatpush1.msra.mxu0 0.0
        %1023 = vmatprep.subr.mxu0 0.0
        %1024 = vmatpush1.msra.mxu0 0.0
        %1025 = vmatprep.subr.mxu0 0.0
        %1026 = vmatpush1.msra.mxu0 0.0
        %1027 = vmatprep.subr.mxu0 0.0
        %1028 = vmatpush1.msra.mxu0 0.0
        %1029 = vmatprep.subr.mxu0 0.0
        %1030 = vmatpush1.msra.mxu0 0.0
        %1031 = vmatprep.subr.mxu0 0.0
        %1032 = vmatpush1.msra.mxu0 0.0
        %1033 = vmatprep.subr.mxu0 0.0
        %1034 = vmatpush1.msra.mxu0 0.0
        %1035 = vmatprep.subr.mxu0 0.0
        %1036 = vmatpush1.msra.mxu0 0.0
        %1037 = vmatprep.subr.mxu0 0.0
        %1038 = vmatpush1.msra.mxu0 %v1000
        %1039 = vmatprep.subr.mxu0 0.0
        %1040 = vmatpush1.msra.mxu0 %v998
        %1041 = vmatprep.subr.mxu0 0.0
        %1042 = vmatpush2.msra.mxu0 0.0
        %1043 = vmatprep.subr.mxu0 0.0
        %1044 = vmatpush2.msra.mxu0 0.0
        %1045 = vmatprep.subr.mxu0 0.0
        %1046 = vmatpush2.msra.mxu0 0.0
        %1047 = vmatprep.subr.mxu0 0.0
        %1048 = vmatpush2.msra.mxu0 0.0
        %1049 = vmatprep.subr.mxu0 0.0
        %1050 = vmatpush2.msra.mxu0 0.0
        %1051 = vmatprep.subr.mxu0 0.0
        %1052 = vmatpush2.msra.mxu0 0.0
        %1053 = vmatprep.subr.mxu0 0.0
        %1054 = vmatpush2.msra.mxu0 0.0
        %1055 = vmatprep.subr.mxu0 0.0
        %1056 = vmatpush2.msra.mxu0 0.0
        %1057 = vmatprep.subr.mxu0 0.0
        %1058 = vmatpush2.msra.mxu0 0.0
        %1059 = vmatprep.subr.mxu0 0.0
        %1060 = vmatpush2.msra.mxu0 0.0
        %1061 = vmatprep.subr.mxu0 0.0
        %1062 = vmatpush2.msra.mxu0 0.0
        %1063 = vmatprep.subr.mxu0 0.0
        %1064 = vmatpush2.msra.mxu0 0.0
        %1065 = vmatprep.subr.mxu0 0.0
        %1066 = vmatpush2.msra.mxu0 0.0
        %1067 = vmatprep.subr.mxu0 0.0
        %1068 = vmatpush2.msra.mxu0 0.0
        %1069 = vmatprep.subr.mxu0 0.0
        %1070 = vmatpush2.msra.mxu0 0.0
        %1071 = vmatprep.subr.mxu0 0.0
        %1072 = vmatpush2.msra.mxu0 0.0
        %1073 = vmatprep.mubr.f32.mxu0 0.0
        %1074 = vmatmul.mubr.f32.gmra.mxu0 %v1004
        %v1075 = vpop.f32.mrf.mxu0
        %v1076 = vadd.f32 0.0, %v1075
        %v1077 = vpop.f32.mrf.mxu0
        %1078 = vmatprep.mubr.f32.mxu0 0.0
        %1079 = vmatmul.mubr.f32.gmra.mxu0 %v1007
        %v1080 = vpop.f32.mrf.mxu0
        %v1081 = vadd.f32 0.0, %v1080
        %v1082 = vpop.f32.mrf.mxu0
        %1083 = vdwg.mxu0
        %v1084 = vadd.f32 %v995, %v1076
        %v1085 = vadd.f32 %v996, %v1081
        %1086 = vst.msk [vmem:[%s982] sm:$0xff] %vm351, %v1084
        %1087 = vst.msk [vmem:[%s982 + $0x8] sm:$0xff] %vm351, %v1085
        %1088 = vst.msk [vmem:[%s934] sm:$0xff] %vm486, %v943
        %1089 = vst.msk [vmem:[%s934 + $0x8] sm:$0xff] %vm486, %v944
        %1090 = vrot.lane.b32.xlu0 %v332, 104
        %v1091 = vpop.permute.xlu0 %1090
        %1092 = vrot.lane.b32.xlu0 %v333, 104
        %v1093 = vpop.permute.xlu0 %1092
        %1094 = vrot.lane.b32.xlu0 %v334, 104
        %v1095 = vpop.permute.xlu0 %1094
        %1096 = vrot.lane.b32.xlu0 %v335, 104
        %v1097 = vpop.permute.xlu0 %1096
        %v1098 = vsel %vm351, %v1091, 0
        %v1100 = vsel %vm351, %v1093, 0
        %v1102 = vsel %vm351, %v1095, 0
        %v1104 = vsel %vm351, %v1097, 0
        %1106 = vmatprep.subr.mxu0 0.0
        %1107 = vmatpush1.xpose.msra.mxu0 0.0
        %1108 = vmatprep.subr.mxu0 0.0
        %1109 = vmatpush1.xpose.msra.mxu0 0.0
        %1110 = vmatprep.subr.mxu0 0.0
        %1111 = vmatpush1.xpose.msra.mxu0 0.0
        %1112 = vmatprep.subr.mxu0 0.0
        %1113 = vmatpush1.xpose.msra.mxu0 0.0
        %1114 = vmatprep.subr.mxu0 0.0
        %1115 = vmatpush1.xpose.msra.mxu0 0.0
        %1116 = vmatprep.subr.mxu0 0.0
        %1117 = vmatpush1.xpose.msra.mxu0 0.0
        %1118 = vmatprep.subr.mxu0 0.0
        %1119 = vmatpush1.xpose.msra.mxu0 0.0
        %1120 = vmatprep.subr.mxu0 0.0
        %1121 = vmatpush1.xpose.msra.mxu0 0.0
        %1122 = vmatprep.subr.mxu0 0.0
        %1123 = vmatpush1.xpose.msra.mxu0 0.0
        %1124 = vmatprep.subr.mxu0 0.0
        %1125 = vmatpush1.xpose.msra.mxu0 0.0
        %1126 = vmatprep.subr.mxu0 0.0
        %1127 = vmatpush1.xpose.msra.mxu0 0.0
        %1128 = vmatprep.subr.mxu0 0.0
        %1129 = vmatpush1.xpose.msra.mxu0 0.0
        %1130 = vmatprep.subr.mxu0 0.0
        %1131 = vmatpush1.xpose.msra.mxu0 0.0
        %1132 = vmatprep.subr.mxu0 0.0
        %1133 = vmatpush1.xpose.msra.mxu0 0.0
        %1134 = vmatprep.subr.mxu0 0.0
        %1135 = vmatpush1.xpose.msra.mxu0 %v1104
        %1136 = vmatprep.subr.mxu0 0.0
        %1137 = vmatpush1.xpose.msra.mxu0 %v1102
        %1138 = vmatprep.subr.mxu0 0.0
        %1139 = vmatpush2.xpose.msra.mxu0 0.0
        %1140 = vmatprep.subr.mxu0 0.0
        %1141 = vmatpush2.xpose.msra.mxu0 0.0
        %1142 = vmatprep.subr.mxu0 0.0
        %1143 = vmatpush2.xpose.msra.mxu0 0.0
        %1144 = vmatprep.subr.mxu0 0.0
        %1145 = vmatpush2.xpose.msra.mxu0 0.0
        %1146 = vmatprep.subr.mxu0 0.0
        %1147 = vmatpush2.xpose.msra.mxu0 0.0
        %1148 = vmatprep.subr.mxu0 0.0
        %1149 = vmatpush2.xpose.msra.mxu0 0.0
        %1150 = vmatprep.subr.mxu0 0.0
        %1151 = vmatpush2.xpose.msra.mxu0 0.0
        %1152 = vmatprep.subr.mxu0 0.0
        %1153 = vmatpush2.xpose.msra.mxu0 0.0
        %1154 = vmatprep.subr.mxu0 0.0
        %1155 = vmatpush2.xpose.msra.mxu0 0.0
        %1156 = vmatprep.subr.mxu0 0.0
        %1157 = vmatpush2.xpose.msra.mxu0 0.0
        %1158 = vmatprep.subr.mxu0 0.0
        %1159 = vmatpush2.xpose.msra.mxu0 0.0
        %1160 = vmatprep.subr.mxu0 0.0
        %1161 = vmatpush2.xpose.msra.mxu0 0.0
        %1162 = vmatprep.subr.mxu0 0.0
        %1163 = vmatpush2.xpose.msra.mxu0 0.0
        %1164 = vmatprep.subr.mxu0 0.0
        %1165 = vmatpush2.xpose.msra.mxu0 0.0
        %1166 = vmatprep.subr.mxu0 0.0
        %1167 = vmatpush2.xpose.msra.mxu0 0.0
        %1168 = vmatprep.subr.mxu0 0.0
        %1169 = vmatpush2.xpose.msra.mxu0 0.0
        %1170 = vmatprep.mubr.f32.mxu0 0.0
        %1171 = vmatmul.mubr.f32.gmra.mxu0 %v1098
        %v1172 = vpop.f32.mrf.mxu0
        %v1173 = vadd.f32 0.0, %v1172
        %v1174 = vpop.f32.mrf.mxu0
        %1175 = vmatprep.mubr.f32.mxu0 0.0
        %1176 = vmatmul.mubr.f32.gmra.mxu0 %v1100
        %v1177 = vpop.f32.mrf.mxu0
        %v1178 = vadd.f32 0.0, %v1177
        %v1179 = vpop.f32.mrf.mxu0
        %1180 = vdwg.mxu0
        %v1181 = vsel %vm349, %v1173, -1e+09
        %v1182 = vsel %vm350, %v1178, -1e+09
        %s1183 = scalar_lea.vmem [#allocation2], 48
        %v1184 = vld [vmem:[%s1183] sm:$0xff]
        %v1185 = vld [vmem:[%s1183 + $0x8] sm:$0xff]
        %v1186 = vsel %vm443, %v1181, -inf
        %1187 = vmax.xlane.f32.xlu0 %v1186
        %v1188 = vpop.xlane.xlu0 %1187
        %v1189 = vsel %vm443, %v1182, -inf
        %1190 = vmax.xlane.f32.xlu0 %v1189
        %v1191 = vpop.xlane.xlu0 %1190
        %v1192 = vmax.f32 %v1184, %v1188
        %v1193 = vmax.f32 %v1185, %v1191
        %v1194 = vsub.f32 %v1184, %v1192
        %v1195 = vsub.f32 %v1185, %v1193
        %v1196 = vmul.f32 %v1194, 1.442695
        %v1197 = vpow.pop %v1196
        %v1198 = vmul.f32 %v1195, 1.442695
        %v1199 = vpow.pop %v1198
        %1201 = vset.pattern.permute.xlu0 0
        %1202 = vperm.xlu0 %1201, %v1192
        %v1203 = vpop.permute.xlu0 %1202
        %1206 = vset.pattern.permute.xlu0 0
        %1207 = vperm.xlu0 %1206, %v1193
        %v1208 = vpop.permute.xlu0 %1207
        %v1210 = vsub.f32 %v1181, %v1203
        %v1211 = vsub.f32 %v1182, %v1208
        %v1212 = vmul.f32 %v1210, 1.442695
        %v1213 = vpow.pop %v1212
        %v1214 = vmul.f32 %v1211, 1.442695
        %v1215 = vpow.pop %v1214
        %s1216 = scalar_lea.vmem [#allocation3], 48
        %v1217 = vld [vmem:[%s1216] sm:$0xff]
        %v1218 = vld [vmem:[%s1216 + $0x8] sm:$0xff]
        %v1219 = vmul.f32 %v1197, %v1217
        %v1220 = vmul.f32 %v1199, %v1218
        %v1221 = vsel %vm443, %v1213, 0.0
        %1222 = vadd.xlane.f32.xlu0 %v1221
        %v1223 = vpop.xlane.xlu0 %1222
        %v1224 = vsel %vm443, %v1215, 0.0
        %1225 = vadd.xlane.f32.xlu0 %v1224
        %v1226 = vpop.xlane.xlu0 %1225
        %v1227 = vadd.f32 %v1219, %v1223
        %v1228 = vadd.f32 %v1220, %v1226
        %1229 = vst.msk [vmem:[%s1216] sm:$0xff] %vm486, %v1227
        %1230 = vst.msk [vmem:[%s1216 + $0x8] sm:$0xff] %vm486, %v1228
        %s1231 = scalar_lea.vmem [#allocation4], 48
        %v1232 = vld [vmem:[%s1231] sm:$0xff]
        %v1233 = vld [vmem:[%s1231 + $0x8] sm:$0xff]
        %1235 = vset.pattern.permute.xlu0 0
        %1236 = vperm.xlu0 %1235, %v1197
        %v1237 = vpop.permute.xlu0 %1236
        %1240 = vset.pattern.permute.xlu0 0
        %1241 = vperm.xlu0 %1240, %v1199
        %v1242 = vpop.permute.xlu0 %1241
        %v1244 = vmul.f32 %v1237, %v1232
        %v1245 = vmul.f32 %v1242, %v1233
        %1246 = vrot.lane.b32.xlu0 %v336, 104
        %v1247 = vpop.permute.xlu0 %1246
        %1248 = vrot.lane.b32.xlu0 %v337, 104
        %v1249 = vpop.permute.xlu0 %1248
        %v1253 = vsel %vm443, %v1213, 0
        %v1256 = vsel %vm443, %v1215, 0
        %1258 = vmatprep.subr.mxu0 0.0
        %1259 = vmatpush1.msra.mxu0 0.0
        %1260 = vmatprep.subr.mxu0 0.0
        %1261 = vmatpush1.msra.mxu0 0.0
        %1262 = vmatprep.subr.mxu0 0.0
        %1263 = vmatpush1.msra.mxu0 0.0
        %1264 = vmatprep.subr.mxu0 0.0
        %1265 = vmatpush1.msra.mxu0 0.0
        %1266 = vmatprep.subr.mxu0 0.0
        %1267 = vmatpush1.msra.mxu0 0.0
        %1268 = vmatprep.subr.mxu0 0.0
        %1269 = vmatpush1.msra.mxu0 0.0
        %1270 = vmatprep.subr.mxu0 0.0
        %1271 = vmatpush1.msra.mxu0 0.0
        %1272 = vmatprep.subr.mxu0 0.0
        %1273 = vmatpush1.msra.mxu0 0.0
        %1274 = vmatprep.subr.mxu0 0.0
        %1275 = vmatpush1.msra.mxu0 0.0
        %1276 = vmatprep.subr.mxu0 0.0
        %1277 = vmatpush1.msra.mxu0 0.0
        %1278 = vmatprep.subr.mxu0 0.0
        %1279 = vmatpush1.msra.mxu0 0.0
        %1280 = vmatprep.subr.mxu0 0.0
        %1281 = vmatpush1.msra.mxu0 0.0
        %1282 = vmatprep.subr.mxu0 0.0
        %1283 = vmatpush1.msra.mxu0 0.0
        %1284 = vmatprep.subr.mxu0 0.0
        %1285 = vmatpush1.msra.mxu0 0.0
        %1286 = vmatprep.subr.mxu0 0.0
        %1287 = vmatpush1.msra.mxu0 %v1249
        %1288 = vmatprep.subr.mxu0 0.0
        %1289 = vmatpush1.msra.mxu0 %v1247
        %1290 = vmatprep.subr.mxu0 0.0
        %1291 = vmatpush2.msra.mxu0 0.0
        %1292 = vmatprep.subr.mxu0 0.0
        %1293 = vmatpush2.msra.mxu0 0.0
        %1294 = vmatprep.subr.mxu0 0.0
        %1295 = vmatpush2.msra.mxu0 0.0
        %1296 = vmatprep.subr.mxu0 0.0
        %1297 = vmatpush2.msra.mxu0 0.0
        %1298 = vmatprep.subr.mxu0 0.0
        %1299 = vmatpush2.msra.mxu0 0.0
        %1300 = vmatprep.subr.mxu0 0.0
        %1301 = vmatpush2.msra.mxu0 0.0
        %1302 = vmatprep.subr.mxu0 0.0
        %1303 = vmatpush2.msra.mxu0 0.0
        %1304 = vmatprep.subr.mxu0 0.0
        %1305 = vmatpush2.msra.mxu0 0.0
        %1306 = vmatprep.subr.mxu0 0.0
        %1307 = vmatpush2.msra.mxu0 0.0
        %1308 = vmatprep.subr.mxu0 0.0
        %1309 = vmatpush2.msra.mxu0 0.0
        %1310 = vmatprep.subr.mxu0 0.0
        %1311 = vmatpush2.msra.mxu0 0.0
        %1312 = vmatprep.subr.mxu0 0.0
        %1313 = vmatpush2.msra.mxu0 0.0
        %1314 = vmatprep.subr.mxu0 0.0
        %1315 = vmatpush2.msra.mxu0 0.0
        %1316 = vmatprep.subr.mxu0 0.0
        %1317 = vmatpush2.msra.mxu0 0.0
        %1318 = vmatprep.subr.mxu0 0.0
        %1319 = vmatpush2.msra.mxu0 0.0
        %1320 = vmatprep.subr.mxu0 0.0
        %1321 = vmatpush2.msra.mxu0 0.0
        %1322 = vmatprep.mubr.f32.mxu0 0.0
        %1323 = vmatmul.mubr.f32.gmra.mxu0 %v1253
        %v1324 = vpop.f32.mrf.mxu0
        %v1325 = vadd.f32 0.0, %v1324
        %v1326 = vpop.f32.mrf.mxu0
        %1327 = vmatprep.mubr.f32.mxu0 0.0
        %1328 = vmatmul.mubr.f32.gmra.mxu0 %v1256
        %v1329 = vpop.f32.mrf.mxu0
        %v1330 = vadd.f32 0.0, %v1329
        %v1331 = vpop.f32.mrf.mxu0
        %1332 = vdwg.mxu0
        %v1333 = vadd.f32 %v1244, %v1325
        %v1334 = vadd.f32 %v1245, %v1330
        %1335 = vst.msk [vmem:[%s1231] sm:$0xff] %vm351, %v1333
        %1336 = vst.msk [vmem:[%s1231 + $0x8] sm:$0xff] %vm351, %v1334
        %1337 = vst.msk [vmem:[%s1183] sm:$0xff] %vm486, %v1192
        %1338 = vst.msk [vmem:[%s1183 + $0x8] sm:$0xff] %vm486, %v1193
      $region40: #{sublayer_block.4} parent=31 // pred_fallthru
        _
      // Predicated region
      $region41: #{sublayer_block.4} parent=31 // pred_check
        %p1339 = pneg %p295
      $region42: #{sublayer_block.4} parent=31 // pred_check_branch
        %1341 = sbr.rel (%p1339) target = $region44
      $region43: #{sublayer_block.4} parent=31 // pred_region
        %v1342 = vld [vmem:[#allocation3] sm:$0xff]
        %v1343 = vld [vmem:[#allocation3 + $0x8] sm:$0xff]
        %v1344 = vrcp.pop %v1342
        %v1345 = vrcp.pop %v1343
        %v1346 = vld [vmem:[#allocation4] sm:$0xff]
        %v1347 = vld [vmem:[#allocation4 + $0x8] sm:$0xff]
        %1349 = vset.pattern.permute.xlu0 0
        %1350 = vperm.xlu0 %1349, %v1344
        %v1351 = vpop.permute.xlu0 %1350
        %1354 = vset.pattern.permute.xlu0 0
        %1355 = vperm.xlu0 %1354, %v1345
        %v1356 = vpop.permute.xlu0 %1355
        %v1358 = vmul.f32 %v1346, %v1351
        %v1359 = vmul.f32 %v1347, %v1356
        %s1360 = scalar_lea.vmem [#allocation3], 16
        %v1361 = vld [vmem:[%s1360] sm:$0xff]
        %v1362 = vld [vmem:[%s1360 + $0x8] sm:$0xff]
        %v1363 = vrcp.pop %v1361
        %v1364 = vrcp.pop %v1362
        %s1365 = scalar_lea.vmem [#allocation4], 16
        %v1366 = vld [vmem:[%s1365] sm:$0xff]
        %v1367 = vld [vmem:[%s1365 + $0x8] sm:$0xff]
        %1369 = vset.pattern.permute.xlu0 0
        %1370 = vperm.xlu0 %1369, %v1363
        %v1371 = vpop.permute.xlu0 %1370
        %1374 = vset.pattern.permute.xlu0 0
        %1375 = vperm.xlu0 %1374, %v1364
        %v1376 = vpop.permute.xlu0 %1375
        %v1378 = vmul.f32 %v1366, %v1371
        %v1379 = vmul.f32 %v1367, %v1376
        %s1380 = scalar_lea.vmem [#allocation3], 32
        %v1381 = vld [vmem:[%s1380] sm:$0xff]
        %v1382 = vld [vmem:[%s1380 + $0x8] sm:$0xff]
        %v1383 = vrcp.pop %v1381
        %v1384 = vrcp.pop %v1382
        %s1385 = scalar_lea.vmem [#allocation4], 32
        %v1386 = vld [vmem:[%s1385] sm:$0xff]
        %v1387 = vld [vmem:[%s1385 + $0x8] sm:$0xff]
        %1389 = vset.pattern.permute.xlu0 0
        %1390 = vperm.xlu0 %1389, %v1383
        %v1391 = vpop.permute.xlu0 %1390
        %1394 = vset.pattern.permute.xlu0 0
        %1395 = vperm.xlu0 %1394, %v1384
        %v1396 = vpop.permute.xlu0 %1395
        %v1398 = vmul.f32 %v1386, %v1391
        %v1399 = vmul.f32 %v1387, %v1396
        %s1400 = scalar_lea.vmem [#allocation3], 48
        %v1401 = vld [vmem:[%s1400] sm:$0xff]
        %v1402 = vld [vmem:[%s1400 + $0x8] sm:$0xff]
        %v1403 = vrcp.pop %v1401
        %v1404 = vrcp.pop %v1402
        %s1405 = scalar_lea.vmem [#allocation4], 48
        %v1406 = vld [vmem:[%s1405] sm:$0xff]
        %v1407 = vld [vmem:[%s1405 + $0x8] sm:$0xff]
        %1409 = vset.pattern.permute.xlu0 0
        %1410 = vperm.xlu0 %1409, %v1403
        %v1411 = vpop.permute.xlu0 %1410
        %1414 = vset.pattern.permute.xlu0 0
        %1415 = vperm.xlu0 %1414, %v1404
        %v1416 = vpop.permute.xlu0 %1415
        %v1418 = vmul.f32 %v1406, %v1411
        %v1419 = vmul.f32 %v1407, %v1416
        %1422 = vrot.lane.b32.xlu0 %v1378, 8
        %v1423 = vpop.permute.xlu0 %1422
        %1424 = vrot.lane.b32.xlu0 %v1379, 8
        %v1425 = vpop.permute.xlu0 %1424
        %1430 = vrot.lane.b32.xlu0 %v1398, 16
        %v1431 = vpop.permute.xlu0 %1430
        %1432 = vrot.lane.b32.xlu0 %v1399, 16
        %v1433 = vpop.permute.xlu0 %1432
        %1438 = vrot.lane.b32.xlu0 %v1418, 24
        %v1439 = vpop.permute.xlu0 %1438
        %1440 = vrot.lane.b32.xlu0 %v1419, 24
        %v1441 = vpop.permute.xlu0 %1440
        %vm1444 = vcmask 64512
        %v1445 = vsel %vm1444, %v1358, %v1423
        %v1446 = vsel %vm1444, %v1359, %v1425
        %vm1447 = vcmask 130048
        %v1448 = vsel %vm1447, %v1445, %v1431
        %v1449 = vsel %vm1447, %v1446, %v1433
        %vm1450 = vcmask 195584
        %v1451 = vsel %vm1450, %v1448, %v1439
        %v1452 = vsel %vm1450, %v1449, %v1441
        %vm1453 = vcmask 261120
        %1454 = vst.msk [vmem:[%s293] sm:$0xff] %vm1453, %v1451
        %1455 = vst.msk [vmem:[%s293 + $0x8] sm:$0xff] %vm1453, %v1452
      $region44: #{sublayer_block.4} parent=31 // pred_fallthru
        _
      %s1456 = smul.u32 2, %s20
      %p1457 = scmp.lt.s32.totalorder %s19, 1
      %s1458 = scalar_select %p1457, %s19, 1
      %p1459 = scmp.lt.s32.totalorder %s1456, 1
      %s1460 = scalar_select %p1459, %s1456, 1
      %s1461 = smul.addr %s1458, 2
      %s1462 = sadd.s32 %s1460, %s1461
      %s1463 = smul.addr %s1462, 8
      %s1464 = scalar_lea.vmem %s3, %s1463
      // Predicated region
      $region45: #{sublayer_block.4} parent=31 // pred_check
        %p1465 = pneg %p137
      $region46: #{sublayer_block.4} parent=31 // pred_check_branch
        %1467 = sbr.rel (%p1465) target = $region48
      $region47: #{sublayer_block.4} parent=31 // pred_region
        %s1468 = smul.u32 2, %s20
      $region48: #{sublayer_block.4} parent=31 // pred_fallthru
        _
    $region32: #{sublayer_block.4} parent=5 // pred_fallthru
      _
    %p1469 = scmp.le.s32.totalorder 2, %s9
    // Predicated region
    $region49: #{sublayer_block.4} parent=5 // pred_check
      %p1470 = pneg %p1469
    $region50: #{sublayer_block.4} parent=5 // pred_check_branch
      %1472 = sbr.rel (%p1470) target = $region52
    $region51: #{sublayer_block.4} parent=5 // pred_region
      %s1473 = ssub.s32 %s9, 2
      // Predicated region
      $region53: #{sublayer_block.4} parent=51 // pred_check
        %p1474 = pneg %p143
      $region54: #{sublayer_block.4} parent=51 // pred_check_branch
        %1476 = sbr.rel (%p1474) target = $region56
      $region55: #{sublayer_block.4} parent=51 // pred_region
        %s1477 = smul.u32 2, %s23
        %p1478 = scmp.lt.s32.totalorder %s22, 1
        %s1479 = scalar_select %p1478, %s22, 1
        %p1480 = scmp.lt.s32.totalorder %s1477, 1
        %s1481 = scalar_select %p1480, %s1477, 1
        %s1482 = smul.addr %s1479, 2
        %s1483 = sadd.s32 %s1481, %s1482
        %s1484 = smul.addr %s1483, 8
        %s1485 = scalar_lea.vmem %s3, %s1484
      $region56: #{sublayer_block.4} parent=51 // pred_fallthru
        _
    $region52: #{sublayer_block.4} parent=5 // pred_fallthru
      _
  $region6: #{sublayer_block.4} parent=0 // loop_footer
    %s13 = sadd.s32 1, %s9
  $region7: #{sublayer_block.4} parent=0 // loop_footer_branch
    %8 = sbr.rel target = $region3
  $region8: #{sublayer_block.4} parent=0 // loop_exit
    _

</llo_original>
